<compile_context>
chip_gen: v6e
topology: v6e:2x2x1
jax: 0.10.0
libtpu: 0.0.40
codegen_flags: <defaults>
</compile_context>

<pallas_src>
import functools

import jax
import jax.numpy as jnp
from jax.experimental import pallas as pl
from jax.experimental.pallas import tpu as pltpu

EPS = 1e-5


# ---------------------------------------------------------------------------
# Pallas kernels
# ---------------------------------------------------------------------------

def _conv3x3_stats_kernel(x_ref, w_ref, y_ref, s_ref, *, TH, W, Cin):
    """One padded row-tile of a 3x3 (pad=1, no-bias) convolution.

    x_ref : (1, TH+2, W+2, Cin) bf16  padded input tile (with halo rows)
    w_ref : (9*Cin, Cout)       bf16  HWIO weight flattened to (dy, dx, ci)
    y_ref : (TH*W, Cout)        f32   raw conv output rows for this tile
    s_ref : (1, 2, Cout)        f32   per-tile [sum, sum_of_squares] stats
    """
    x = x_ref[0].astype(jnp.float32)                       # (TH+2, W+2, Cin)
    # Build the 9-tap im2col patches in VMEM (never materialized in HBM).
    taps = [x[dy:dy + TH, dx:dx + W, :]
            for dy in range(3) for dx in range(3)]
    patches = jnp.concatenate(taps, axis=-1)               # (TH, W, 9*Cin)
    patches = patches.reshape(TH * W, 9 * Cin)
    acc = jnp.dot(patches.astype(jnp.bfloat16), w_ref[...],
                  preferred_element_type=jnp.float32)      # (TH*W, Cout) f32
    y_ref[...] = acc
    s_ref[0] = jnp.concatenate(
        [jnp.sum(acc, axis=0, keepdims=True),
         jnp.sum(acc * acc, axis=0, keepdims=True)], axis=0)


def _bn_relu_kernel(y_ref, scale_ref, shift_ref, o_ref):
    """Apply folded BatchNorm affine + ReLU on one row-tile (all f32)."""
    o_ref[...] = jnp.maximum(y_ref[...] * scale_ref[...] + shift_ref[...], 0.0)


# ---------------------------------------------------------------------------
# Layer wrapper
# ---------------------------------------------------------------------------

def _pick_row_tile(H, W, target_rows=2048):
    """Largest divisor TH of H with TH*W <= target_rows and (TH*W) % 8 == 0."""
    divisors = [d for d in range(1, H + 1) if H % d == 0]
    good = [d for d in divisors if d * W <= target_rows and (d * W) % 8 == 0]
    if good:
        return max(good)
    good = [d for d in divisors if (d * W) % 8 == 0]
    if good:
        return min(good)
    return H


def conv3x3_bn_relu(a, w, gamma, beta):
    """Conv2d(k=3, pad=1, bias=False) + train-mode BatchNorm2d + ReLU.

    a: (N, H, W, Cin) f32, w: (3, 3, Cin, Cout) f32 (HWIO),
    gamma/beta: (Cout,) f32.  Returns (N, H, W, Cout) f32.
    """
    N, H, W, Cin = a.shape
    Cout = w.shape[-1]
    TH = _pick_row_tile(H, W)
    nT = H // TH
    n_tiles = N * nT
    rows = TH * W
    M = N * H * W                                   # == n_tiles * rows

    # Pad once; duplicate only the 2 halo rows per tile (not a 9x im2col).
    ap = jnp.pad(a, ((0, 0), (1, 1), (1, 1), (0, 0)))
    tiles = jnp.stack([ap[:, t * TH:t * TH + TH + 2] for t in range(nT)],
                      axis=1)
    tiles = tiles.reshape(n_tiles, TH + 2, W + 2, Cin).astype(jnp.bfloat16)
    wf = w.reshape(9 * Cin, Cout).astype(jnp.bfloat16)

    kernel = functools.partial(_conv3x3_stats_kernel, TH=TH, W=W, Cin=Cin)
    y_raw, stats = pl.pallas_call(
        kernel,
        out_shape=(jax.ShapeDtypeStruct((M, Cout), jnp.float32),
                   jax.ShapeDtypeStruct((n_tiles, 2, Cout), jnp.float32)),
        grid_spec=pltpu.PrefetchScalarGridSpec(
            num_scalar_prefetch=0,
            grid=(n_tiles,),
            in_specs=[
                pl.BlockSpec((1, TH + 2, W + 2, Cin), lambda i: (i, 0, 0, 0)),
                pl.BlockSpec((9 * Cin, Cout), lambda i: (0, 0)),
            ],
            out_specs=(
                pl.BlockSpec((rows, Cout), lambda i: (i, 0)),
                pl.BlockSpec((1, 2, Cout), lambda i: (i, 0, 0)),
            ),
        ),
        compiler_params=pltpu.CompilerParams(
            dimension_semantics=("parallel",)),
    )(tiles, wf)

    # Fold batch statistics (biased variance, eps=1e-5) into scale/shift.
    total = jnp.sum(stats[:, 0, :], axis=0)
    total_sq = jnp.sum(stats[:, 1, :], axis=0)
    mean = total / M
    var = jnp.maximum(total_sq / M - mean * mean, 0.0)
    inv_std = jax.lax.rsqrt(var + EPS)
    scale = (gamma * inv_std).reshape(1, Cout).astype(jnp.float32)
    shift = (beta - mean * gamma * inv_std).reshape(1, Cout).astype(jnp.float32)

    out = pl.pallas_call(
        _bn_relu_kernel,
        out_shape=jax.ShapeDtypeStruct((M, Cout), jnp.float32),
        grid_spec=pltpu.PrefetchScalarGridSpec(
            num_scalar_prefetch=0,
            grid=(n_tiles,),
            in_specs=[
                pl.BlockSpec((rows, Cout), lambda i: (i, 0)),
                pl.BlockSpec((1, Cout), lambda i: (0, 0)),
                pl.BlockSpec((1, Cout), lambda i: (0, 0)),
            ],
            out_specs=pl.BlockSpec((rows, Cout), lambda i: (i, 0)),
        ),
        compiler_params=pltpu.CompilerParams(
            dimension_semantics=("parallel",)),
    )(y_raw, scale, shift)
    return out.reshape(N, H, W, Cout)


# ---------------------------------------------------------------------------
# DoubleConv module forward
# ---------------------------------------------------------------------------

def double_conv(x_nchw, params):
    """(Conv3x3 -> BN -> ReLU) * 2.  x: (N, Cin, H, W) -> (N, Cout, H, W)."""
    a = jnp.transpose(x_nchw, (0, 2, 3, 1))                # NCHW -> NHWC
    a = conv3x3_bn_relu(a, params["w1"], params["g1"], params["b1"])
    a = conv3x3_bn_relu(a, params["w2"], params["g2"], params["b2"])
    return jnp.transpose(a, (0, 3, 1, 2))                  # NHWC -> NCHW


# ---------------------------------------------------------------------------
# Pure-JAX reference (semantics check) + deterministic init
# ---------------------------------------------------------------------------

def _reference_double_conv(x_nchw, params):
    def layer(a, w, g, b):
        y = jax.lax.conv_general_dilated(
            a, w, window_strides=(1, 1), padding="SAME",
            dimension_numbers=("NHWC", "HWIO", "NHWC"))
        mean = jnp.mean(y, axis=(0, 1, 2))
        var = jnp.mean(jnp.square(y - mean), axis=(0, 1, 2))
        return jnp.maximum((y - mean) * jax.lax.rsqrt(var + EPS) * g + b, 0.0)

    a = jnp.transpose(x_nchw, (0, 2, 3, 1))
    a = layer(a, params["w1"], params["g1"], params["b1"])
    a = layer(a, params["w2"], params["g2"], params["b2"])
    return jnp.transpose(a, (0, 3, 1, 2))


def init_params(key, cin, cout, mid=None):
    mid = mid or cout
    k1, k2 = jax.random.split(key)
    w1 = jax.random.normal(k1, (3, 3, cin, mid), jnp.float32) * (2.0 / (9 * cin)) ** 0.5
    w2 = jax.random.normal(k2, (3, 3, mid, cout), jnp.float32) * (2.0 / (9 * mid)) ** 0.5
    return {"w1": w1, "g1": jnp.ones((mid,), jnp.float32),
            "b1": jnp.zeros((mid,), jnp.float32),
            "w2": w2, "g2": jnp.ones((cout,), jnp.float32),
            "b2": jnp.zeros((cout,), jnp.float32)}


if __name__ == "__main__":
    key = jax.random.PRNGKey(0)
    kp, kx = jax.random.split(key)

    batch, in_ch, out_ch, spatial = 2, 4, 8, 16
    params = init_params(kp, in_ch, out_ch)
    x = jax.random.normal(kx, (batch, in_ch, spatial, spatial), jnp.float32)

    fwd = jax.jit(functools.partial(double_conv, params=params))
    y = fwd(x)
    jax.block_until_ready(y)

    assert y.shape == (batch, out_ch, spatial, spatial), y.shape
    assert bool(jnp.all(jnp.isfinite(y)))
    assert bool(jnp.all(y >= 0.0))          # ReLU output is non-negative

    y_ref = _reference_double_conv(x, params)
    max_err = float(jnp.max(jnp.abs(y - y_ref)))
    assert max_err < 0.1, f"max abs error vs reference: {max_err}"

    print("KERNEL_OK")
</pallas_src>

<mosaic_0001>
module attributes {stable_mosaic.version = 11 : i64} {
  func.func @_conv3x3_stats_kernel(%arg0: i32, %arg1: memref<1x18x18x4xbf16, #tpu.memory_space<vmem>>, %arg2: memref<36x8xbf16, #tpu.memory_space<vmem>>, %arg3: memref<256x8xf32, #tpu.memory_space<vmem>>, %arg4: memref<1x2x8xf32, #tpu.memory_space<vmem>>) attributes {dimension_semantics = [#tpu.dimension_semantics<parallel>], iteration_bounds = array<i64: 2>, scalar_prefetch = 0 : i64, scratch_operands = 0 : i64, tpu.core_type = #tpu.core_type<tc>, window_params = [{transform_indices = @transform_0, window_bounds = array<i64: 1, 18, 18, 4>}, {pipeline_mode = #tpu.pipeline_mode<synchronous>, transform_indices = @transform_1, window_bounds = array<i64: 36, 8>}, {transform_indices = @transform_2, window_bounds = array<i64: 256, 8>}, {transform_indices = @transform_3, window_bounds = array<i64: 1, 2, 8>}]} {
    %c0 = arith.constant 0 : index
    %c0_0 = arith.constant 0 : index
    %c0_1 = arith.constant 0 : index
    %c0_2 = arith.constant 0 : index
    %0 = vector.load %arg1[%c0, %c0_0, %c0_1, %c0_2] : memref<1x18x18x4xbf16, #tpu.memory_space<vmem>>, vector<1x18x18x4xbf16>
    %1 = vector.shape_cast %0 : vector<1x18x18x4xbf16> to vector<18x18x4xbf16>
    %2 = arith.extf %1 : vector<18x18x4xbf16> to vector<18x18x4xf32>
    %3 = vector.extract_strided_slice %2 {offsets = [0, 0, 0], sizes = [16, 16, 4], strides = [1, 1, 1]} : vector<18x18x4xf32> to vector<16x16x4xf32>
    %4 = vector.extract_strided_slice %2 {offsets = [0, 1, 0], sizes = [16, 16, 4], strides = [1, 1, 1]} : vector<18x18x4xf32> to vector<16x16x4xf32>
    %5 = vector.extract_strided_slice %2 {offsets = [0, 2, 0], sizes = [16, 16, 4], strides = [1, 1, 1]} : vector<18x18x4xf32> to vector<16x16x4xf32>
    %6 = vector.extract_strided_slice %2 {offsets = [1, 0, 0], sizes = [16, 16, 4], strides = [1, 1, 1]} : vector<18x18x4xf32> to vector<16x16x4xf32>
    %7 = vector.extract_strided_slice %2 {offsets = [1, 1, 0], sizes = [16, 16, 4], strides = [1, 1, 1]} : vector<18x18x4xf32> to vector<16x16x4xf32>
    %8 = vector.extract_strided_slice %2 {offsets = [1, 2, 0], sizes = [16, 16, 4], strides = [1, 1, 1]} : vector<18x18x4xf32> to vector<16x16x4xf32>
    %9 = vector.extract_strided_slice %2 {offsets = [2, 0, 0], sizes = [16, 16, 4], strides = [1, 1, 1]} : vector<18x18x4xf32> to vector<16x16x4xf32>
    %10 = vector.extract_strided_slice %2 {offsets = [2, 1, 0], sizes = [16, 16, 4], strides = [1, 1, 1]} : vector<18x18x4xf32> to vector<16x16x4xf32>
    %11 = vector.extract_strided_slice %2 {offsets = [2, 2, 0], sizes = [16, 16, 4], strides = [1, 1, 1]} : vector<18x18x4xf32> to vector<16x16x4xf32>
    %12 = tpu.concatenate %3, %4, %5, %6, %7, %8, %9, %10, %11 in 2 : vector<16x16x4xf32>, vector<16x16x4xf32>, vector<16x16x4xf32>, vector<16x16x4xf32>, vector<16x16x4xf32>, vector<16x16x4xf32>, vector<16x16x4xf32>, vector<16x16x4xf32>, vector<16x16x4xf32> -> vector<16x16x36xf32>
    %13 = vector.shape_cast %12 : vector<16x16x36xf32> to vector<256x36xf32>
    %14 = arith.truncf %13 : vector<256x36xf32> to vector<256x36xbf16>
    %c0_3 = arith.constant 0 : index
    %c0_4 = arith.constant 0 : index
    %15 = vector.load %arg2[%c0_3, %c0_4] : memref<36x8xbf16, #tpu.memory_space<vmem>>, vector<36x8xbf16>
    %cst = arith.constant dense<0.000000e+00> : vector<256x8xf32>
    %16 = tpu.matmul %14, %15, %cst {dimension_numbers = #tpu.dot_dimension_numbers<[1], [0], [0], [1], [0, 0, 1, 1], [], []>} : vector<256x36xbf16>, vector<36x8xbf16>, vector<256x8xf32> -> vector<256x8xf32>
    %c0_5 = arith.constant 0 : index
    %c0_6 = arith.constant 0 : index
    %17 = vector.load %arg3[%c0_5, %c0_6] : memref<256x8xf32, #tpu.memory_space<vmem>>, vector<256x8xf32>
    tpu.vector_store %arg3[%c0_5, %c0_6], %16 {strides = array<i32>} : memref<256x8xf32, #tpu.memory_space<vmem>>, vector<256x8xf32>,
    %cst_7 = arith.constant dense<0.000000e+00> : vector<8xf32>
    %18 = vector.multi_reduction <add>, %16, %cst_7 [0] : vector<256x8xf32> to vector<8xf32>
    %19 = vector.shape_cast %18 : vector<8xf32> to vector<1x8xf32>
    %20 = arith.mulf %16, %16 : vector<256x8xf32>
    %cst_8 = arith.constant dense<0.000000e+00> : vector<8xf32>
    %21 = vector.multi_reduction <add>, %20, %cst_8 [0] : vector<256x8xf32> to vector<8xf32>
    %22 = vector.shape_cast %21 : vector<8xf32> to vector<1x8xf32>
    %23 = tpu.concatenate %19, %22 in 0 : vector<1x8xf32>, vector<1x8xf32> -> vector<2x8xf32>
    %c0_9 = arith.constant 0 : index
    %c0_10 = arith.constant 0 : index
    %c0_11 = arith.constant 0 : index
    %24 = vector.load %arg4[%c0_9, %c0_10, %c0_11] : memref<1x2x8xf32, #tpu.memory_space<vmem>>, vector<1x2x8xf32>
    %25 = vector.shape_cast %24 : vector<1x2x8xf32> to vector<2x8xf32>
    %26 = vector.shape_cast %23 : vector<2x8xf32> to vector<1x2x8xf32>
    tpu.vector_store %arg4[%c0_9, %c0_10, %c0_11], %26 {strides = array<i32>} : memref<1x2x8xf32, #tpu.memory_space<vmem>>, vector<1x2x8xf32>,
    return
  }
  func.func @transform_0(%arg0: i32) -> (i32, i32, i32, i32) {
    %c0_i32 = arith.constant 0 : i32
    %c0_i32_0 = arith.constant 0 : i32
    %c0_i32_1 = arith.constant 0 : i32
    %c0_i32_2 = arith.constant 0 : i32
    return %arg0, %c0_i32, %c0_i32_0, %c0_i32_1 : i32, i32, i32, i32
  }
  func.func @transform_1(%arg0: i32) -> (i32, i32) {
    %c0_i32 = arith.constant 0 : i32
    %c0_i32_0 = arith.constant 0 : i32
    %c0_i32_1 = arith.constant 0 : i32
    return %c0_i32, %c0_i32_0 : i32, i32
  }
  func.func @transform_2(%arg0: i32) -> (i32, i32) {
    %c0_i32 = arith.constant 0 : i32
    %c0_i32_0 = arith.constant 0 : i32
    return %arg0, %c0_i32 : i32, i32
  }
  func.func @transform_3(%arg0: i32) -> (i32, i32, i32) {
    %c0_i32 = arith.constant 0 : i32
    %c0_i32_0 = arith.constant 0 : i32
    %c0_i32_1 = arith.constant 0 : i32
    return %arg0, %c0_i32, %c0_i32_0 : i32, i32, i32
  }
}

module attributes {stable_mosaic.version = 11 : i64} {
  func.func @_bn_relu_kernel(%arg0: i32, %arg1: memref<256x8xf32, #tpu.memory_space<vmem>>, %arg2: memref<1x8xf32, #tpu.memory_space<vmem>>, %arg3: memref<1x8xf32, #tpu.memory_space<vmem>>, %arg4: memref<256x8xf32, #tpu.memory_space<vmem>>) attributes {dimension_semantics = [#tpu.dimension_semantics<parallel>], iteration_bounds = array<i64: 2>, scalar_prefetch = 0 : i64, scratch_operands = 0 : i64, tpu.core_type = #tpu.core_type<tc>, window_params = [{transform_indices = @transform_0, window_bounds = array<i64: 256, 8>}, {pipeline_mode = #tpu.pipeline_mode<synchronous>, transform_indices = @transform_1, window_bounds = array<i64: 1, 8>}, {pipeline_mode = #tpu.pipeline_mode<synchronous>, transform_indices = @transform_2, window_bounds = array<i64: 1, 8>}, {transform_indices = @transform_3, window_bounds = array<i64: 256, 8>}]} {
    %c0 = arith.constant 0 : index
    %c0_0 = arith.constant 0 : index
    %0 = vector.load %arg1[%c0, %c0_0] : memref<256x8xf32, #tpu.memory_space<vmem>>, vector<256x8xf32>
    %c0_1 = arith.constant 0 : index
    %c0_2 = arith.constant 0 : index
    %1 = vector.load %arg2[%c0_1, %c0_2] : memref<1x8xf32, #tpu.memory_space<vmem>>, vector<1x8xf32>
    %2 = vector.broadcast %1 : vector<1x8xf32> to vector<256x8xf32>
    %3 = arith.mulf %0, %2 : vector<256x8xf32>
    %c0_3 = arith.constant 0 : index
    %c0_4 = arith.constant 0 : index
    %4 = vector.load %arg3[%c0_3, %c0_4] : memref<1x8xf32, #tpu.memory_space<vmem>>, vector<1x8xf32>
    %5 = vector.broadcast %4 : vector<1x8xf32> to vector<256x8xf32>
    %6 = arith.addf %3, %5 : vector<256x8xf32>
    %cst = arith.constant 0.000000e+00 : f32
    %7 = vector.broadcast %cst : f32 to vector<256x8xf32>
    %8 = arith.maximumf %6, %7 : vector<256x8xf32>
    %c0_5 = arith.constant 0 : index
    %c0_6 = arith.constant 0 : index
    %9 = vector.load %arg4[%c0_5, %c0_6] : memref<256x8xf32, #tpu.memory_space<vmem>>, vector<256x8xf32>
    tpu.vector_store %arg4[%c0_5, %c0_6], %8 {strides = array<i32>} : memref<256x8xf32, #tpu.memory_space<vmem>>, vector<256x8xf32>,
    return
  }
  func.func @transform_0(%arg0: i32) -> (i32, i32) {
    %c0_i32 = arith.constant 0 : i32
    %c0_i32_0 = arith.constant 0 : i32
    return %arg0, %c0_i32 : i32, i32
  }
  func.func @transform_1(%arg0: i32) -> (i32, i32) {
    %c0_i32 = arith.constant 0 : i32
    %c0_i32_0 = arith.constant 0 : i32
    %c0_i32_1 = arith.constant 0 : i32
    return %c0_i32, %c0_i32_0 : i32, i32
  }
  func.func @transform_2(%arg0: i32) -> (i32, i32) {
    %c0_i32 = arith.constant 0 : i32
    %c0_i32_0 = arith.constant 0 : i32
    %c0_i32_1 = arith.constant 0 : i32
    return %c0_i32, %c0_i32_0 : i32, i32
  }
  func.func @transform_3(%arg0: i32) -> (i32, i32) {
    %c0_i32 = arith.constant 0 : i32
    %c0_i32_0 = arith.constant 0 : i32
    return %arg0, %c0_i32 : i32, i32
  }
}

module attributes {stable_mosaic.version = 11 : i64} {
  func.func @_conv3x3_stats_kernel(%arg0: i32, %arg1: memref<1x18x18x8xbf16, #tpu.memory_space<vmem>>, %arg2: memref<72x8xbf16, #tpu.memory_space<vmem>>, %arg3: memref<256x8xf32, #tpu.memory_space<vmem>>, %arg4: memref<1x2x8xf32, #tpu.memory_space<vmem>>) attributes {dimension_semantics = [#tpu.dimension_semantics<parallel>], iteration_bounds = array<i64: 2>, scalar_prefetch = 0 : i64, scratch_operands = 0 : i64, tpu.core_type = #tpu.core_type<tc>, window_params = [{transform_indices = @transform_0, window_bounds = array<i64: 1, 18, 18, 8>}, {pipeline_mode = #tpu.pipeline_mode<synchronous>, transform_indices = @transform_1, window_bounds = array<i64: 72, 8>}, {transform_indices = @transform_2, window_bounds = array<i64: 256, 8>}, {transform_indices = @transform_3, window_bounds = array<i64: 1, 2, 8>}]} {
    %c0 = arith.constant 0 : index
    %c0_0 = arith.constant 0 : index
    %c0_1 = arith.constant 0 : index
    %c0_2 = arith.constant 0 : index
    %0 = vector.load %arg1[%c0, %c0_0, %c0_1, %c0_2] : memref<1x18x18x8xbf16, #tpu.memory_space<vmem>>, vector<1x18x18x8xbf16>
    %1 = vector.shape_cast %0 : vector<1x18x18x8xbf16> to vector<18x18x8xbf16>
    %2 = arith.extf %1 : vector<18x18x8xbf16> to vector<18x18x8xf32>
    %3 = vector.extract_strided_slice %2 {offsets = [0, 0, 0], sizes = [16, 16, 8], strides = [1, 1, 1]} : vector<18x18x8xf32> to vector<16x16x8xf32>
    %4 = vector.extract_strided_slice %2 {offsets = [0, 1, 0], sizes = [16, 16, 8], strides = [1, 1, 1]} : vector<18x18x8xf32> to vector<16x16x8xf32>
    %5 = vector.extract_strided_slice %2 {offsets = [0, 2, 0], sizes = [16, 16, 8], strides = [1, 1, 1]} : vector<18x18x8xf32> to vector<16x16x8xf32>
    %6 = vector.extract_strided_slice %2 {offsets = [1, 0, 0], sizes = [16, 16, 8], strides = [1, 1, 1]} : vector<18x18x8xf32> to vector<16x16x8xf32>
    %7 = vector.extract_strided_slice %2 {offsets = [1, 1, 0], sizes = [16, 16, 8], strides = [1, 1, 1]} : vector<18x18x8xf32> to vector<16x16x8xf32>
    %8 = vector.extract_strided_slice %2 {offsets = [1, 2, 0], sizes = [16, 16, 8], strides = [1, 1, 1]} : vector<18x18x8xf32> to vector<16x16x8xf32>
    %9 = vector.extract_strided_slice %2 {offsets = [2, 0, 0], sizes = [16, 16, 8], strides = [1, 1, 1]} : vector<18x18x8xf32> to vector<16x16x8xf32>
    %10 = vector.extract_strided_slice %2 {offsets = [2, 1, 0], sizes = [16, 16, 8], strides = [1, 1, 1]} : vector<18x18x8xf32> to vector<16x16x8xf32>
    %11 = vector.extract_strided_slice %2 {offsets = [2, 2, 0], sizes = [16, 16, 8], strides = [1, 1, 1]} : vector<18x18x8xf32> to vector<16x16x8xf32>
    %12 = tpu.concatenate %3, %4, %5, %6, %7, %8, %9, %10, %11 in 2 : vector<16x16x8xf32>, vector<16x16x8xf32>, vector<16x16x8xf32>, vector<16x16x8xf32>, vector<16x16x8xf32>, vector<16x16x8xf32>, vector<16x16x8xf32>, vector<16x16x8xf32>, vector<16x16x8xf32> -> vector<16x16x72xf32>
    %13 = vector.shape_cast %12 : vector<16x16x72xf32> to vector<256x72xf32>
    %14 = arith.truncf %13 : vector<256x72xf32> to vector<256x72xbf16>
    %c0_3 = arith.constant 0 : index
    %c0_4 = arith.constant 0 : index
    %15 = vector.load %arg2[%c0_3, %c0_4] : memref<72x8xbf16, #tpu.memory_space<vmem>>, vector<72x8xbf16>
    %cst = arith.constant dense<0.000000e+00> : vector<256x8xf32>
    %16 = tpu.matmul %14, %15, %cst {dimension_numbers = #tpu.dot_dimension_numbers<[1], [0], [0], [1], [0, 0, 1, 1], [], []>} : vector<256x72xbf16>, vector<72x8xbf16>, vector<256x8xf32> -> vector<256x8xf32>
    %c0_5 = arith.constant 0 : index
    %c0_6 = arith.constant 0 : index
    %17 = vector.load %arg3[%c0_5, %c0_6] : memref<256x8xf32, #tpu.memory_space<vmem>>, vector<256x8xf32>
    tpu.vector_store %arg3[%c0_5, %c0_6], %16 {strides = array<i32>} : memref<256x8xf32, #tpu.memory_space<vmem>>, vector<256x8xf32>,
    %cst_7 = arith.constant dense<0.000000e+00> : vector<8xf32>
    %18 = vector.multi_reduction <add>, %16, %cst_7 [0] : vector<256x8xf32> to vector<8xf32>
    %19 = vector.shape_cast %18 : vector<8xf32> to vector<1x8xf32>
    %20 = arith.mulf %16, %16 : vector<256x8xf32>
    %cst_8 = arith.constant dense<0.000000e+00> : vector<8xf32>
    %21 = vector.multi_reduction <add>, %20, %cst_8 [0] : vector<256x8xf32> to vector<8xf32>
    %22 = vector.shape_cast %21 : vector<8xf32> to vector<1x8xf32>
    %23 = tpu.concatenate %19, %22 in 0 : vector<1x8xf32>, vector<1x8xf32> -> vector<2x8xf32>
    %c0_9 = arith.constant 0 : index
    %c0_10 = arith.constant 0 : index
    %c0_11 = arith.constant 0 : index
    %24 = vector.load %arg4[%c0_9, %c0_10, %c0_11] : memref<1x2x8xf32, #tpu.memory_space<vmem>>, vector<1x2x8xf32>
    %25 = vector.shape_cast %24 : vector<1x2x8xf32> to vector<2x8xf32>
    %26 = vector.shape_cast %23 : vector<2x8xf32> to vector<1x2x8xf32>
    tpu.vector_store %arg4[%c0_9, %c0_10, %c0_11], %26 {strides = array<i32>} : memref<1x2x8xf32, #tpu.memory_space<vmem>>, vector<1x2x8xf32>,
    return
  }
  func.func @transform_0(%arg0: i32) -> (i32, i32, i32, i32) {
    %c0_i32 = arith.constant 0 : i32
    %c0_i32_0 = arith.constant 0 : i32
    %c0_i32_1 = arith.constant 0 : i32
    %c0_i32_2 = arith.constant 0 : i32
    return %arg0, %c0_i32, %c0_i32_0, %c0_i32_1 : i32, i32, i32, i32
  }
  func.func @transform_1(%arg0: i32) -> (i32, i32) {
    %c0_i32 = arith.constant 0 : i32
    %c0_i32_0 = arith.constant 0 : i32
    %c0_i32_1 = arith.constant 0 : i32
    return %c0_i32, %c0_i32_0 : i32, i32
  }
  func.func @transform_2(%arg0: i32) -> (i32, i32) {
    %c0_i32 = arith.constant 0 : i32
    %c0_i32_0 = arith.constant 0 : i32
    return %arg0, %c0_i32 : i32, i32
  }
  func.func @transform_3(%arg0: i32) -> (i32, i32, i32) {
    %c0_i32 = arith.constant 0 : i32
    %c0_i32_0 = arith.constant 0 : i32
    %c0_i32_1 = arith.constant 0 : i32
    return %arg0, %c0_i32, %c0_i32_0 : i32, i32, i32
  }
}

</mosaic_0001>

<llo_original>
// kernel: double_conv.5
$region0: #{double_conv.5}
  #allocation0 [shape = 'u32[]', space=smem, size = 0x4, offset = 0x4, fixed_abs, tag = 'smem constant byte address 0x4 - core index']
  #allocation1 [shape = 'u32[144,128]{1,0:T(1,128)}', space=vmem, size = 0x12000, scoped, tag = 'internal scratch']
  %s0 = inlined_call_operand.vmem [shape: f32[512,8], index: 0, kind: input, shape index: {}]
  %s1 = inlined_call_operand.vmem [shape: f32[1,8], index: 1, kind: input, shape index: {}]
  %s2 = inlined_call_operand.vmem [shape: f32[1,8], index: 2, kind: input, shape index: {}]
  %s3 = inlined_call_operand.vmem [shape: f32[512,8], index: 3, kind: output, shape index: {}]
  %s4 = sld [smem:[#allocation0]]
  $region45: #{double_conv.5} parent=0
    _
  %s6 = ssub.s32 1, %s4
  %s7 = scalar_select 0, %s6, %s4
  loop: start=0, step=1, limit=4
  $region2: #{double_conv.5} parent=0 // loop_pre_header
    _
  $region3: #{double_conv.5} parent=0 // loop_header
    %s9 = sphi 0, %s13
    %p10 = scmp.ge.s32.totalorder %s9, 4
    %s19 = sphi 0, %s21
    %s22 = sphi 0, %s19
    %s23 = sphi 0, %s22
    %s39 = sphi 0, %s23
    %s43 = sphi 0, %s43
    %s45 = sphi 0, %s43
    %s46 = sphi 0, %s45
    %s60 = sphi 0, %s46
    %s64 = sphi 0, %s64
    %s66 = sphi 0, %s64
    %s67 = sphi 0, %s66
    %s81 = sphi 0, %s67
    %s87 = sphi 0, %s89
    %s90 = sphi 0, %s87
    %s91 = sphi 0, %s90
    %s107 = sphi 0, %s91
  $region4: #{double_conv.5} parent=0 // loop_header_branch
    %12 = sbr.rel (%p10) target = $region8
  $region5: #{double_conv.5} parent=0 // loop_body
    %s14 = ssub.s32 %s9, 1
    %s15 = ssub.s32 %s9, 2
    %s16 = sadd.s32 %s9, 1
    %s17 = ssub.s32 %s9, %s16
    %p18 = scmp.eq.s32.totalorder %s17, 0
    %s20 = sadd.s32 %s19, 1
    %s21 = scalar_select %p18, %s19, %s20
    %p24 = pneg %p18
    %p25 = scmp.eq.s32.totalorder %s9, 1
    %p26 = por %p24, %p25
    %p27 = scmp.ne.s32.totalorder %s19, %s22
    %p28 = scmp.eq.s32.totalorder %s9, 0
    %p29 = por %p27, %p28
    %p30 = scmp.ne.s32.totalorder %s19, %s22
    %p31 = scmp.eq.s32.totalorder %s14, 1
    %p32 = por %p30, %p31
    %p33 = scmp.ne.s32.totalorder %s22, %s23
    %p34 = scmp.eq.s32.totalorder %s14, 0
    %p35 = por %p33, %p34
    %p36 = scmp.ne.s32.totalorder %s22, %s23
    %p37 = scmp.eq.s32.totalorder %s15, 1
    %p38 = por %p36, %p37
    %p40 = scmp.ne.s32.totalorder %s23, %s39
    %p41 = scmp.eq.s32.totalorder %s15, 0
    %p42 = por %p40, %p41
    %s44 = sadd.s32 %s43, 1
    %p47 = scmp.eq.s32.totalorder %s9, 1
    %p48 = scmp.ne.s32.totalorder %s43, %s45
    %p49 = scmp.eq.s32.totalorder %s9, 0
    %p50 = por %p48, %p49
    %p51 = scmp.ne.s32.totalorder %s43, %s45
    %p52 = scmp.eq.s32.totalorder %s14, 1
    %p53 = por %p51, %p52
    %p54 = scmp.ne.s32.totalorder %s45, %s46
    %p55 = scmp.eq.s32.totalorder %s14, 0
    %p56 = por %p54, %p55
    %p57 = scmp.ne.s32.totalorder %s45, %s46
    %p58 = scmp.eq.s32.totalorder %s15, 1
    %p59 = por %p57, %p58
    %p61 = scmp.ne.s32.totalorder %s46, %s60
    %p62 = scmp.eq.s32.totalorder %s15, 0
    %p63 = por %p61, %p62
    %s65 = sadd.s32 %s64, 1
    %p68 = scmp.eq.s32.totalorder %s9, 1
    %p69 = scmp.ne.s32.totalorder %s64, %s66
    %p70 = scmp.eq.s32.totalorder %s9, 0
    %p71 = por %p69, %p70
    %p72 = scmp.ne.s32.totalorder %s64, %s66
    %p73 = scmp.eq.s32.totalorder %s14, 1
    %p74 = por %p72, %p73
    %p75 = scmp.ne.s32.totalorder %s66, %s67
    %p76 = scmp.eq.s32.totalorder %s14, 0
    %p77 = por %p75, %p76
    %p78 = scmp.ne.s32.totalorder %s66, %s67
    %p79 = scmp.eq.s32.totalorder %s15, 1
    %p80 = por %p78, %p79
    %p82 = scmp.ne.s32.totalorder %s67, %s81
    %p83 = scmp.eq.s32.totalorder %s15, 0
    %p84 = por %p82, %p83
    %s85 = ssub.s32 %s9, %s16
    %p86 = scmp.eq.s32.totalorder %s85, 0
    %s88 = sadd.s32 %s87, 1
    %s89 = scalar_select %p86, %s87, %s88
    %p92 = pneg %p86
    %p93 = scmp.eq.s32.totalorder %s9, 1
    %p94 = por %p92, %p93
    %p95 = scmp.ne.s32.totalorder %s87, %s90
    %p96 = scmp.eq.s32.totalorder %s9, 0
    %p97 = por %p95, %p96
    %p98 = scmp.ne.s32.totalorder %s87, %s90
    %p99 = scmp.eq.s32.totalorder %s14, 1
    %p100 = por %p98, %p99
    %p101 = scmp.ne.s32.totalorder %s90, %s91
    %p102 = scmp.eq.s32.totalorder %s14, 0
    %p103 = por %p101, %p102
    %p104 = scmp.ne.s32.totalorder %s90, %s91
    %p105 = scmp.eq.s32.totalorder %s15, 1
    %p106 = por %p104, %p105
    %p108 = scmp.ne.s32.totalorder %s91, %s107
    %p109 = scmp.eq.s32.totalorder %s15, 0
    %p110 = por %p108, %p109
    %p111 = scmp.le.s32.totalorder 1, %s9
    %p112 = scmp.lt.s32.totalorder %s9, 3
    %p113 = pnand %p111, %p112
    %p114 = pneg %p113
    // Predicated region
    $region9: #{double_conv.5} parent=5 // pred_check
      _
    $region10: #{double_conv.5} parent=5 // pred_check_branch
      %116 = sbr.rel (%p113) target = $region12
    $region11: #{double_conv.5} parent=5 // pred_region
      %s117 = ssub.s32 %s9, 1
      // Predicated region
      $region13: #{double_conv.5} parent=11 // pred_check
        %p118 = pneg %p56
      $region14: #{double_conv.5} parent=11 // pred_check_branch
        %120 = sbr.rel (%p118) target = $region16
      $region15: #{double_conv.5} parent=11 // pred_region
        _
      $region16: #{double_conv.5} parent=11 // pred_fallthru
        _
      // Predicated region
      $region17: #{double_conv.5} parent=11 // pred_check
        %p121 = pneg %p77
      $region18: #{double_conv.5} parent=11 // pred_check_branch
        %123 = sbr.rel (%p121) target = $region20
      $region19: #{double_conv.5} parent=11 // pred_region
        _
      $region20: #{double_conv.5} parent=11 // pred_fallthru
        _
    $region12: #{double_conv.5} parent=5 // pred_fallthru
      _
    %p124 = scmp.lt.s32.totalorder %s9, 2
    // Predicated region
    $region21: #{double_conv.5} parent=5 // pred_check
      %p125 = pneg %p124
    $region22: #{double_conv.5} parent=5 // pred_check_branch
      %127 = sbr.rel (%p125) target = $region24
    $region23: #{double_conv.5} parent=5 // pred_region
      // Predicated region
      $region25: #{double_conv.5} parent=23 // pred_check
        %p128 = pneg %p29
      $region26: #{double_conv.5} parent=23 // pred_check_branch
        %130 = sbr.rel (%p128) target = $region28
      $region27: #{double_conv.5} parent=23 // pred_region
        %s131 = smul.u32 32, %s9
        %p132 = scmp.lt.s32.totalorder %s131, 63
        %s133 = scalar_select %p132, %s131, 63
        %s134 = smul.addr %s133, 8
        %s135 = scalar_lea.vmem %s0, %s134
        %s136 = smul.u32 32, %s9
      $region28: #{double_conv.5} parent=23 // pred_fallthru
        _
    $region24: #{double_conv.5} parent=5 // pred_fallthru
      _
    %p137 = scmp.le.s32.totalorder 1, %s9
    %p138 = scmp.lt.s32.totalorder %s9, 3
    %p139 = pnand %p137, %p138
    %p140 = pneg %p139
    // Predicated region
    $region29: #{double_conv.5} parent=5 // pred_check
      _
    $region30: #{double_conv.5} parent=5 // pred_check_branch
      %142 = sbr.rel (%p139) target = $region32
    $region31: #{double_conv.5} parent=5 // pred_region
      %s143 = ssub.s32 %s9, 1
      %s144 = smul.u32 32, %s14
      %p145 = scmp.lt.s32.totalorder %s144, 63
      %s146 = scalar_select %p145, %s144, 63
      %s147 = smul.addr %s146, 8
      %s148 = scalar_lea.vmem %s0, %s147
      %p149 = pneg %p35
      %p150 = pneg %p32
      %p151 = pneg %p56
      %p152 = pneg %p53
      %p153 = pneg %p77
      %p154 = pneg %p74
      %p155 = pneg %p103
      %p156 = pneg %p100
      %s157 = smul.u32 32, %s14
      %p158 = scmp.lt.s32.totalorder %s157, 63
      %s159 = scalar_select %p158, %s157, 63
      %s160 = smul.addr %s159, 8
      %s161 = scalar_lea.vmem %s3, %s160
      %s162 = smul.u32 32, %s14
      %p163 = scmp.lt.s32.totalorder %s162, 63
      %s164 = scalar_select %p163, %s162, 63
      %s165 = smul.addr %s164, 8
      %s166 = scalar_lea.vmem %s0, %s165
      %s167 = smul.u32 32, %s14
      %s168 = smul.u32 32, %s14
      %p169 = scmp.lt.s32.totalorder %s168, 63
      %s170 = scalar_select %p169, %s168, 63
      %s171 = smul.addr %s170, 8
      %s172 = scalar_lea.vmem %s3, %s171
      %s173 = smul.u32 32, %s14
      %v174 = vld [vmem:[%s166] sm:$0xff]
      %v175 = vld [vmem:[%s166 + $0x8] sm:$0xff]
      %v176 = vld [vmem:[%s166 + $0x10] sm:$0xff]
      %v177 = vld [vmem:[%s166 + $0x18] sm:$0xff]
      %v178 = vld [vmem:[%s166 + $0x20] sm:$0xff]
      %v179 = vld [vmem:[%s166 + $0x28] sm:$0xff]
      %v180 = vld [vmem:[%s166 + $0x30] sm:$0xff]
      %v181 = vld [vmem:[%s166 + $0x38] sm:$0xff]
      %v182 = vld [vmem:[%s166 + $0x40] sm:$0xff]
      %v183 = vld [vmem:[%s166 + $0x48] sm:$0xff]
      %v184 = vld [vmem:[%s166 + $0x50] sm:$0xff]
      %v185 = vld [vmem:[%s166 + $0x58] sm:$0xff]
      %v186 = vld [vmem:[%s166 + $0x60] sm:$0xff]
      %v187 = vld [vmem:[%s166 + $0x68] sm:$0xff]
      %v188 = vld [vmem:[%s166 + $0x70] sm:$0xff]
      %v189 = vld [vmem:[%s166 + $0x78] sm:$0xff]
      %v190 = vld [vmem:[%s166 + $0x80] sm:$0xff]
      %v191 = vld [vmem:[%s166 + $0x88] sm:$0xff]
      %v192 = vld [vmem:[%s166 + $0x90] sm:$0xff]
      %v193 = vld [vmem:[%s166 + $0x98] sm:$0xff]
      %v194 = vld [vmem:[%s166 + $0xa0] sm:$0xff]
      %v195 = vld [vmem:[%s166 + $0xa8] sm:$0xff]
      %v196 = vld [vmem:[%s166 + $0xb0] sm:$0xff]
      %v197 = vld [vmem:[%s166 + $0xb8] sm:$0xff]
      %v198 = vld [vmem:[%s166 + $0xc0] sm:$0xff]
      %v199 = vld [vmem:[%s166 + $0xc8] sm:$0xff]
      %v200 = vld [vmem:[%s166 + $0xd0] sm:$0xff]
      %v201 = vld [vmem:[%s166 + $0xd8] sm:$0xff]
      %v202 = vld [vmem:[%s166 + $0xe0] sm:$0xff]
      %v203 = vld [vmem:[%s166 + $0xe8] sm:$0xff]
      %v204 = vld [vmem:[%s166 + $0xf0] sm:$0xff]
      %v205 = vld [vmem:[%s166 + $0xf8] sm:$0xff]
      %v206 = vld [vmem:[%s1] sm:$0x1]
      %v208 = vlaneseq
      %v209 = vshrl.u32 %v208, 7
      %v210 = vsub.s32 0, %v209
      %v211 = vrot.slane %v206, %v210
      %v213 = vmul.f32 %v174, %v211
      %v214 = vmul.f32 %v175, %v211
      %v215 = vmul.f32 %v176, %v211
      %v216 = vmul.f32 %v177, %v211
      %v217 = vmul.f32 %v178, %v211
      %v218 = vmul.f32 %v179, %v211
      %v219 = vmul.f32 %v180, %v211
      %v220 = vmul.f32 %v181, %v211
      %v221 = vmul.f32 %v182, %v211
      %v222 = vmul.f32 %v183, %v211
      %v223 = vmul.f32 %v184, %v211
      %v224 = vmul.f32 %v185, %v211
      %v225 = vmul.f32 %v186, %v211
      %v226 = vmul.f32 %v187, %v211
      %v227 = vmul.f32 %v188, %v211
      %v228 = vmul.f32 %v189, %v211
      %v229 = vmul.f32 %v190, %v211
      %v230 = vmul.f32 %v191, %v211
      %v231 = vmul.f32 %v192, %v211
      %v232 = vmul.f32 %v193, %v211
      %v233 = vmul.f32 %v194, %v211
      %v234 = vmul.f32 %v195, %v211
      %v235 = vmul.f32 %v196, %v211
      %v236 = vmul.f32 %v197, %v211
      %v237 = vmul.f32 %v198, %v211
      %v238 = vmul.f32 %v199, %v211
      %v239 = vmul.f32 %v200, %v211
      %v240 = vmul.f32 %v201, %v211
      %v241 = vmul.f32 %v202, %v211
      %v242 = vmul.f32 %v203, %v211
      %v243 = vmul.f32 %v204, %v211
      %v244 = vmul.f32 %v205, %v211
      %v245 = vld [vmem:[%s2] sm:$0x1]
      %v247 = vlaneseq
      %v248 = vshrl.u32 %v247, 7
      %v249 = vsub.s32 0, %v248
      %v250 = vrot.slane %v245, %v249
      %v252 = vadd.f32 %v213, %v250
      %v253 = vadd.f32 %v214, %v250
      %v254 = vadd.f32 %v215, %v250
      %v255 = vadd.f32 %v216, %v250
      %v256 = vadd.f32 %v217, %v250
      %v257 = vadd.f32 %v218, %v250
      %v258 = vadd.f32 %v219, %v250
      %v259 = vadd.f32 %v220, %v250
      %v260 = vadd.f32 %v221, %v250
      %v261 = vadd.f32 %v222, %v250
      %v262 = vadd.f32 %v223, %v250
      %v263 = vadd.f32 %v224, %v250
      %v264 = vadd.f32 %v225, %v250
      %v265 = vadd.f32 %v226, %v250
      %v266 = vadd.f32 %v227, %v250
      %v267 = vadd.f32 %v228, %v250
      %v268 = vadd.f32 %v229, %v250
      %v269 = vadd.f32 %v230, %v250
      %v270 = vadd.f32 %v231, %v250
      %v271 = vadd.f32 %v232, %v250
      %v272 = vadd.f32 %v233, %v250
      %v273 = vadd.f32 %v234, %v250
      %v274 = vadd.f32 %v235, %v250
      %v275 = vadd.f32 %v236, %v250
      %v276 = vadd.f32 %v237, %v250
      %v277 = vadd.f32 %v238, %v250
      %v278 = vadd.f32 %v239, %v250
      %v279 = vadd.f32 %v240, %v250
      %v280 = vadd.f32 %v241, %v250
      %v281 = vadd.f32 %v242, %v250
      %v282 = vadd.f32 %v243, %v250
      %v283 = vadd.f32 %v244, %v250
      %v284 = vmax.f32 %v252, 0.0
      %v285 = vmax.f32 %v253, 0.0
      %v286 = vmax.f32 %v254, 0.0
      %v287 = vmax.f32 %v255, 0.0
      %v288 = vmax.f32 %v256, 0.0
      %v289 = vmax.f32 %v257, 0.0
      %v290 = vmax.f32 %v258, 0.0
      %v291 = vmax.f32 %v259, 0.0
      %v292 = vmax.f32 %v260, 0.0
      %v293 = vmax.f32 %v261, 0.0
      %v294 = vmax.f32 %v262, 0.0
      %v295 = vmax.f32 %v263, 0.0
      %v296 = vmax.f32 %v264, 0.0
      %v297 = vmax.f32 %v265, 0.0
      %v298 = vmax.f32 %v266, 0.0
      %v299 = vmax.f32 %v267, 0.0
      %v300 = vmax.f32 %v268, 0.0
      %v301 = vmax.f32 %v269, 0.0
      %v302 = vmax.f32 %v270, 0.0
      %v303 = vmax.f32 %v271, 0.0
      %v304 = vmax.f32 %v272, 0.0
      %v305 = vmax.f32 %v273, 0.0
      %v306 = vmax.f32 %v274, 0.0
      %v307 = vmax.f32 %v275, 0.0
      %v308 = vmax.f32 %v276, 0.0
      %v309 = vmax.f32 %v277, 0.0
      %v310 = vmax.f32 %v278, 0.0
      %v311 = vmax.f32 %v279, 0.0
      %v312 = vmax.f32 %v280, 0.0
      %v313 = vmax.f32 %v281, 0.0
      %v314 = vmax.f32 %v282, 0.0
      %v315 = vmax.f32 %v283, 0.0
      %vm316 = vcmask 64512
      %317 = vst.msk [vmem:[%s172] sm:$0xff] %vm316, %v284
      %318 = vst.msk [vmem:[%s172 + $0x8] sm:$0xff] %vm316, %v285
      %319 = vst.msk [vmem:[%s172 + $0x10] sm:$0xff] %vm316, %v286
      %320 = vst.msk [vmem:[%s172 + $0x18] sm:$0xff] %vm316, %v287
      %321 = vst.msk [vmem:[%s172 + $0x20] sm:$0xff] %vm316, %v288
      %322 = vst.msk [vmem:[%s172 + $0x28] sm:$0xff] %vm316, %v289
      %323 = vst.msk [vmem:[%s172 + $0x30] sm:$0xff] %vm316, %v290
      %324 = vst.msk [vmem:[%s172 + $0x38] sm:$0xff] %vm316, %v291
      %325 = vst.msk [vmem:[%s172 + $0x40] sm:$0xff] %vm316, %v292
      %326 = vst.msk [vmem:[%s172 + $0x48] sm:$0xff] %vm316, %v293
      %327 = vst.msk [vmem:[%s172 + $0x50] sm:$0xff] %vm316, %v294
      %328 = vst.msk [vmem:[%s172 + $0x58] sm:$0xff] %vm316, %v295
      %329 = vst.msk [vmem:[%s172 + $0x60] sm:$0xff] %vm316, %v296
      %330 = vst.msk [vmem:[%s172 + $0x68] sm:$0xff] %vm316, %v297
      %331 = vst.msk [vmem:[%s172 + $0x70] sm:$0xff] %vm316, %v298
      %332 = vst.msk [vmem:[%s172 + $0x78] sm:$0xff] %vm316, %v299
      %333 = vst.msk [vmem:[%s172 + $0x80] sm:$0xff] %vm316, %v300
      %334 = vst.msk [vmem:[%s172 + $0x88] sm:$0xff] %vm316, %v301
      %335 = vst.msk [vmem:[%s172 + $0x90] sm:$0xff] %vm316, %v302
      %336 = vst.msk [vmem:[%s172 + $0x98] sm:$0xff] %vm316, %v303
      %337 = vst.msk [vmem:[%s172 + $0xa0] sm:$0xff] %vm316, %v304
      %338 = vst.msk [vmem:[%s172 + $0xa8] sm:$0xff] %vm316, %v305
      %339 = vst.msk [vmem:[%s172 + $0xb0] sm:$0xff] %vm316, %v306
      %340 = vst.msk [vmem:[%s172 + $0xb8] sm:$0xff] %vm316, %v307
      %341 = vst.msk [vmem:[%s172 + $0xc0] sm:$0xff] %vm316, %v308
      %342 = vst.msk [vmem:[%s172 + $0xc8] sm:$0xff] %vm316, %v309
      %343 = vst.msk [vmem:[%s172 + $0xd0] sm:$0xff] %vm316, %v310
      %344 = vst.msk [vmem:[%s172 + $0xd8] sm:$0xff] %vm316, %v311
      %345 = vst.msk [vmem:[%s172 + $0xe0] sm:$0xff] %vm316, %v312
      %346 = vst.msk [vmem:[%s172 + $0xe8] sm:$0xff] %vm316, %v313
      %347 = vst.msk [vmem:[%s172 + $0xf0] sm:$0xff] %vm316, %v314
      %348 = vst.msk [vmem:[%s172 + $0xf8] sm:$0xff] %vm316, %v315
      %s349 = smul.u32 32, %s14
      %p350 = scmp.lt.s32.totalorder %s349, 63
      %s351 = scalar_select %p350, %s349, 63
      %s352 = smul.addr %s351, 8
      %s353 = scalar_lea.vmem %s3, %s352
      // Predicated region
      $region33: #{double_conv.5} parent=31 // pred_check
        %p354 = pneg %p100
      $region34: #{double_conv.5} parent=31 // pred_check_branch
        %356 = sbr.rel (%p354) target = $region36
      $region35: #{double_conv.5} parent=31 // pred_region
        %s357 = smul.u32 32, %s14
      $region36: #{double_conv.5} parent=31 // pred_fallthru
        _
    $region32: #{double_conv.5} parent=5 // pred_fallthru
      _
    %p358 = scmp.le.s32.totalorder 2, %s9
    // Predicated region
    $region37: #{double_conv.5} parent=5 // pred_check
      %p359 = pneg %p358
    $region38: #{double_conv.5} parent=5 // pred_check_branch
      %361 = sbr.rel (%p359) target = $region40
    $region39: #{double_conv.5} parent=5 // pred_region
      %s362 = ssub.s32 %s9, 2
      // Predicated region
      $region41: #{double_conv.5} parent=39 // pred_check
        %p363 = pneg %p106
      $region42: #{double_conv.5} parent=39 // pred_check_branch
        %365 = sbr.rel (%p363) target = $region44
      $region43: #{double_conv.5} parent=39 // pred_region
        %s366 = smul.u32 32, %s15
        %p367 = scmp.lt.s32.totalorder %s366, 63
        %s368 = scalar_select %p367, %s366, 63
        %s369 = smul.addr %s368, 8
        %s370 = scalar_lea.vmem %s3, %s369
      $region44: #{double_conv.5} parent=39 // pred_fallthru
        _
    $region40: #{double_conv.5} parent=5 // pred_fallthru
      _
  $region6: #{double_conv.5} parent=0 // loop_footer
    %s13 = sadd.s32 1, %s9
  $region7: #{double_conv.5} parent=0 // loop_footer_branch
    %8 = sbr.rel target = $region3
  $region8: #{double_conv.5} parent=0 // loop_exit
    _

// kernel: double_conv.4
$region0: #{double_conv.4}
  #allocation0 [shape = 'u32[]', space=smem, size = 0x4, offset = 0x4, fixed_abs, tag = 'smem constant byte address 0x4 - core index']
  #allocation1 [shape = 'u32[144,128]{1,0:T(1,128)}', space=vmem, size = 0x12000, scoped, tag = 'internal scratch']
  %s0 = inlined_call_operand.vmem [shape: bf16[2,18,18,4], index: 0, kind: input, shape index: {}]
  %s1 = inlined_call_operand.vmem [shape: bf16[36,8], index: 1, kind: input, shape index: {}]
  %s2 = inlined_call_operand.vmem [shape: f32[512,8], index: 2, kind: output, shape index: {0}]
  %s3 = inlined_call_operand.vmem [shape: f32[2,2,8], index: 3, kind: output, shape index: {1}]
  %4 = xla_tuple %s2, %s3
  %s5 = sld [smem:[#allocation0]]
  $region49: #{double_conv.4} parent=0
    _
  %s7 = ssub.s32 1, %s5
  %s8 = scalar_select 0, %s7, %s5
  loop: start=0, step=1, limit=4
  $region2: #{double_conv.4} parent=0 // loop_pre_header
    _
  $region3: #{double_conv.4} parent=0 // loop_header
    %s10 = sphi 0, %s14
    %p11 = scmp.ge.s32.totalorder %s10, 4
    %s20 = sphi 0, %s22
    %s23 = sphi 0, %s20
    %s24 = sphi 0, %s23
    %s40 = sphi 0, %s24
    %s44 = sphi 0, %s44
    %s46 = sphi 0, %s44
    %s47 = sphi 0, %s46
    %s61 = sphi 0, %s47
    %s67 = sphi 0, %s69
    %s70 = sphi 0, %s67
    %s71 = sphi 0, %s70
    %s87 = sphi 0, %s71
    %s93 = sphi 0, %s95
    %s96 = sphi 0, %s93
    %s97 = sphi 0, %s96
    %s113 = sphi 0, %s97
  $region4: #{double_conv.4} parent=0 // loop_header_branch
    %13 = sbr.rel (%p11) target = $region8
  $region5: #{double_conv.4} parent=0 // loop_body
    %s15 = ssub.s32 %s10, 1
    %s16 = ssub.s32 %s10, 2
    %s17 = sadd.s32 %s10, 1
    %s18 = ssub.s32 %s10, %s17
    %p19 = scmp.eq.s32.totalorder %s18, 0
    %s21 = sadd.s32 %s20, 1
    %s22 = scalar_select %p19, %s20, %s21
    %p25 = pneg %p19
    %p26 = scmp.eq.s32.totalorder %s10, 1
    %p27 = por %p25, %p26
    %p28 = scmp.ne.s32.totalorder %s20, %s23
    %p29 = scmp.eq.s32.totalorder %s10, 0
    %p30 = por %p28, %p29
    %p31 = scmp.ne.s32.totalorder %s20, %s23
    %p32 = scmp.eq.s32.totalorder %s15, 1
    %p33 = por %p31, %p32
    %p34 = scmp.ne.s32.totalorder %s23, %s24
    %p35 = scmp.eq.s32.totalorder %s15, 0
    %p36 = por %p34, %p35
    %p37 = scmp.ne.s32.totalorder %s23, %s24
    %p38 = scmp.eq.s32.totalorder %s16, 1
    %p39 = por %p37, %p38
    %p41 = scmp.ne.s32.totalorder %s24, %s40
    %p42 = scmp.eq.s32.totalorder %s16, 0
    %p43 = por %p41, %p42
    %s45 = sadd.s32 %s44, 1
    %p48 = scmp.eq.s32.totalorder %s10, 1
    %p49 = scmp.ne.s32.totalorder %s44, %s46
    %p50 = scmp.eq.s32.totalorder %s10, 0
    %p51 = por %p49, %p50
    %p52 = scmp.ne.s32.totalorder %s44, %s46
    %p53 = scmp.eq.s32.totalorder %s15, 1
    %p54 = por %p52, %p53
    %p55 = scmp.ne.s32.totalorder %s46, %s47
    %p56 = scmp.eq.s32.totalorder %s15, 0
    %p57 = por %p55, %p56
    %p58 = scmp.ne.s32.totalorder %s46, %s47
    %p59 = scmp.eq.s32.totalorder %s16, 1
    %p60 = por %p58, %p59
    %p62 = scmp.ne.s32.totalorder %s47, %s61
    %p63 = scmp.eq.s32.totalorder %s16, 0
    %p64 = por %p62, %p63
    %s65 = ssub.s32 %s10, %s17
    %p66 = scmp.eq.s32.totalorder %s65, 0
    %s68 = sadd.s32 %s67, 1
    %s69 = scalar_select %p66, %s67, %s68
    %p72 = pneg %p66
    %p73 = scmp.eq.s32.totalorder %s10, 1
    %p74 = por %p72, %p73
    %p75 = scmp.ne.s32.totalorder %s67, %s70
    %p76 = scmp.eq.s32.totalorder %s10, 0
    %p77 = por %p75, %p76
    %p78 = scmp.ne.s32.totalorder %s67, %s70
    %p79 = scmp.eq.s32.totalorder %s15, 1
    %p80 = por %p78, %p79
    %p81 = scmp.ne.s32.totalorder %s70, %s71
    %p82 = scmp.eq.s32.totalorder %s15, 0
    %p83 = por %p81, %p82
    %p84 = scmp.ne.s32.totalorder %s70, %s71
    %p85 = scmp.eq.s32.totalorder %s16, 1
    %p86 = por %p84, %p85
    %p88 = scmp.ne.s32.totalorder %s71, %s87
    %p89 = scmp.eq.s32.totalorder %s16, 0
    %p90 = por %p88, %p89
    %s91 = ssub.s32 %s10, %s17
    %p92 = scmp.eq.s32.totalorder %s91, 0
    %s94 = sadd.s32 %s93, 1
    %s95 = scalar_select %p92, %s93, %s94
    %p98 = pneg %p92
    %p99 = scmp.eq.s32.totalorder %s10, 1
    %p100 = por %p98, %p99
    %p101 = scmp.ne.s32.totalorder %s93, %s96
    %p102 = scmp.eq.s32.totalorder %s10, 0
    %p103 = por %p101, %p102
    %p104 = scmp.ne.s32.totalorder %s93, %s96
    %p105 = scmp.eq.s32.totalorder %s15, 1
    %p106 = por %p104, %p105
    %p107 = scmp.ne.s32.totalorder %s96, %s97
    %p108 = scmp.eq.s32.totalorder %s15, 0
    %p109 = por %p107, %p108
    %p110 = scmp.ne.s32.totalorder %s96, %s97
    %p111 = scmp.eq.s32.totalorder %s16, 1
    %p112 = por %p110, %p111
    %p114 = scmp.ne.s32.totalorder %s97, %s113
    %p115 = scmp.eq.s32.totalorder %s16, 0
    %p116 = por %p114, %p115
    %p117 = scmp.le.s32.totalorder 1, %s10
    %p118 = scmp.lt.s32.totalorder %s10, 3
    %p119 = pnand %p117, %p118
    %p120 = pneg %p119
    // Predicated region
    $region9: #{double_conv.4} parent=5 // pred_check
      _
    $region10: #{double_conv.4} parent=5 // pred_check_branch
      %122 = sbr.rel (%p119) target = $region12
    $region11: #{double_conv.4} parent=5 // pred_region
      %s123 = ssub.s32 %s10, 1
      // Predicated region
      $region13: #{double_conv.4} parent=11 // pred_check
        %p124 = pneg %p57
      $region14: #{double_conv.4} parent=11 // pred_check_branch
        %126 = sbr.rel (%p124) target = $region16
      $region15: #{double_conv.4} parent=11 // pred_region
        _
      $region16: #{double_conv.4} parent=11 // pred_fallthru
        _
    $region12: #{double_conv.4} parent=5 // pred_fallthru
      _
    %p127 = scmp.lt.s32.totalorder %s10, 2
    // Predicated region
    $region17: #{double_conv.4} parent=5 // pred_check
      %p128 = pneg %p127
    $region18: #{double_conv.4} parent=5 // pred_check_branch
      %130 = sbr.rel (%p128) target = $region20
    $region19: #{double_conv.4} parent=5 // pred_region
      // Predicated region
      $region21: #{double_conv.4} parent=19 // pred_check
        %p131 = pneg %p30
      $region22: #{double_conv.4} parent=19 // pred_check_branch
        %133 = sbr.rel (%p131) target = $region24
      $region23: #{double_conv.4} parent=19 // pred_region
        %p134 = scmp.lt.s32.totalorder %s10, 1
        %s135 = scalar_select %p134, %s10, 1
        %s136 = smul.addr %s135, 54
        %s137 = smul.addr %s136, 4
        %s138 = scalar_lea.vmem %s0, %s137
      $region24: #{double_conv.4} parent=19 // pred_fallthru
        _
    $region20: #{double_conv.4} parent=5 // pred_fallthru
      _
    %p139 = scmp.le.s32.totalorder 1, %s10
    %p140 = scmp.lt.s32.totalorder %s10, 3
    %p141 = pnand %p139, %p140
    %p142 = pneg %p141
    // Predicated region
    $region25: #{double_conv.4} parent=5 // pred_check
      _
    $region26: #{double_conv.4} parent=5 // pred_check_branch
      %144 = sbr.rel (%p141) target = $region28
    $region27: #{double_conv.4} parent=5 // pred_region
      %s145 = ssub.s32 %s10, 1
      %p146 = scmp.lt.s32.totalorder %s15, 1
      %s147 = scalar_select %p146, %s15, 1
      %s148 = smul.addr %s147, 54
      %s149 = smul.addr %s148, 4
      %s150 = scalar_lea.vmem %s0, %s149
      %p151 = pneg %p36
      %p152 = pneg %p33
      %p153 = pneg %p57
      %p154 = pneg %p54
      %p155 = pneg %p83
      %p156 = pneg %p80
      %s157 = smul.u32 32, %s15
      %p158 = scmp.lt.s32.totalorder %s157, 63
      %s159 = scalar_select %p158, %s157, 63
      %s160 = smul.addr %s159, 8
      %s161 = scalar_lea.vmem %s2, %s160
      %p162 = pneg %p109
      %p163 = pneg %p106
      %p164 = scmp.lt.s32.totalorder %s15, 1
      %s165 = scalar_select %p164, %s15, 1
      %s166 = smul.addr %s165, 2
      %s167 = scalar_lea.vmem %s3, %s166
      %p168 = scmp.lt.s32.totalorder %s15, 1
      %s169 = scalar_select %p168, %s15, 1
      %s170 = smul.addr %s169, 54
      %s171 = smul.addr %s170, 4
      %s172 = scalar_lea.vmem %s0, %s171
      %s173 = smul.u32 32, %s15
      %p174 = scmp.lt.s32.totalorder %s173, 63
      %s175 = scalar_select %p174, %s173, 63
      %s176 = smul.addr %s175, 8
      %s177 = scalar_lea.vmem %s2, %s176
      %s178 = smul.u32 32, %s15
      %p179 = scmp.lt.s32.totalorder %s15, 1
      %s180 = scalar_select %p179, %s15, 1
      %s181 = smul.addr %s180, 2
      %s182 = scalar_lea.vmem %s3, %s181
      %v184 = vld [vmem:[%s172] sm:$0xf]
      %v185 = vld [vmem:[%s172 + $0x4] sm:$0xf]
      %v186 = vld [vmem:[%s172 + $0x8] sm:$0x1]
      %v187 = vld [vmem:[%s172 + $0xc] sm:$0xf]
      %v188 = vld [vmem:[%s172 + $0x10] sm:$0xf]
      %v189 = vld [vmem:[%s172 + $0x14] sm:$0x1]
      %v190 = vld [vmem:[%s172 + $0x18] sm:$0xf]
      %v191 = vld [vmem:[%s172 + $0x1c] sm:$0xf]
      %v192 = vld [vmem:[%s172 + $0x20] sm:$0x1]
      %v193 = vld [vmem:[%s172 + $0x24] sm:$0xf]
      %v194 = vld [vmem:[%s172 + $0x28] sm:$0xf]
      %v195 = vld [vmem:[%s172 + $0x2c] sm:$0x1]
      %v196 = vld [vmem:[%s172 + $0x30] sm:$0xf]
      %v197 = vld [vmem:[%s172 + $0x34] sm:$0xf]
      %v198 = vld [vmem:[%s172 + $0x38] sm:$0x1]
      %v199 = vld [vmem:[%s172 + $0x3c] sm:$0xf]
      %v200 = vld [vmem:[%s172 + $0x40] sm:$0xf]
      %v201 = vld [vmem:[%s172 + $0x44] sm:$0x1]
      %v202 = vld [vmem:[%s172 + $0x48] sm:$0xf]
      %v203 = vld [vmem:[%s172 + $0x4c] sm:$0xf]
      %v204 = vld [vmem:[%s172 + $0x50] sm:$0x1]
      %v205 = vld [vmem:[%s172 + $0x54] sm:$0xf]
      %v206 = vld [vmem:[%s172 + $0x58] sm:$0xf]
      %v207 = vld [vmem:[%s172 + $0x5c] sm:$0x1]
      %v208 = vld [vmem:[%s172 + $0x60] sm:$0xf]
      %v209 = vld [vmem:[%s172 + $0x64] sm:$0xf]
      %v210 = vld [vmem:[%s172 + $0x68] sm:$0x1]
      %v211 = vld [vmem:[%s172 + $0x6c] sm:$0xf]
      %v212 = vld [vmem:[%s172 + $0x70] sm:$0xf]
      %v213 = vld [vmem:[%s172 + $0x74] sm:$0x1]
      %v214 = vld [vmem:[%s172 + $0x78] sm:$0xf]
      %v215 = vld [vmem:[%s172 + $0x7c] sm:$0xf]
      %v216 = vld [vmem:[%s172 + $0x80] sm:$0x1]
      %v217 = vld [vmem:[%s172 + $0x84] sm:$0xf]
      %v218 = vld [vmem:[%s172 + $0x88] sm:$0xf]
      %v219 = vld [vmem:[%s172 + $0x8c] sm:$0x1]
      %v220 = vld [vmem:[%s172 + $0x90] sm:$0xf]
      %v221 = vld [vmem:[%s172 + $0x94] sm:$0xf]
      %v222 = vld [vmem:[%s172 + $0x98] sm:$0x1]
      %v223 = vld [vmem:[%s172 + $0x9c] sm:$0xf]
      %v224 = vld [vmem:[%s172 + $0xa0] sm:$0xf]
      %v225 = vld [vmem:[%s172 + $0xa4] sm:$0x1]
      %v226 = vld [vmem:[%s172 + $0xa8] sm:$0xf]
      %v227 = vld [vmem:[%s172 + $0xac] sm:$0xf]
      %v228 = vld [vmem:[%s172 + $0xb0] sm:$0x1]
      %v229 = vld [vmem:[%s172 + $0xb4] sm:$0xf]
      %v230 = vld [vmem:[%s172 + $0xb8] sm:$0xf]
      %v231 = vld [vmem:[%s172 + $0xbc] sm:$0x1]
      %v232 = vld [vmem:[%s172 + $0xc0] sm:$0xf]
      %v233 = vld [vmem:[%s172 + $0xc4] sm:$0xf]
      %v234 = vld [vmem:[%s172 + $0xc8] sm:$0x1]
      %v235 = vld [vmem:[%s172 + $0xcc] sm:$0xf]
      %v236 = vld [vmem:[%s172 + $0xd0] sm:$0xf]
      %v237 = vld [vmem:[%s172 + $0xd4] sm:$0x1]
      %v238 = vunpack.c.l.bf16 %v184
      %v239 = vunpack.c.l.bf16 %v185
      %v240 = vunpack.c.l.bf16 %v186
      %v241 = vunpack.c.l.bf16 %v187
      %v242 = vunpack.c.l.bf16 %v188
      %v243 = vunpack.c.l.bf16 %v189
      %v244 = vunpack.c.l.bf16 %v190
      %v245 = vunpack.c.l.bf16 %v191
      %v246 = vunpack.c.l.bf16 %v192
      %v247 = vunpack.c.l.bf16 %v193
      %v248 = vunpack.c.l.bf16 %v194
      %v249 = vunpack.c.l.bf16 %v195
      %v250 = vunpack.c.l.bf16 %v196
      %v251 = vunpack.c.l.bf16 %v197
      %v252 = vunpack.c.l.bf16 %v198
      %v253 = vunpack.c.l.bf16 %v199
      %v254 = vunpack.c.l.bf16 %v200
      %v255 = vunpack.c.l.bf16 %v201
      %v256 = vunpack.c.l.bf16 %v202
      %v257 = vunpack.c.l.bf16 %v203
      %v258 = vunpack.c.l.bf16 %v204
      %v259 = vunpack.c.l.bf16 %v205
      %v260 = vunpack.c.l.bf16 %v206
      %v261 = vunpack.c.l.bf16 %v207
      %v262 = vunpack.c.l.bf16 %v208
      %v263 = vunpack.c.l.bf16 %v209
      %v264 = vunpack.c.l.bf16 %v210
      %v265 = vunpack.c.l.bf16 %v211
      %v266 = vunpack.c.l.bf16 %v212
      %v267 = vunpack.c.l.bf16 %v213
      %v268 = vunpack.c.l.bf16 %v214
      %v269 = vunpack.c.l.bf16 %v215
      %v270 = vunpack.c.l.bf16 %v216
      %v271 = vunpack.c.l.bf16 %v217
      %v272 = vunpack.c.l.bf16 %v218
      %v273 = vunpack.c.l.bf16 %v219
      %v274 = vunpack.c.l.bf16 %v220
      %v275 = vunpack.c.l.bf16 %v221
      %v276 = vunpack.c.l.bf16 %v222
      %v277 = vunpack.c.l.bf16 %v223
      %v278 = vunpack.c.l.bf16 %v224
      %v279 = vunpack.c.l.bf16 %v225
      %v280 = vunpack.c.l.bf16 %v226
      %v281 = vunpack.c.l.bf16 %v227
      %v282 = vunpack.c.l.bf16 %v228
      %v283 = vunpack.c.l.bf16 %v229
      %v284 = vunpack.c.l.bf16 %v230
      %v285 = vunpack.c.l.bf16 %v231
      %v286 = vunpack.c.l.bf16 %v232
      %v287 = vunpack.c.l.bf16 %v233
      %v288 = vunpack.c.l.bf16 %v234
      %v289 = vunpack.c.l.bf16 %v235
      %v290 = vunpack.c.l.bf16 %v236
      %v291 = vunpack.c.l.bf16 %v237
      %vm340 = vcmask 1046528
      %v341 = vrot.slane %v238, 1
      %v342 = vrot.slane %v239, 1
      %v343 = vsel %vm340, %v341, %v342
      %v344 = vrot.slane %v240, 1
      %v345 = vsel %vm340, %v342, %v344
      %v346 = vrot.slane %v241, 1
      %v347 = vrot.slane %v242, 1
      %v348 = vsel %vm340, %v346, %v347
      %v349 = vrot.slane %v243, 1
      %v350 = vsel %vm340, %v347, %v349
      %v351 = vrot.slane %v244, 1
      %v352 = vrot.slane %v245, 1
      %v353 = vsel %vm340, %v351, %v352
      %v354 = vrot.slane %v246, 1
      %v355 = vsel %vm340, %v352, %v354
      %v356 = vrot.slane %v247, 1
      %v357 = vrot.slane %v248, 1
      %v358 = vsel %vm340, %v356, %v357
      %v359 = vrot.slane %v249, 1
      %v360 = vsel %vm340, %v357, %v359
      %v361 = vrot.slane %v250, 1
      %v362 = vrot.slane %v251, 1
      %v363 = vsel %vm340, %v361, %v362
      %v364 = vrot.slane %v252, 1
      %v365 = vsel %vm340, %v362, %v364
      %v366 = vrot.slane %v253, 1
      %v367 = vrot.slane %v254, 1
      %v368 = vsel %vm340, %v366, %v367
      %v369 = vrot.slane %v255, 1
      %v370 = vsel %vm340, %v367, %v369
      %v371 = vrot.slane %v256, 1
      %v372 = vrot.slane %v257, 1
      %v373 = vsel %vm340, %v371, %v372
      %v374 = vrot.slane %v258, 1
      %v375 = vsel %vm340, %v372, %v374
      %v376 = vrot.slane %v259, 1
      %v377 = vrot.slane %v260, 1
      %v378 = vsel %vm340, %v376, %v377
      %v379 = vrot.slane %v261, 1
      %v380 = vsel %vm340, %v377, %v379
      %v381 = vrot.slane %v262, 1
      %v382 = vrot.slane %v263, 1
      %v383 = vsel %vm340, %v381, %v382
      %v384 = vrot.slane %v264, 1
      %v385 = vsel %vm340, %v382, %v384
      %v386 = vrot.slane %v265, 1
      %v387 = vrot.slane %v266, 1
      %v388 = vsel %vm340, %v386, %v387
      %v389 = vrot.slane %v267, 1
      %v390 = vsel %vm340, %v387, %v389
      %v391 = vrot.slane %v268, 1
      %v392 = vrot.slane %v269, 1
      %v393 = vsel %vm340, %v391, %v392
      %v394 = vrot.slane %v270, 1
      %v395 = vsel %vm340, %v392, %v394
      %v396 = vrot.slane %v271, 1
      %v397 = vrot.slane %v272, 1
      %v398 = vsel %vm340, %v396, %v397
      %v399 = vrot.slane %v273, 1
      %v400 = vsel %vm340, %v397, %v399
      %v401 = vrot.slane %v274, 1
      %v402 = vrot.slane %v275, 1
      %v403 = vsel %vm340, %v401, %v402
      %v404 = vrot.slane %v276, 1
      %v405 = vsel %vm340, %v402, %v404
      %v406 = vrot.slane %v277, 1
      %v407 = vrot.slane %v278, 1
      %v408 = vsel %vm340, %v406, %v407
      %v409 = vrot.slane %v279, 1
      %v410 = vsel %vm340, %v407, %v409
      %v411 = vrot.slane %v280, 1
      %v412 = vrot.slane %v281, 1
      %v413 = vsel %vm340, %v411, %v412
      %v414 = vrot.slane %v282, 1
      %v415 = vsel %vm340, %v412, %v414
      %v416 = vrot.slane %v283, 1
      %v417 = vrot.slane %v284, 1
      %v418 = vsel %vm340, %v416, %v417
      %v419 = vrot.slane %v285, 1
      %v420 = vsel %vm340, %v417, %v419
      %421 = vrot.lane.b32.xlu0 %v343, 4
      %v422 = vpop.permute.xlu0 %421
      %423 = vrot.lane.b32.xlu0 %v345, 4
      %v424 = vpop.permute.xlu0 %423
      %425 = vrot.lane.b32.xlu0 %v348, 4
      %v426 = vpop.permute.xlu0 %425
      %427 = vrot.lane.b32.xlu0 %v350, 4
      %v428 = vpop.permute.xlu0 %427
      %429 = vrot.lane.b32.xlu0 %v353, 4
      %v430 = vpop.permute.xlu0 %429
      %431 = vrot.lane.b32.xlu0 %v355, 4
      %v432 = vpop.permute.xlu0 %431
      %433 = vrot.lane.b32.xlu0 %v358, 4
      %v434 = vpop.permute.xlu0 %433
      %435 = vrot.lane.b32.xlu0 %v360, 4
      %v436 = vpop.permute.xlu0 %435
      %437 = vrot.lane.b32.xlu0 %v363, 4
      %v438 = vpop.permute.xlu0 %437
      %439 = vrot.lane.b32.xlu0 %v365, 4
      %v440 = vpop.permute.xlu0 %439
      %441 = vrot.lane.b32.xlu0 %v368, 4
      %v442 = vpop.permute.xlu0 %441
      %443 = vrot.lane.b32.xlu0 %v370, 4
      %v444 = vpop.permute.xlu0 %443
      %445 = vrot.lane.b32.xlu0 %v373, 4
      %v446 = vpop.permute.xlu0 %445
      %447 = vrot.lane.b32.xlu0 %v375, 4
      %v448 = vpop.permute.xlu0 %447
      %449 = vrot.lane.b32.xlu0 %v378, 4
      %v450 = vpop.permute.xlu0 %449
      %451 = vrot.lane.b32.xlu0 %v380, 4
      %v452 = vpop.permute.xlu0 %451
      %453 = vrot.lane.b32.xlu0 %v383, 4
      %v454 = vpop.permute.xlu0 %453
      %455 = vrot.lane.b32.xlu0 %v385, 4
      %v456 = vpop.permute.xlu0 %455
      %457 = vrot.lane.b32.xlu0 %v388, 4
      %v458 = vpop.permute.xlu0 %457
      %459 = vrot.lane.b32.xlu0 %v390, 4
      %v460 = vpop.permute.xlu0 %459
      %461 = vrot.lane.b32.xlu0 %v393, 4
      %v462 = vpop.permute.xlu0 %461
      %463 = vrot.lane.b32.xlu0 %v395, 4
      %v464 = vpop.permute.xlu0 %463
      %465 = vrot.lane.b32.xlu0 %v398, 4
      %v466 = vpop.permute.xlu0 %465
      %467 = vrot.lane.b32.xlu0 %v400, 4
      %v468 = vpop.permute.xlu0 %467
      %469 = vrot.lane.b32.xlu0 %v403, 4
      %v470 = vpop.permute.xlu0 %469
      %471 = vrot.lane.b32.xlu0 %v405, 4
      %v472 = vpop.permute.xlu0 %471
      %473 = vrot.lane.b32.xlu0 %v408, 4
      %v474 = vpop.permute.xlu0 %473
      %475 = vrot.lane.b32.xlu0 %v410, 4
      %v476 = vpop.permute.xlu0 %475
      %477 = vrot.lane.b32.xlu0 %v413, 4
      %v478 = vpop.permute.xlu0 %477
      %479 = vrot.lane.b32.xlu0 %v415, 4
      %v480 = vpop.permute.xlu0 %479
      %481 = vrot.lane.b32.xlu0 %v418, 4
      %v482 = vpop.permute.xlu0 %481
      %483 = vrot.lane.b32.xlu0 %v420, 4
      %v484 = vpop.permute.xlu0 %483
      %vm517 = vcmask 1045504
      %v518 = vrot.slane %v238, 2
      %v519 = vrot.slane %v239, 2
      %v520 = vsel %vm517, %v518, %v519
      %v521 = vrot.slane %v240, 2
      %v522 = vsel %vm517, %v519, %v521
      %v523 = vrot.slane %v241, 2
      %v524 = vrot.slane %v242, 2
      %v525 = vsel %vm517, %v523, %v524
      %v526 = vrot.slane %v243, 2
      %v527 = vsel %vm517, %v524, %v526
      %v528 = vrot.slane %v244, 2
      %v529 = vrot.slane %v245, 2
      %v530 = vsel %vm517, %v528, %v529
      %v531 = vrot.slane %v246, 2
      %v532 = vsel %vm517, %v529, %v531
      %v533 = vrot.slane %v247, 2
      %v534 = vrot.slane %v248, 2
      %v535 = vsel %vm517, %v533, %v534
      %v536 = vrot.slane %v249, 2
      %v537 = vsel %vm517, %v534, %v536
      %v538 = vrot.slane %v250, 2
      %v539 = vrot.slane %v251, 2
      %v540 = vsel %vm517, %v538, %v539
      %v541 = vrot.slane %v252, 2
      %v542 = vsel %vm517, %v539, %v541
      %v543 = vrot.slane %v253, 2
      %v544 = vrot.slane %v254, 2
      %v545 = vsel %vm517, %v543, %v544
      %v546 = vrot.slane %v255, 2
      %v547 = vsel %vm517, %v544, %v546
      %v548 = vrot.slane %v256, 2
      %v549 = vrot.slane %v257, 2
      %v550 = vsel %vm517, %v548, %v549
      %v551 = vrot.slane %v258, 2
      %v552 = vsel %vm517, %v549, %v551
      %v553 = vrot.slane %v259, 2
      %v554 = vrot.slane %v260, 2
      %v555 = vsel %vm517, %v553, %v554
      %v556 = vrot.slane %v261, 2
      %v557 = vsel %vm517, %v554, %v556
      %v558 = vrot.slane %v262, 2
      %v559 = vrot.slane %v263, 2
      %v560 = vsel %vm517, %v558, %v559
      %v561 = vrot.slane %v264, 2
      %v562 = vsel %vm517, %v559, %v561
      %v563 = vrot.slane %v265, 2
      %v564 = vrot.slane %v266, 2
      %v565 = vsel %vm517, %v563, %v564
      %v566 = vrot.slane %v267, 2
      %v567 = vsel %vm517, %v564, %v566
      %v568 = vrot.slane %v268, 2
      %v569 = vrot.slane %v269, 2
      %v570 = vsel %vm517, %v568, %v569
      %v571 = vrot.slane %v270, 2
      %v572 = vsel %vm517, %v569, %v571
      %v573 = vrot.slane %v271, 2
      %v574 = vrot.slane %v272, 2
      %v575 = vsel %vm517, %v573, %v574
      %v576 = vrot.slane %v273, 2
      %v577 = vsel %vm517, %v574, %v576
      %v578 = vrot.slane %v274, 2
      %v579 = vrot.slane %v275, 2
      %v580 = vsel %vm517, %v578, %v579
      %v581 = vrot.slane %v276, 2
      %v582 = vsel %vm517, %v579, %v581
      %v583 = vrot.slane %v277, 2
      %v584 = vrot.slane %v278, 2
      %v585 = vsel %vm517, %v583, %v584
      %v586 = vrot.slane %v279, 2
      %v587 = vsel %vm517, %v584, %v586
      %v588 = vrot.slane %v280, 2
      %v589 = vrot.slane %v281, 2
      %v590 = vsel %vm517, %v588, %v589
      %v591 = vrot.slane %v282, 2
      %v592 = vsel %vm517, %v589, %v591
      %v593 = vrot.slane %v283, 2
      %v594 = vrot.slane %v284, 2
      %v595 = vsel %vm517, %v593, %v594
      %v596 = vrot.slane %v285, 2
      %v597 = vsel %vm517, %v594, %v596
      %598 = vrot.lane.b32.xlu0 %v520, 8
      %v599 = vpop.permute.xlu0 %598
      %600 = vrot.lane.b32.xlu0 %v522, 8
      %v601 = vpop.permute.xlu0 %600
      %602 = vrot.lane.b32.xlu0 %v525, 8
      %v603 = vpop.permute.xlu0 %602
      %604 = vrot.lane.b32.xlu0 %v527, 8
      %v605 = vpop.permute.xlu0 %604
      %606 = vrot.lane.b32.xlu0 %v530, 8
      %v607 = vpop.permute.xlu0 %606
      %608 = vrot.lane.b32.xlu0 %v532, 8
      %v609 = vpop.permute.xlu0 %608
      %610 = vrot.lane.b32.xlu0 %v535, 8
      %v611 = vpop.permute.xlu0 %610
      %612 = vrot.lane.b32.xlu0 %v537, 8
      %v613 = vpop.permute.xlu0 %612
      %614 = vrot.lane.b32.xlu0 %v540, 8
      %v615 = vpop.permute.xlu0 %614
      %616 = vrot.lane.b32.xlu0 %v542, 8
      %v617 = vpop.permute.xlu0 %616
      %618 = vrot.lane.b32.xlu0 %v545, 8
      %v619 = vpop.permute.xlu0 %618
      %620 = vrot.lane.b32.xlu0 %v547, 8
      %v621 = vpop.permute.xlu0 %620
      %622 = vrot.lane.b32.xlu0 %v550, 8
      %v623 = vpop.permute.xlu0 %622
      %624 = vrot.lane.b32.xlu0 %v552, 8
      %v625 = vpop.permute.xlu0 %624
      %626 = vrot.lane.b32.xlu0 %v555, 8
      %v627 = vpop.permute.xlu0 %626
      %628 = vrot.lane.b32.xlu0 %v557, 8
      %v629 = vpop.permute.xlu0 %628
      %630 = vrot.lane.b32.xlu0 %v560, 8
      %v631 = vpop.permute.xlu0 %630
      %632 = vrot.lane.b32.xlu0 %v562, 8
      %v633 = vpop.permute.xlu0 %632
      %634 = vrot.lane.b32.xlu0 %v565, 8
      %v635 = vpop.permute.xlu0 %634
      %636 = vrot.lane.b32.xlu0 %v567, 8
      %v637 = vpop.permute.xlu0 %636
      %638 = vrot.lane.b32.xlu0 %v570, 8
      %v639 = vpop.permute.xlu0 %638
      %640 = vrot.lane.b32.xlu0 %v572, 8
      %v641 = vpop.permute.xlu0 %640
      %642 = vrot.lane.b32.xlu0 %v575, 8
      %v643 = vpop.permute.xlu0 %642
      %644 = vrot.lane.b32.xlu0 %v577, 8
      %v645 = vpop.permute.xlu0 %644
      %646 = vrot.lane.b32.xlu0 %v580, 8
      %v647 = vpop.permute.xlu0 %646
      %648 = vrot.lane.b32.xlu0 %v582, 8
      %v649 = vpop.permute.xlu0 %648
      %650 = vrot.lane.b32.xlu0 %v585, 8
      %v651 = vpop.permute.xlu0 %650
      %652 = vrot.lane.b32.xlu0 %v587, 8
      %v653 = vpop.permute.xlu0 %652
      %654 = vrot.lane.b32.xlu0 %v590, 8
      %v655 = vpop.permute.xlu0 %654
      %656 = vrot.lane.b32.xlu0 %v592, 8
      %v657 = vpop.permute.xlu0 %656
      %658 = vrot.lane.b32.xlu0 %v595, 8
      %v659 = vpop.permute.xlu0 %658
      %660 = vrot.lane.b32.xlu0 %v597, 8
      %v661 = vpop.permute.xlu0 %660
      %696 = vrot.lane.b32.xlu0 %v241, 12
      %v697 = vpop.permute.xlu0 %696
      %698 = vrot.lane.b32.xlu0 %v242, 12
      %v699 = vpop.permute.xlu0 %698
      %700 = vrot.lane.b32.xlu0 %v244, 12
      %v701 = vpop.permute.xlu0 %700
      %702 = vrot.lane.b32.xlu0 %v245, 12
      %v703 = vpop.permute.xlu0 %702
      %704 = vrot.lane.b32.xlu0 %v247, 12
      %v705 = vpop.permute.xlu0 %704
      %706 = vrot.lane.b32.xlu0 %v248, 12
      %v707 = vpop.permute.xlu0 %706
      %708 = vrot.lane.b32.xlu0 %v250, 12
      %v709 = vpop.permute.xlu0 %708
      %710 = vrot.lane.b32.xlu0 %v251, 12
      %v711 = vpop.permute.xlu0 %710
      %712 = vrot.lane.b32.xlu0 %v253, 12
      %v713 = vpop.permute.xlu0 %712
      %714 = vrot.lane.b32.xlu0 %v254, 12
      %v715 = vpop.permute.xlu0 %714
      %716 = vrot.lane.b32.xlu0 %v256, 12
      %v717 = vpop.permute.xlu0 %716
      %718 = vrot.lane.b32.xlu0 %v257, 12
      %v719 = vpop.permute.xlu0 %718
      %720 = vrot.lane.b32.xlu0 %v259, 12
      %v721 = vpop.permute.xlu0 %720
      %722 = vrot.lane.b32.xlu0 %v260, 12
      %v723 = vpop.permute.xlu0 %722
      %724 = vrot.lane.b32.xlu0 %v262, 12
      %v725 = vpop.permute.xlu0 %724
      %726 = vrot.lane.b32.xlu0 %v263, 12
      %v727 = vpop.permute.xlu0 %726
      %728 = vrot.lane.b32.xlu0 %v265, 12
      %v729 = vpop.permute.xlu0 %728
      %730 = vrot.lane.b32.xlu0 %v266, 12
      %v731 = vpop.permute.xlu0 %730
      %732 = vrot.lane.b32.xlu0 %v268, 12
      %v733 = vpop.permute.xlu0 %732
      %734 = vrot.lane.b32.xlu0 %v269, 12
      %v735 = vpop.permute.xlu0 %734
      %736 = vrot.lane.b32.xlu0 %v271, 12
      %v737 = vpop.permute.xlu0 %736
      %738 = vrot.lane.b32.xlu0 %v272, 12
      %v739 = vpop.permute.xlu0 %738
      %740 = vrot.lane.b32.xlu0 %v274, 12
      %v741 = vpop.permute.xlu0 %740
      %742 = vrot.lane.b32.xlu0 %v275, 12
      %v743 = vpop.permute.xlu0 %742
      %744 = vrot.lane.b32.xlu0 %v277, 12
      %v745 = vpop.permute.xlu0 %744
      %746 = vrot.lane.b32.xlu0 %v278, 12
      %v747 = vpop.permute.xlu0 %746
      %748 = vrot.lane.b32.xlu0 %v280, 12
      %v749 = vpop.permute.xlu0 %748
      %750 = vrot.lane.b32.xlu0 %v281, 12
      %v751 = vpop.permute.xlu0 %750
      %752 = vrot.lane.b32.xlu0 %v283, 12
      %v753 = vpop.permute.xlu0 %752
      %754 = vrot.lane.b32.xlu0 %v284, 12
      %v755 = vpop.permute.xlu0 %754
      %756 = vrot.lane.b32.xlu0 %v286, 12
      %v757 = vpop.permute.xlu0 %756
      %758 = vrot.lane.b32.xlu0 %v287, 12
      %v759 = vpop.permute.xlu0 %758
      %v793 = vrot.slane %v286, 1
      %v794 = vrot.slane %v287, 1
      %v795 = vsel %vm340, %v793, %v794
      %v796 = vrot.slane %v288, 1
      %v797 = vsel %vm340, %v794, %v796
      %798 = vrot.lane.b32.xlu0 %v348, 16
      %v799 = vpop.permute.xlu0 %798
      %800 = vrot.lane.b32.xlu0 %v350, 16
      %v801 = vpop.permute.xlu0 %800
      %802 = vrot.lane.b32.xlu0 %v353, 16
      %v803 = vpop.permute.xlu0 %802
      %804 = vrot.lane.b32.xlu0 %v355, 16
      %v805 = vpop.permute.xlu0 %804
      %806 = vrot.lane.b32.xlu0 %v358, 16
      %v807 = vpop.permute.xlu0 %806
      %808 = vrot.lane.b32.xlu0 %v360, 16
      %v809 = vpop.permute.xlu0 %808
      %810 = vrot.lane.b32.xlu0 %v363, 16
      %v811 = vpop.permute.xlu0 %810
      %812 = vrot.lane.b32.xlu0 %v365, 16
      %v813 = vpop.permute.xlu0 %812
      %814 = vrot.lane.b32.xlu0 %v368, 16
      %v815 = vpop.permute.xlu0 %814
      %816 = vrot.lane.b32.xlu0 %v370, 16
      %v817 = vpop.permute.xlu0 %816
      %818 = vrot.lane.b32.xlu0 %v373, 16
      %v819 = vpop.permute.xlu0 %818
      %820 = vrot.lane.b32.xlu0 %v375, 16
      %v821 = vpop.permute.xlu0 %820
      %822 = vrot.lane.b32.xlu0 %v378, 16
      %v823 = vpop.permute.xlu0 %822
      %824 = vrot.lane.b32.xlu0 %v380, 16
      %v825 = vpop.permute.xlu0 %824
      %826 = vrot.lane.b32.xlu0 %v383, 16
      %v827 = vpop.permute.xlu0 %826
      %828 = vrot.lane.b32.xlu0 %v385, 16
      %v829 = vpop.permute.xlu0 %828
      %830 = vrot.lane.b32.xlu0 %v388, 16
      %v831 = vpop.permute.xlu0 %830
      %832 = vrot.lane.b32.xlu0 %v390, 16
      %v833 = vpop.permute.xlu0 %832
      %834 = vrot.lane.b32.xlu0 %v393, 16
      %v835 = vpop.permute.xlu0 %834
      %836 = vrot.lane.b32.xlu0 %v395, 16
      %v837 = vpop.permute.xlu0 %836
      %838 = vrot.lane.b32.xlu0 %v398, 16
      %v839 = vpop.permute.xlu0 %838
      %840 = vrot.lane.b32.xlu0 %v400, 16
      %v841 = vpop.permute.xlu0 %840
      %842 = vrot.lane.b32.xlu0 %v403, 16
      %v843 = vpop.permute.xlu0 %842
      %844 = vrot.lane.b32.xlu0 %v405, 16
      %v845 = vpop.permute.xlu0 %844
      %846 = vrot.lane.b32.xlu0 %v408, 16
      %v847 = vpop.permute.xlu0 %846
      %848 = vrot.lane.b32.xlu0 %v410, 16
      %v849 = vpop.permute.xlu0 %848
      %850 = vrot.lane.b32.xlu0 %v413, 16
      %v851 = vpop.permute.xlu0 %850
      %852 = vrot.lane.b32.xlu0 %v415, 16
      %v853 = vpop.permute.xlu0 %852
      %854 = vrot.lane.b32.xlu0 %v418, 16
      %v855 = vpop.permute.xlu0 %854
      %856 = vrot.lane.b32.xlu0 %v420, 16
      %v857 = vpop.permute.xlu0 %856
      %858 = vrot.lane.b32.xlu0 %v795, 16
      %v859 = vpop.permute.xlu0 %858
      %860 = vrot.lane.b32.xlu0 %v797, 16
      %v861 = vpop.permute.xlu0 %860
      %v894 = vrot.slane %v286, 2
      %v895 = vrot.slane %v287, 2
      %v896 = vsel %vm517, %v894, %v895
      %v897 = vrot.slane %v288, 2
      %v898 = vsel %vm517, %v895, %v897
      %899 = vrot.lane.b32.xlu0 %v525, 20
      %v900 = vpop.permute.xlu0 %899
      %901 = vrot.lane.b32.xlu0 %v527, 20
      %v902 = vpop.permute.xlu0 %901
      %903 = vrot.lane.b32.xlu0 %v530, 20
      %v904 = vpop.permute.xlu0 %903
      %905 = vrot.lane.b32.xlu0 %v532, 20
      %v906 = vpop.permute.xlu0 %905
      %907 = vrot.lane.b32.xlu0 %v535, 20
      %v908 = vpop.permute.xlu0 %907
      %909 = vrot.lane.b32.xlu0 %v537, 20
      %v910 = vpop.permute.xlu0 %909
      %911 = vrot.lane.b32.xlu0 %v540, 20
      %v912 = vpop.permute.xlu0 %911
      %913 = vrot.lane.b32.xlu0 %v542, 20
      %v914 = vpop.permute.xlu0 %913
      %915 = vrot.lane.b32.xlu0 %v545, 20
      %v916 = vpop.permute.xlu0 %915
      %917 = vrot.lane.b32.xlu0 %v547, 20
      %v918 = vpop.permute.xlu0 %917
      %919 = vrot.lane.b32.xlu0 %v550, 20
      %v920 = vpop.permute.xlu0 %919
      %921 = vrot.lane.b32.xlu0 %v552, 20
      %v922 = vpop.permute.xlu0 %921
      %923 = vrot.lane.b32.xlu0 %v555, 20
      %v924 = vpop.permute.xlu0 %923
      %925 = vrot.lane.b32.xlu0 %v557, 20
      %v926 = vpop.permute.xlu0 %925
      %927 = vrot.lane.b32.xlu0 %v560, 20
      %v928 = vpop.permute.xlu0 %927
      %929 = vrot.lane.b32.xlu0 %v562, 20
      %v930 = vpop.permute.xlu0 %929
      %931 = vrot.lane.b32.xlu0 %v565, 20
      %v932 = vpop.permute.xlu0 %931
      %933 = vrot.lane.b32.xlu0 %v567, 20
      %v934 = vpop.permute.xlu0 %933
      %935 = vrot.lane.b32.xlu0 %v570, 20
      %v936 = vpop.permute.xlu0 %935
      %937 = vrot.lane.b32.xlu0 %v572, 20
      %v938 = vpop.permute.xlu0 %937
      %939 = vrot.lane.b32.xlu0 %v575, 20
      %v940 = vpop.permute.xlu0 %939
      %941 = vrot.lane.b32.xlu0 %v577, 20
      %v942 = vpop.permute.xlu0 %941
      %943 = vrot.lane.b32.xlu0 %v580, 20
      %v944 = vpop.permute.xlu0 %943
      %945 = vrot.lane.b32.xlu0 %v582, 20
      %v946 = vpop.permute.xlu0 %945
      %947 = vrot.lane.b32.xlu0 %v585, 20
      %v948 = vpop.permute.xlu0 %947
      %949 = vrot.lane.b32.xlu0 %v587, 20
      %v950 = vpop.permute.xlu0 %949
      %951 = vrot.lane.b32.xlu0 %v590, 20
      %v952 = vpop.permute.xlu0 %951
      %953 = vrot.lane.b32.xlu0 %v592, 20
      %v954 = vpop.permute.xlu0 %953
      %955 = vrot.lane.b32.xlu0 %v595, 20
      %v956 = vpop.permute.xlu0 %955
      %957 = vrot.lane.b32.xlu0 %v597, 20
      %v958 = vpop.permute.xlu0 %957
      %959 = vrot.lane.b32.xlu0 %v896, 20
      %v960 = vpop.permute.xlu0 %959
      %961 = vrot.lane.b32.xlu0 %v898, 20
      %v962 = vpop.permute.xlu0 %961
      %997 = vrot.lane.b32.xlu0 %v244, 24
      %v998 = vpop.permute.xlu0 %997
      %999 = vrot.lane.b32.xlu0 %v245, 24
      %v1000 = vpop.permute.xlu0 %999
      %1001 = vrot.lane.b32.xlu0 %v247, 24
      %v1002 = vpop.permute.xlu0 %1001
      %1003 = vrot.lane.b32.xlu0 %v248, 24
      %v1004 = vpop.permute.xlu0 %1003
      %1005 = vrot.lane.b32.xlu0 %v250, 24
      %v1006 = vpop.permute.xlu0 %1005
      %1007 = vrot.lane.b32.xlu0 %v251, 24
      %v1008 = vpop.permute.xlu0 %1007
      %1009 = vrot.lane.b32.xlu0 %v253, 24
      %v1010 = vpop.permute.xlu0 %1009
      %1011 = vrot.lane.b32.xlu0 %v254, 24
      %v1012 = vpop.permute.xlu0 %1011
      %1013 = vrot.lane.b32.xlu0 %v256, 24
      %v1014 = vpop.permute.xlu0 %1013
      %1015 = vrot.lane.b32.xlu0 %v257, 24
      %v1016 = vpop.permute.xlu0 %1015
      %1017 = vrot.lane.b32.xlu0 %v259, 24
      %v1018 = vpop.permute.xlu0 %1017
      %1019 = vrot.lane.b32.xlu0 %v260, 24
      %v1020 = vpop.permute.xlu0 %1019
      %1021 = vrot.lane.b32.xlu0 %v262, 24
      %v1022 = vpop.permute.xlu0 %1021
      %1023 = vrot.lane.b32.xlu0 %v263, 24
      %v1024 = vpop.permute.xlu0 %1023
      %1025 = vrot.lane.b32.xlu0 %v265, 24
      %v1026 = vpop.permute.xlu0 %1025
      %1027 = vrot.lane.b32.xlu0 %v266, 24
      %v1028 = vpop.permute.xlu0 %1027
      %1029 = vrot.lane.b32.xlu0 %v268, 24
      %v1030 = vpop.permute.xlu0 %1029
      %1031 = vrot.lane.b32.xlu0 %v269, 24
      %v1032 = vpop.permute.xlu0 %1031
      %1033 = vrot.lane.b32.xlu0 %v271, 24
      %v1034 = vpop.permute.xlu0 %1033
      %1035 = vrot.lane.b32.xlu0 %v272, 24
      %v1036 = vpop.permute.xlu0 %1035
      %1037 = vrot.lane.b32.xlu0 %v274, 24
      %v1038 = vpop.permute.xlu0 %1037
      %1039 = vrot.lane.b32.xlu0 %v275, 24
      %v1040 = vpop.permute.xlu0 %1039
      %1041 = vrot.lane.b32.xlu0 %v277, 24
      %v1042 = vpop.permute.xlu0 %1041
      %1043 = vrot.lane.b32.xlu0 %v278, 24
      %v1044 = vpop.permute.xlu0 %1043
      %1045 = vrot.lane.b32.xlu0 %v280, 24
      %v1046 = vpop.permute.xlu0 %1045
      %1047 = vrot.lane.b32.xlu0 %v281, 24
      %v1048 = vpop.permute.xlu0 %1047
      %1049 = vrot.lane.b32.xlu0 %v283, 24
      %v1050 = vpop.permute.xlu0 %1049
      %1051 = vrot.lane.b32.xlu0 %v284, 24
      %v1052 = vpop.permute.xlu0 %1051
      %1053 = vrot.lane.b32.xlu0 %v286, 24
      %v1054 = vpop.permute.xlu0 %1053
      %1055 = vrot.lane.b32.xlu0 %v287, 24
      %v1056 = vpop.permute.xlu0 %1055
      %1057 = vrot.lane.b32.xlu0 %v289, 24
      %v1058 = vpop.permute.xlu0 %1057
      %1059 = vrot.lane.b32.xlu0 %v290, 24
      %v1060 = vpop.permute.xlu0 %1059
      %v1094 = vrot.slane %v289, 1
      %v1095 = vrot.slane %v290, 1
      %v1096 = vsel %vm340, %v1094, %v1095
      %v1097 = vrot.slane %v291, 1
      %v1098 = vsel %vm340, %v1095, %v1097
      %1099 = vrot.lane.b32.xlu0 %v353, 28
      %v1100 = vpop.permute.xlu0 %1099
      %1101 = vrot.lane.b32.xlu0 %v355, 28
      %v1102 = vpop.permute.xlu0 %1101
      %1103 = vrot.lane.b32.xlu0 %v358, 28
      %v1104 = vpop.permute.xlu0 %1103
      %1105 = vrot.lane.b32.xlu0 %v360, 28
      %v1106 = vpop.permute.xlu0 %1105
      %1107 = vrot.lane.b32.xlu0 %v363, 28
      %v1108 = vpop.permute.xlu0 %1107
      %1109 = vrot.lane.b32.xlu0 %v365, 28
      %v1110 = vpop.permute.xlu0 %1109
      %1111 = vrot.lane.b32.xlu0 %v368, 28
      %v1112 = vpop.permute.xlu0 %1111
      %1113 = vrot.lane.b32.xlu0 %v370, 28
      %v1114 = vpop.permute.xlu0 %1113
      %1115 = vrot.lane.b32.xlu0 %v373, 28
      %v1116 = vpop.permute.xlu0 %1115
      %1117 = vrot.lane.b32.xlu0 %v375, 28
      %v1118 = vpop.permute.xlu0 %1117
      %1119 = vrot.lane.b32.xlu0 %v378, 28
      %v1120 = vpop.permute.xlu0 %1119
      %1121 = vrot.lane.b32.xlu0 %v380, 28
      %v1122 = vpop.permute.xlu0 %1121
      %1123 = vrot.lane.b32.xlu0 %v383, 28
      %v1124 = vpop.permute.xlu0 %1123
      %1125 = vrot.lane.b32.xlu0 %v385, 28
      %v1126 = vpop.permute.xlu0 %1125
      %1127 = vrot.lane.b32.xlu0 %v388, 28
      %v1128 = vpop.permute.xlu0 %1127
      %1129 = vrot.lane.b32.xlu0 %v390, 28
      %v1130 = vpop.permute.xlu0 %1129
      %1131 = vrot.lane.b32.xlu0 %v393, 28
      %v1132 = vpop.permute.xlu0 %1131
      %1133 = vrot.lane.b32.xlu0 %v395, 28
      %v1134 = vpop.permute.xlu0 %1133
      %1135 = vrot.lane.b32.xlu0 %v398, 28
      %v1136 = vpop.permute.xlu0 %1135
      %1137 = vrot.lane.b32.xlu0 %v400, 28
      %v1138 = vpop.permute.xlu0 %1137
      %1139 = vrot.lane.b32.xlu0 %v403, 28
      %v1140 = vpop.permute.xlu0 %1139
      %1141 = vrot.lane.b32.xlu0 %v405, 28
      %v1142 = vpop.permute.xlu0 %1141
      %1143 = vrot.lane.b32.xlu0 %v408, 28
      %v1144 = vpop.permute.xlu0 %1143
      %1145 = vrot.lane.b32.xlu0 %v410, 28
      %v1146 = vpop.permute.xlu0 %1145
      %1147 = vrot.lane.b32.xlu0 %v413, 28
      %v1148 = vpop.permute.xlu0 %1147
      %1149 = vrot.lane.b32.xlu0 %v415, 28
      %v1150 = vpop.permute.xlu0 %1149
      %1151 = vrot.lane.b32.xlu0 %v418, 28
      %v1152 = vpop.permute.xlu0 %1151
      %1153 = vrot.lane.b32.xlu0 %v420, 28
      %v1154 = vpop.permute.xlu0 %1153
      %1155 = vrot.lane.b32.xlu0 %v795, 28
      %v1156 = vpop.permute.xlu0 %1155
      %1157 = vrot.lane.b32.xlu0 %v797, 28
      %v1158 = vpop.permute.xlu0 %1157
      %1159 = vrot.lane.b32.xlu0 %v1096, 28
      %v1160 = vpop.permute.xlu0 %1159
      %1161 = vrot.lane.b32.xlu0 %v1098, 28
      %v1162 = vpop.permute.xlu0 %1161
      %v1195 = vrot.slane %v289, 2
      %v1196 = vrot.slane %v290, 2
      %v1197 = vsel %vm517, %v1195, %v1196
      %v1198 = vrot.slane %v291, 2
      %v1199 = vsel %vm517, %v1196, %v1198
      %1200 = vrot.lane.b32.xlu0 %v530, 32
      %v1201 = vpop.permute.xlu0 %1200
      %1202 = vrot.lane.b32.xlu0 %v532, 32
      %v1203 = vpop.permute.xlu0 %1202
      %1204 = vrot.lane.b32.xlu0 %v535, 32
      %v1205 = vpop.permute.xlu0 %1204
      %1206 = vrot.lane.b32.xlu0 %v537, 32
      %v1207 = vpop.permute.xlu0 %1206
      %1208 = vrot.lane.b32.xlu0 %v540, 32
      %v1209 = vpop.permute.xlu0 %1208
      %1210 = vrot.lane.b32.xlu0 %v542, 32
      %v1211 = vpop.permute.xlu0 %1210
      %1212 = vrot.lane.b32.xlu0 %v545, 32
      %v1213 = vpop.permute.xlu0 %1212
      %1214 = vrot.lane.b32.xlu0 %v547, 32
      %v1215 = vpop.permute.xlu0 %1214
      %1216 = vrot.lane.b32.xlu0 %v550, 32
      %v1217 = vpop.permute.xlu0 %1216
      %1218 = vrot.lane.b32.xlu0 %v552, 32
      %v1219 = vpop.permute.xlu0 %1218
      %1220 = vrot.lane.b32.xlu0 %v555, 32
      %v1221 = vpop.permute.xlu0 %1220
      %1222 = vrot.lane.b32.xlu0 %v557, 32
      %v1223 = vpop.permute.xlu0 %1222
      %1224 = vrot.lane.b32.xlu0 %v560, 32
      %v1225 = vpop.permute.xlu0 %1224
      %1226 = vrot.lane.b32.xlu0 %v562, 32
      %v1227 = vpop.permute.xlu0 %1226
      %1228 = vrot.lane.b32.xlu0 %v565, 32
      %v1229 = vpop.permute.xlu0 %1228
      %1230 = vrot.lane.b32.xlu0 %v567, 32
      %v1231 = vpop.permute.xlu0 %1230
      %1232 = vrot.lane.b32.xlu0 %v570, 32
      %v1233 = vpop.permute.xlu0 %1232
      %1234 = vrot.lane.b32.xlu0 %v572, 32
      %v1235 = vpop.permute.xlu0 %1234
      %1236 = vrot.lane.b32.xlu0 %v575, 32
      %v1237 = vpop.permute.xlu0 %1236
      %1238 = vrot.lane.b32.xlu0 %v577, 32
      %v1239 = vpop.permute.xlu0 %1238
      %1240 = vrot.lane.b32.xlu0 %v580, 32
      %v1241 = vpop.permute.xlu0 %1240
      %1242 = vrot.lane.b32.xlu0 %v582, 32
      %v1243 = vpop.permute.xlu0 %1242
      %1244 = vrot.lane.b32.xlu0 %v585, 32
      %v1245 = vpop.permute.xlu0 %1244
      %1246 = vrot.lane.b32.xlu0 %v587, 32
      %v1247 = vpop.permute.xlu0 %1246
      %1248 = vrot.lane.b32.xlu0 %v590, 32
      %v1249 = vpop.permute.xlu0 %1248
      %1250 = vrot.lane.b32.xlu0 %v592, 32
      %v1251 = vpop.permute.xlu0 %1250
      %1252 = vrot.lane.b32.xlu0 %v595, 32
      %v1253 = vpop.permute.xlu0 %1252
      %1254 = vrot.lane.b32.xlu0 %v597, 32
      %v1255 = vpop.permute.xlu0 %1254
      %1256 = vrot.lane.b32.xlu0 %v896, 32
      %v1257 = vpop.permute.xlu0 %1256
      %1258 = vrot.lane.b32.xlu0 %v898, 32
      %v1259 = vpop.permute.xlu0 %1258
      %1260 = vrot.lane.b32.xlu0 %v1197, 32
      %v1261 = vpop.permute.xlu0 %1260
      %1262 = vrot.lane.b32.xlu0 %v1199, 32
      %v1263 = vpop.permute.xlu0 %1262
      %vm1296 = vcmask 31744
      %v1297 = vsel %vm1296, %v238, %v422
      %v1298 = vsel %vm1296, %v239, %v424
      %v1299 = vsel %vm1296, %v241, %v426
      %v1300 = vsel %vm1296, %v242, %v428
      %v1301 = vsel %vm1296, %v244, %v430
      %v1302 = vsel %vm1296, %v245, %v432
      %v1303 = vsel %vm1296, %v247, %v434
      %v1304 = vsel %vm1296, %v248, %v436
      %v1305 = vsel %vm1296, %v250, %v438
      %v1306 = vsel %vm1296, %v251, %v440
      %v1307 = vsel %vm1296, %v253, %v442
      %v1308 = vsel %vm1296, %v254, %v444
      %v1309 = vsel %vm1296, %v256, %v446
      %v1310 = vsel %vm1296, %v257, %v448
      %v1311 = vsel %vm1296, %v259, %v450
      %v1312 = vsel %vm1296, %v260, %v452
      %v1313 = vsel %vm1296, %v262, %v454
      %v1314 = vsel %vm1296, %v263, %v456
      %v1315 = vsel %vm1296, %v265, %v458
      %v1316 = vsel %vm1296, %v266, %v460
      %v1317 = vsel %vm1296, %v268, %v462
      %v1318 = vsel %vm1296, %v269, %v464
      %v1319 = vsel %vm1296, %v271, %v466
      %v1320 = vsel %vm1296, %v272, %v468
      %v1321 = vsel %vm1296, %v274, %v470
      %v1322 = vsel %vm1296, %v275, %v472
      %v1323 = vsel %vm1296, %v277, %v474
      %v1324 = vsel %vm1296, %v278, %v476
      %v1325 = vsel %vm1296, %v280, %v478
      %v1326 = vsel %vm1296, %v281, %v480
      %v1327 = vsel %vm1296, %v283, %v482
      %v1328 = vsel %vm1296, %v284, %v484
      %vm1329 = vcmask 64512
      %v1330 = vsel %vm1329, %v1297, %v599
      %v1331 = vsel %vm1329, %v1298, %v601
      %v1332 = vsel %vm1329, %v1299, %v603
      %v1333 = vsel %vm1329, %v1300, %v605
      %v1334 = vsel %vm1329, %v1301, %v607
      %v1335 = vsel %vm1329, %v1302, %v609
      %v1336 = vsel %vm1329, %v1303, %v611
      %v1337 = vsel %vm1329, %v1304, %v613
      %v1338 = vsel %vm1329, %v1305, %v615
      %v1339 = vsel %vm1329, %v1306, %v617
      %v1340 = vsel %vm1329, %v1307, %v619
      %v1341 = vsel %vm1329, %v1308, %v621
      %v1342 = vsel %vm1329, %v1309, %v623
      %v1343 = vsel %vm1329, %v1310, %v625
      %v1344 = vsel %vm1329, %v1311, %v627
      %v1345 = vsel %vm1329, %v1312, %v629
      %v1346 = vsel %vm1329, %v1313, %v631
      %v1347 = vsel %vm1329, %v1314, %v633
      %v1348 = vsel %vm1329, %v1315, %v635
      %v1349 = vsel %vm1329, %v1316, %v637
      %v1350 = vsel %vm1329, %v1317, %v639
      %v1351 = vsel %vm1329, %v1318, %v641
      %v1352 = vsel %vm1329, %v1319, %v643
      %v1353 = vsel %vm1329, %v1320, %v645
      %v1354 = vsel %vm1329, %v1321, %v647
      %v1355 = vsel %vm1329, %v1322, %v649
      %v1356 = vsel %vm1329, %v1323, %v651
      %v1357 = vsel %vm1329, %v1324, %v653
      %v1358 = vsel %vm1329, %v1325, %v655
      %v1359 = vsel %vm1329, %v1326, %v657
      %v1360 = vsel %vm1329, %v1327, %v659
      %v1361 = vsel %vm1329, %v1328, %v661
      %vm1362 = vcmask 97280
      %v1363 = vsel %vm1362, %v1330, %v697
      %v1364 = vsel %vm1362, %v1331, %v699
      %v1365 = vsel %vm1362, %v1332, %v701
      %v1366 = vsel %vm1362, %v1333, %v703
      %v1367 = vsel %vm1362, %v1334, %v705
      %v1368 = vsel %vm1362, %v1335, %v707
      %v1369 = vsel %vm1362, %v1336, %v709
      %v1370 = vsel %vm1362, %v1337, %v711
      %v1371 = vsel %vm1362, %v1338, %v713
      %v1372 = vsel %vm1362, %v1339, %v715
      %v1373 = vsel %vm1362, %v1340, %v717
      %v1374 = vsel %vm1362, %v1341, %v719
      %v1375 = vsel %vm1362, %v1342, %v721
      %v1376 = vsel %vm1362, %v1343, %v723
      %v1377 = vsel %vm1362, %v1344, %v725
      %v1378 = vsel %vm1362, %v1345, %v727
      %v1379 = vsel %vm1362, %v1346, %v729
      %v1380 = vsel %vm1362, %v1347, %v731
      %v1381 = vsel %vm1362, %v1348, %v733
      %v1382 = vsel %vm1362, %v1349, %v735
      %v1383 = vsel %vm1362, %v1350, %v737
      %v1384 = vsel %vm1362, %v1351, %v739
      %v1385 = vsel %vm1362, %v1352, %v741
      %v1386 = vsel %vm1362, %v1353, %v743
      %v1387 = vsel %vm1362, %v1354, %v745
      %v1388 = vsel %vm1362, %v1355, %v747
      %v1389 = vsel %vm1362, %v1356, %v749
      %v1390 = vsel %vm1362, %v1357, %v751
      %v1391 = vsel %vm1362, %v1358, %v753
      %v1392 = vsel %vm1362, %v1359, %v755
      %v1393 = vsel %vm1362, %v1360, %v757
      %v1394 = vsel %vm1362, %v1361, %v759
      %vm1395 = vcmask 130048
      %v1396 = vsel %vm1395, %v1363, %v799
      %v1397 = vsel %vm1395, %v1364, %v801
      %v1398 = vsel %vm1395, %v1365, %v803
      %v1399 = vsel %vm1395, %v1366, %v805
      %v1400 = vsel %vm1395, %v1367, %v807
      %v1401 = vsel %vm1395, %v1368, %v809
      %v1402 = vsel %vm1395, %v1369, %v811
      %v1403 = vsel %vm1395, %v1370, %v813
      %v1404 = vsel %vm1395, %v1371, %v815
      %v1405 = vsel %vm1395, %v1372, %v817
      %v1406 = vsel %vm1395, %v1373, %v819
      %v1407 = vsel %vm1395, %v1374, %v821
      %v1408 = vsel %vm1395, %v1375, %v823
      %v1409 = vsel %vm1395, %v1376, %v825
      %v1410 = vsel %vm1395, %v1377, %v827
      %v1411 = vsel %vm1395, %v1378, %v829
      %v1412 = vsel %vm1395, %v1379, %v831
      %v1413 = vsel %vm1395, %v1380, %v833
      %v1414 = vsel %vm1395, %v1381, %v835
      %v1415 = vsel %vm1395, %v1382, %v837
      %v1416 = vsel %vm1395, %v1383, %v839
      %v1417 = vsel %vm1395, %v1384, %v841
      %v1418 = vsel %vm1395, %v1385, %v843
      %v1419 = vsel %vm1395, %v1386, %v845
      %v1420 = vsel %vm1395, %v1387, %v847
      %v1421 = vsel %vm1395, %v1388, %v849
      %v1422 = vsel %vm1395, %v1389, %v851
      %v1423 = vsel %vm1395, %v1390, %v853
      %v1424 = vsel %vm1395, %v1391, %v855
      %v1425 = vsel %vm1395, %v1392, %v857
      %v1426 = vsel %vm1395, %v1393, %v859
      %v1427 = vsel %vm1395, %v1394, %v861
      %vm1428 = vcmask 162816
      %v1429 = vsel %vm1428, %v1396, %v900
      %v1430 = vsel %vm1428, %v1397, %v902
      %v1431 = vsel %vm1428, %v1398, %v904
      %v1432 = vsel %vm1428, %v1399, %v906
      %v1433 = vsel %vm1428, %v1400, %v908
      %v1434 = vsel %vm1428, %v1401, %v910
      %v1435 = vsel %vm1428, %v1402, %v912
      %v1436 = vsel %vm1428, %v1403, %v914
      %v1437 = vsel %vm1428, %v1404, %v916
      %v1438 = vsel %vm1428, %v1405, %v918
      %v1439 = vsel %vm1428, %v1406, %v920
      %v1440 = vsel %vm1428, %v1407, %v922
      %v1441 = vsel %vm1428, %v1408, %v924
      %v1442 = vsel %vm1428, %v1409, %v926
      %v1443 = vsel %vm1428, %v1410, %v928
      %v1444 = vsel %vm1428, %v1411, %v930
      %v1445 = vsel %vm1428, %v1412, %v932
      %v1446 = vsel %vm1428, %v1413, %v934
      %v1447 = vsel %vm1428, %v1414, %v936
      %v1448 = vsel %vm1428, %v1415, %v938
      %v1449 = vsel %vm1428, %v1416, %v940
      %v1450 = vsel %vm1428, %v1417, %v942
      %v1451 = vsel %vm1428, %v1418, %v944
      %v1452 = vsel %vm1428, %v1419, %v946
      %v1453 = vsel %vm1428, %v1420, %v948
      %v1454 = vsel %vm1428, %v1421, %v950
      %v1455 = vsel %vm1428, %v1422, %v952
      %v1456 = vsel %vm1428, %v1423, %v954
      %v1457 = vsel %vm1428, %v1424, %v956
      %v1458 = vsel %vm1428, %v1425, %v958
      %v1459 = vsel %vm1428, %v1426, %v960
      %v1460 = vsel %vm1428, %v1427, %v962
      %vm1461 = vcmask 195584
      %v1462 = vsel %vm1461, %v1429, %v998
      %v1463 = vsel %vm1461, %v1430, %v1000
      %v1464 = vsel %vm1461, %v1431, %v1002
      %v1465 = vsel %vm1461, %v1432, %v1004
      %v1466 = vsel %vm1461, %v1433, %v1006
      %v1467 = vsel %vm1461, %v1434, %v1008
      %v1468 = vsel %vm1461, %v1435, %v1010
      %v1469 = vsel %vm1461, %v1436, %v1012
      %v1470 = vsel %vm1461, %v1437, %v1014
      %v1471 = vsel %vm1461, %v1438, %v1016
      %v1472 = vsel %vm1461, %v1439, %v1018
      %v1473 = vsel %vm1461, %v1440, %v1020
      %v1474 = vsel %vm1461, %v1441, %v1022
      %v1475 = vsel %vm1461, %v1442, %v1024
      %v1476 = vsel %vm1461, %v1443, %v1026
      %v1477 = vsel %vm1461, %v1444, %v1028
      %v1478 = vsel %vm1461, %v1445, %v1030
      %v1479 = vsel %vm1461, %v1446, %v1032
      %v1480 = vsel %vm1461, %v1447, %v1034
      %v1481 = vsel %vm1461, %v1448, %v1036
      %v1482 = vsel %vm1461, %v1449, %v1038
      %v1483 = vsel %vm1461, %v1450, %v1040
      %v1484 = vsel %vm1461, %v1451, %v1042
      %v1485 = vsel %vm1461, %v1452, %v1044
      %v1486 = vsel %vm1461, %v1453, %v1046
      %v1487 = vsel %vm1461, %v1454, %v1048
      %v1488 = vsel %vm1461, %v1455, %v1050
      %v1489 = vsel %vm1461, %v1456, %v1052
      %v1490 = vsel %vm1461, %v1457, %v1054
      %v1491 = vsel %vm1461, %v1458, %v1056
      %v1492 = vsel %vm1461, %v1459, %v1058
      %v1493 = vsel %vm1461, %v1460, %v1060
      %vm1494 = vcmask 228352
      %v1495 = vsel %vm1494, %v1462, %v1100
      %v1496 = vsel %vm1494, %v1463, %v1102
      %v1497 = vsel %vm1494, %v1464, %v1104
      %v1498 = vsel %vm1494, %v1465, %v1106
      %v1499 = vsel %vm1494, %v1466, %v1108
      %v1500 = vsel %vm1494, %v1467, %v1110
      %v1501 = vsel %vm1494, %v1468, %v1112
      %v1502 = vsel %vm1494, %v1469, %v1114
      %v1503 = vsel %vm1494, %v1470, %v1116
      %v1504 = vsel %vm1494, %v1471, %v1118
      %v1505 = vsel %vm1494, %v1472, %v1120
      %v1506 = vsel %vm1494, %v1473, %v1122
      %v1507 = vsel %vm1494, %v1474, %v1124
      %v1508 = vsel %vm1494, %v1475, %v1126
      %v1509 = vsel %vm1494, %v1476, %v1128
      %v1510 = vsel %vm1494, %v1477, %v1130
      %v1511 = vsel %vm1494, %v1478, %v1132
      %v1512 = vsel %vm1494, %v1479, %v1134
      %v1513 = vsel %vm1494, %v1480, %v1136
      %v1514 = vsel %vm1494, %v1481, %v1138
      %v1515 = vsel %vm1494, %v1482, %v1140
      %v1516 = vsel %vm1494, %v1483, %v1142
      %v1517 = vsel %vm1494, %v1484, %v1144
      %v1518 = vsel %vm1494, %v1485, %v1146
      %v1519 = vsel %vm1494, %v1486, %v1148
      %v1520 = vsel %vm1494, %v1487, %v1150
      %v1521 = vsel %vm1494, %v1488, %v1152
      %v1522 = vsel %vm1494, %v1489, %v1154
      %v1523 = vsel %vm1494, %v1490, %v1156
      %v1524 = vsel %vm1494, %v1491, %v1158
      %v1525 = vsel %vm1494, %v1492, %v1160
      %v1526 = vsel %vm1494, %v1493, %v1162
      %vm1527 = vcmask 261120
      %v1528 = vsel %vm1527, %v1495, %v1201
      %v1529 = vsel %vm1527, %v1496, %v1203
      %v1530 = vsel %vm1527, %v1497, %v1205
      %v1531 = vsel %vm1527, %v1498, %v1207
      %v1532 = vsel %vm1527, %v1499, %v1209
      %v1533 = vsel %vm1527, %v1500, %v1211
      %v1534 = vsel %vm1527, %v1501, %v1213
      %v1535 = vsel %vm1527, %v1502, %v1215
      %v1536 = vsel %vm1527, %v1503, %v1217
      %v1537 = vsel %vm1527, %v1504, %v1219
      %v1538 = vsel %vm1527, %v1505, %v1221
      %v1539 = vsel %vm1527, %v1506, %v1223
      %v1540 = vsel %vm1527, %v1507, %v1225
      %v1541 = vsel %vm1527, %v1508, %v1227
      %v1542 = vsel %vm1527, %v1509, %v1229
      %v1543 = vsel %vm1527, %v1510, %v1231
      %v1544 = vsel %vm1527, %v1511, %v1233
      %v1545 = vsel %vm1527, %v1512, %v1235
      %v1546 = vsel %vm1527, %v1513, %v1237
      %v1547 = vsel %vm1527, %v1514, %v1239
      %v1548 = vsel %vm1527, %v1515, %v1241
      %v1549 = vsel %vm1527, %v1516, %v1243
      %v1550 = vsel %vm1527, %v1517, %v1245
      %v1551 = vsel %vm1527, %v1518, %v1247
      %v1552 = vsel %vm1527, %v1519, %v1249
      %v1553 = vsel %vm1527, %v1520, %v1251
      %v1554 = vsel %vm1527, %v1521, %v1253
      %v1555 = vsel %vm1527, %v1522, %v1255
      %v1556 = vsel %vm1527, %v1523, %v1257
      %v1557 = vsel %vm1527, %v1524, %v1259
      %v1558 = vsel %vm1527, %v1525, %v1261
      %v1559 = vsel %vm1527, %v1526, %v1263
      %v1560 = vpack.c.bf16 %v1529, %v1528
      %v1561 = vpack.c.bf16 %v1531, %v1530
      %v1562 = vpack.c.bf16 %v1533, %v1532
      %v1563 = vpack.c.bf16 %v1535, %v1534
      %v1564 = vpack.c.bf16 %v1537, %v1536
      %v1565 = vpack.c.bf16 %v1539, %v1538
      %v1566 = vpack.c.bf16 %v1541, %v1540
      %v1567 = vpack.c.bf16 %v1543, %v1542
      %v1568 = vpack.c.bf16 %v1545, %v1544
      %v1569 = vpack.c.bf16 %v1547, %v1546
      %v1570 = vpack.c.bf16 %v1549, %v1548
      %v1571 = vpack.c.bf16 %v1551, %v1550
      %v1572 = vpack.c.bf16 %v1553, %v1552
      %v1573 = vpack.c.bf16 %v1555, %v1554
      %v1574 = vpack.c.bf16 %v1557, %v1556
      %v1575 = vpack.c.bf16 %v1559, %v1558
      %v1576 = vld [vmem:[%s1] sm:$0xf]
      %v1577 = vld [vmem:[%s1 + $0x4] sm:$0xf]
      %v1578 = vld [vmem:[%s1 + $0x8] sm:$0xf]
      %v1579 = vld [vmem:[%s1 + $0xc] sm:$0xf]
      %v1580 = vld [vmem:[%s1 + $0x10] sm:$0x3]
      %v1586 = vunpack.c.l.b16 %v1576
      %v1587 = vunpack.c.l.b16 %v1577
      %v1588 = vunpack.c.l.b16 %v1578
      %v1589 = vunpack.c.l.b16 %v1579
      %v1590 = vunpack.c.l.b16 %v1580
      %v1591 = vpack.c.b16 %v1587, %v1586
      %v1592 = vpack.c.b16 %v1589, %v1588
      %v1593 = vpack.c.b16 %v1590, %v1590
      %vm1596 = vcmask 293888
      %v1598 = vsel %vm1596, %v1560, 0
      %v1601 = vsel %vm1596, %v1561, 0
      %v1604 = vsel %vm1596, %v1562, 0
      %v1607 = vsel %vm1596, %v1563, 0
      %v1610 = vsel %vm1596, %v1564, 0
      %v1613 = vsel %vm1596, %v1565, 0
      %v1616 = vsel %vm1596, %v1566, 0
      %v1619 = vsel %vm1596, %v1567, 0
      %v1622 = vsel %vm1596, %v1568, 0
      %v1625 = vsel %vm1596, %v1569, 0
      %v1628 = vsel %vm1596, %v1570, 0
      %v1631 = vsel %vm1596, %v1571, 0
      %v1634 = vsel %vm1596, %v1572, 0
      %v1637 = vsel %vm1596, %v1573, 0
      %v1640 = vsel %vm1596, %v1574, 0
      %v1643 = vsel %vm1596, %v1575, 0
      %vm1645 = vcmask 1041408
      %v1647 = vsel %vm1645, %v1593, 0
      %1649 = vmatprep.subr.bf16.mxu0 0
      %1650 = vmatpush1.bf16.msra.mxu0 0
      %1651 = vmatprep.subr.bf16.mxu0 0
      %1652 = vmatpush1.bf16.msra.mxu0 0
      %1653 = vmatprep.subr.bf16.mxu0 0
      %1654 = vmatpush1.bf16.msra.mxu0 0
      %1655 = vmatprep.subr.bf16.mxu0 0
      %1656 = vmatpush1.bf16.msra.mxu0 0
      %1657 = vmatprep.subr.bf16.mxu0 0
      %1658 = vmatpush1.bf16.msra.mxu0 0
      %1659 = vmatprep.subr.bf16.mxu0 0
      %1660 = vmatpush1.bf16.msra.mxu0 %v1647
      %1661 = vmatprep.subr.bf16.mxu0 0
      %1662 = vmatpush1.bf16.msra.mxu0 %v1592
      %1663 = vmatprep.subr.bf16.mxu0 0
      %1664 = vmatpush1.bf16.msra.mxu0 %v1591
      %1665 = vmatprep.subr.bf16.mxu0 0
      %1666 = vmatpush2.bf16.msra.mxu0 0
      %1667 = vmatprep.subr.bf16.mxu0 0
      %1668 = vmatpush2.bf16.msra.mxu0 0
      %1669 = vmatprep.subr.bf16.mxu0 0
      %1670 = vmatpush2.bf16.msra.mxu0 0
      %1671 = vmatprep.subr.bf16.mxu0 0
      %1672 = vmatpush2.bf16.msra.mxu0 0
      %1673 = vmatprep.subr.bf16.mxu0 0
      %1674 = vmatpush2.bf16.msra.mxu0 0
      %1675 = vmatprep.subr.bf16.mxu0 0
      %1676 = vmatpush2.bf16.msra.mxu0 0
      %1677 = vmatprep.subr.bf16.mxu0 0
      %1678 = vmatpush2.bf16.msra.mxu0 0
      %1679 = vmatprep.subr.bf16.mxu0 0
      %1680 = vmatpush2.bf16.msra.mxu0 0
      %1681 = vmatprep.mubr.bf16.mxu0 0
      %1682 = vmatmul.mubr.bf16.gmra.mxu0 %v1598
      %v1683 = vpop.f32.mrf.mxu0
      %v1684 = vadd.f32 0.0, %v1683
      %v1685 = vpop.f32.mrf.mxu0
      %v1686 = vpop.f32.mrf.mxu0
      %v1687 = vadd.f32 0.0, %v1686
      %v1688 = vpop.f32.mrf.mxu0
      %1689 = vmatprep.mubr.bf16.mxu0 0
      %1690 = vmatmul.mubr.bf16.gmra.mxu0 %v1601
      %v1691 = vpop.f32.mrf.mxu0
      %v1692 = vadd.f32 0.0, %v1691
      %v1693 = vpop.f32.mrf.mxu0
      %v1694 = vpop.f32.mrf.mxu0
      %v1695 = vadd.f32 0.0, %v1694
      %v1696 = vpop.f32.mrf.mxu0
      %1697 = vmatprep.mubr.bf16.mxu0 0
      %1698 = vmatmul.mubr.bf16.gmra.mxu0 %v1604
      %v1699 = vpop.f32.mrf.mxu0
      %v1700 = vadd.f32 0.0, %v1699
      %v1701 = vpop.f32.mrf.mxu0
      %v1702 = vpop.f32.mrf.mxu0
      %v1703 = vadd.f32 0.0, %v1702
      %v1704 = vpop.f32.mrf.mxu0
      %1705 = vmatprep.mubr.bf16.mxu0 0
      %1706 = vmatmul.mubr.bf16.gmra.mxu0 %v1607
      %v1707 = vpop.f32.mrf.mxu0
      %v1708 = vadd.f32 0.0, %v1707
      %v1709 = vpop.f32.mrf.mxu0
      %v1710 = vpop.f32.mrf.mxu0
      %v1711 = vadd.f32 0.0, %v1710
      %v1712 = vpop.f32.mrf.mxu0
      %1713 = vmatprep.mubr.bf16.mxu0 0
      %1714 = vmatmul.mubr.bf16.gmra.mxu0 %v1610
      %v1715 = vpop.f32.mrf.mxu0
      %v1716 = vadd.f32 0.0, %v1715
      %v1717 = vpop.f32.mrf.mxu0
      %v1718 = vpop.f32.mrf.mxu0
      %v1719 = vadd.f32 0.0, %v1718
      %v1720 = vpop.f32.mrf.mxu0
      %1721 = vmatprep.mubr.bf16.mxu0 0
      %1722 = vmatmul.mubr.bf16.gmra.mxu0 %v1613
      %v1723 = vpop.f32.mrf.mxu0
      %v1724 = vadd.f32 0.0, %v1723
      %v1725 = vpop.f32.mrf.mxu0
      %v1726 = vpop.f32.mrf.mxu0
      %v1727 = vadd.f32 0.0, %v1726
      %v1728 = vpop.f32.mrf.mxu0
      %1729 = vmatprep.mubr.bf16.mxu0 0
      %1730 = vmatmul.mubr.bf16.gmra.mxu0 %v1616
      %v1731 = vpop.f32.mrf.mxu0
      %v1732 = vadd.f32 0.0, %v1731
      %v1733 = vpop.f32.mrf.mxu0
      %v1734 = vpop.f32.mrf.mxu0
      %v1735 = vadd.f32 0.0, %v1734
      %v1736 = vpop.f32.mrf.mxu0
      %1737 = vmatprep.mubr.bf16.mxu0 0
      %1738 = vmatmul.mubr.bf16.gmra.mxu0 %v1619
      %v1739 = vpop.f32.mrf.mxu0
      %v1740 = vadd.f32 0.0, %v1739
      %v1741 = vpop.f32.mrf.mxu0
      %v1742 = vpop.f32.mrf.mxu0
      %v1743 = vadd.f32 0.0, %v1742
      %v1744 = vpop.f32.mrf.mxu0
      %1745 = vmatprep.mubr.bf16.mxu0 0
      %1746 = vmatmul.mubr.bf16.gmra.mxu0 %v1622
      %v1747 = vpop.f32.mrf.mxu0
      %v1748 = vadd.f32 0.0, %v1747
      %v1749 = vpop.f32.mrf.mxu0
      %v1750 = vpop.f32.mrf.mxu0
      %v1751 = vadd.f32 0.0, %v1750
      %v1752 = vpop.f32.mrf.mxu0
      %1753 = vmatprep.mubr.bf16.mxu0 0
      %1754 = vmatmul.mubr.bf16.gmra.mxu0 %v1625
      %v1755 = vpop.f32.mrf.mxu0
      %v1756 = vadd.f32 0.0, %v1755
      %v1757 = vpop.f32.mrf.mxu0
      %v1758 = vpop.f32.mrf.mxu0
      %v1759 = vadd.f32 0.0, %v1758
      %v1760 = vpop.f32.mrf.mxu0
      %1761 = vmatprep.mubr.bf16.mxu0 0
      %1762 = vmatmul.mubr.bf16.gmra.mxu0 %v1628
      %v1763 = vpop.f32.mrf.mxu0
      %v1764 = vadd.f32 0.0, %v1763
      %v1765 = vpop.f32.mrf.mxu0
      %v1766 = vpop.f32.mrf.mxu0
      %v1767 = vadd.f32 0.0, %v1766
      %v1768 = vpop.f32.mrf.mxu0
      %1769 = vmatprep.mubr.bf16.mxu0 0
      %1770 = vmatmul.mubr.bf16.gmra.mxu0 %v1631
      %v1771 = vpop.f32.mrf.mxu0
      %v1772 = vadd.f32 0.0, %v1771
      %v1773 = vpop.f32.mrf.mxu0
      %v1774 = vpop.f32.mrf.mxu0
      %v1775 = vadd.f32 0.0, %v1774
      %v1776 = vpop.f32.mrf.mxu0
      %1777 = vmatprep.mubr.bf16.mxu0 0
      %1778 = vmatmul.mubr.bf16.gmra.mxu0 %v1634
      %v1779 = vpop.f32.mrf.mxu0
      %v1780 = vadd.f32 0.0, %v1779
      %v1781 = vpop.f32.mrf.mxu0
      %v1782 = vpop.f32.mrf.mxu0
      %v1783 = vadd.f32 0.0, %v1782
      %v1784 = vpop.f32.mrf.mxu0
      %1785 = vmatprep.mubr.bf16.mxu0 0
      %1786 = vmatmul.mubr.bf16.gmra.mxu0 %v1637
      %v1787 = vpop.f32.mrf.mxu0
      %v1788 = vadd.f32 0.0, %v1787
      %v1789 = vpop.f32.mrf.mxu0
      %v1790 = vpop.f32.mrf.mxu0
      %v1791 = vadd.f32 0.0, %v1790
      %v1792 = vpop.f32.mrf.mxu0
      %1793 = vmatprep.mubr.bf16.mxu0 0
      %1794 = vmatmul.mubr.bf16.gmra.mxu0 %v1640
      %v1795 = vpop.f32.mrf.mxu0
      %v1796 = vadd.f32 0.0, %v1795
      %v1797 = vpop.f32.mrf.mxu0
      %v1798 = vpop.f32.mrf.mxu0
      %v1799 = vadd.f32 0.0, %v1798
      %v1800 = vpop.f32.mrf.mxu0
      %1801 = vmatprep.mubr.bf16.mxu0 0
      %1802 = vmatmul.mubr.bf16.gmra.mxu0 %v1643
      %v1803 = vpop.f32.mrf.mxu0
      %v1804 = vadd.f32 0.0, %v1803
      %v1805 = vpop.f32.mrf.mxu0
      %v1806 = vpop.f32.mrf.mxu0
      %v1807 = vadd.f32 0.0, %v1806
      %v1808 = vpop.f32.mrf.mxu0
      %1809 = vdwg.mxu0
      %1810 = vst.msk [vmem:[%s177] sm:$0xff] %vm1329, %v1684
      %1811 = vst.msk [vmem:[%s177 + $0x8] sm:$0xff] %vm1329, %v1687
      %1812 = vst.msk [vmem:[%s177 + $0x10] sm:$0xff] %vm1329, %v1692
      %1813 = vst.msk [vmem:[%s177 + $0x18] sm:$0xff] %vm1329, %v1695
      %1814 = vst.msk [vmem:[%s177 + $0x20] sm:$0xff] %vm1329, %v1700
      %1815 = vst.msk [vmem:[%s177 + $0x28] sm:$0xff] %vm1329, %v1703
      %1816 = vst.msk [vmem:[%s177 + $0x30] sm:$0xff] %vm1329, %v1708
      %1817 = vst.msk [vmem:[%s177 + $0x38] sm:$0xff] %vm1329, %v1711
      %1818 = vst.msk [vmem:[%s177 + $0x40] sm:$0xff] %vm1329, %v1716
      %1819 = vst.msk [vmem:[%s177 + $0x48] sm:$0xff] %vm1329, %v1719
      %1820 = vst.msk [vmem:[%s177 + $0x50] sm:$0xff] %vm1329, %v1724
      %1821 = vst.msk [vmem:[%s177 + $0x58] sm:$0xff] %vm1329, %v1727
      %1822 = vst.msk [vmem:[%s177 + $0x60] sm:$0xff] %vm1329, %v1732
      %1823 = vst.msk [vmem:[%s177 + $0x68] sm:$0xff] %vm1329, %v1735
      %1824 = vst.msk [vmem:[%s177 + $0x70] sm:$0xff] %vm1329, %v1740
      %1825 = vst.msk [vmem:[%s177 + $0x78] sm:$0xff] %vm1329, %v1743
      %1826 = vst.msk [vmem:[%s177 + $0x80] sm:$0xff] %vm1329, %v1748
      %1827 = vst.msk [vmem:[%s177 + $0x88] sm:$0xff] %vm1329, %v1751
      %1828 = vst.msk [vmem:[%s177 + $0x90] sm:$0xff] %vm1329, %v1756
      %1829 = vst.msk [vmem:[%s177 + $0x98] sm:$0xff] %vm1329, %v1759
      %1830 = vst.msk [vmem:[%s177 + $0xa0] sm:$0xff] %vm1329, %v1764
      %1831 = vst.msk [vmem:[%s177 + $0xa8] sm:$0xff] %vm1329, %v1767
      %1832 = vst.msk [vmem:[%s177 + $0xb0] sm:$0xff] %vm1329, %v1772
      %1833 = vst.msk [vmem:[%s177 + $0xb8] sm:$0xff] %vm1329, %v1775
      %1834 = vst.msk [vmem:[%s177 + $0xc0] sm:$0xff] %vm1329, %v1780
      %1835 = vst.msk [vmem:[%s177 + $0xc8] sm:$0xff] %vm1329, %v1783
      %1836 = vst.msk [vmem:[%s177 + $0xd0] sm:$0xff] %vm1329, %v1788
      %1837 = vst.msk [vmem:[%s177 + $0xd8] sm:$0xff] %vm1329, %v1791
      %1838 = vst.msk [vmem:[%s177 + $0xe0] sm:$0xff] %vm1329, %v1796
      %1839 = vst.msk [vmem:[%s177 + $0xe8] sm:$0xff] %vm1329, %v1799
      %1840 = vst.msk [vmem:[%s177 + $0xf0] sm:$0xff] %vm1329, %v1804
      %1841 = vst.msk [vmem:[%s177 + $0xf8] sm:$0xff] %vm1329, %v1807
      %v1842 = vsel %vm1329, %v1684, 0.0
      %v1843 = vsel %vm1329, %v1687, 0.0
      %v1844 = vadd.f32 %v1842, %v1843
      %v1845 = vsel %vm1329, %v1692, 0.0
      %v1846 = vadd.f32 %v1844, %v1845
      %v1847 = vsel %vm1329, %v1695, 0.0
      %v1848 = vadd.f32 %v1846, %v1847
      %v1849 = vsel %vm1329, %v1700, 0.0
      %v1850 = vadd.f32 %v1848, %v1849
      %v1851 = vsel %vm1329, %v1703, 0.0
      %v1852 = vadd.f32 %v1850, %v1851
      %v1853 = vsel %vm1329, %v1708, 0.0
      %v1854 = vadd.f32 %v1852, %v1853
      %v1855 = vsel %vm1329, %v1711, 0.0
      %v1856 = vadd.f32 %v1854, %v1855
      %v1857 = vsel %vm1329, %v1716, 0.0
      %v1858 = vadd.f32 %v1856, %v1857
      %v1859 = vsel %vm1329, %v1719, 0.0
      %v1860 = vadd.f32 %v1858, %v1859
      %v1861 = vsel %vm1329, %v1724, 0.0
      %v1862 = vadd.f32 %v1860, %v1861
      %v1863 = vsel %vm1329, %v1727, 0.0
      %v1864 = vadd.f32 %v1862, %v1863
      %v1865 = vsel %vm1329, %v1732, 0.0
      %v1866 = vadd.f32 %v1864, %v1865
      %v1867 = vsel %vm1329, %v1735, 0.0
      %v1868 = vadd.f32 %v1866, %v1867
      %v1869 = vsel %vm1329, %v1740, 0.0
      %v1870 = vadd.f32 %v1868, %v1869
      %v1871 = vsel %vm1329, %v1743, 0.0
      %v1872 = vadd.f32 %v1870, %v1871
      %v1873 = vsel %vm1329, %v1748, 0.0
      %v1874 = vadd.f32 %v1872, %v1873
      %v1875 = vsel %vm1329, %v1751, 0.0
      %v1876 = vadd.f32 %v1874, %v1875
      %v1877 = vsel %vm1329, %v1756, 0.0
      %v1878 = vadd.f32 %v1876, %v1877
      %v1879 = vsel %vm1329, %v1759, 0.0
      %v1880 = vadd.f32 %v1878, %v1879
      %v1881 = vsel %vm1329, %v1764, 0.0
      %v1882 = vadd.f32 %v1880, %v1881
      %v1883 = vsel %vm1329, %v1767, 0.0
      %v1884 = vadd.f32 %v1882, %v1883
      %v1885 = vsel %vm1329, %v1772, 0.0
      %v1886 = vadd.f32 %v1884, %v1885
      %v1887 = vsel %vm1329, %v1775, 0.0
      %v1888 = vadd.f32 %v1886, %v1887
      %v1889 = vsel %vm1329, %v1780, 0.0
      %v1890 = vadd.f32 %v1888, %v1889
      %v1891 = vsel %vm1329, %v1783, 0.0
      %v1892 = vadd.f32 %v1890, %v1891
      %v1893 = vsel %vm1329, %v1788, 0.0
      %v1894 = vadd.f32 %v1892, %v1893
      %v1895 = vsel %vm1329, %v1791, 0.0
      %v1896 = vadd.f32 %v1894, %v1895
      %v1897 = vsel %vm1329, %v1796, 0.0
      %v1898 = vadd.f32 %v1896, %v1897
      %v1899 = vsel %vm1329, %v1799, 0.0
      %v1900 = vadd.f32 %v1898, %v1899
      %v1901 = vsel %vm1329, %v1804, 0.0
      %v1902 = vadd.f32 %v1900, %v1901
      %v1903 = vsel %vm1329, %v1807, 0.0
      %v1904 = vadd.f32 %v1902, %v1903
      %v1905 = vrot.slane %v1904, 4
      %v1906 = vadd.f32 %v1904, %v1905
      %v1907 = vrot.slane %v1906, 2
      %v1908 = vadd.f32 %v1906, %v1907
      %v1909 = vrot.slane %v1908, 1
      %v1910 = vadd.f32 %v1908, %v1909
      %v1911 = vmul.f32 %v1684, %v1684
      %v1912 = vmul.f32 %v1687, %v1687
      %v1913 = vmul.f32 %v1692, %v1692
      %v1914 = vmul.f32 %v1695, %v1695
      %v1915 = vmul.f32 %v1700, %v1700
      %v1916 = vmul.f32 %v1703, %v1703
      %v1917 = vmul.f32 %v1708, %v1708
      %v1918 = vmul.f32 %v1711, %v1711
      %v1919 = vmul.f32 %v1716, %v1716
      %v1920 = vmul.f32 %v1719, %v1719
      %v1921 = vmul.f32 %v1724, %v1724
      %v1922 = vmul.f32 %v1727, %v1727
      %v1923 = vmul.f32 %v1732, %v1732
      %v1924 = vmul.f32 %v1735, %v1735
      %v1925 = vmul.f32 %v1740, %v1740
      %v1926 = vmul.f32 %v1743, %v1743
      %v1927 = vmul.f32 %v1748, %v1748
      %v1928 = vmul.f32 %v1751, %v1751
      %v1929 = vmul.f32 %v1756, %v1756
      %v1930 = vmul.f32 %v1759, %v1759
      %v1931 = vmul.f32 %v1764, %v1764
      %v1932 = vmul.f32 %v1767, %v1767
      %v1933 = vmul.f32 %v1772, %v1772
      %v1934 = vmul.f32 %v1775, %v1775
      %v1935 = vmul.f32 %v1780, %v1780
      %v1936 = vmul.f32 %v1783, %v1783
      %v1937 = vmul.f32 %v1788, %v1788
      %v1938 = vmul.f32 %v1791, %v1791
      %v1939 = vmul.f32 %v1796, %v1796
      %v1940 = vmul.f32 %v1799, %v1799
      %v1941 = vmul.f32 %v1804, %v1804
      %v1942 = vmul.f32 %v1807, %v1807
      %v1943 = vsel %vm1329, %v1911, 0.0
      %v1944 = vsel %vm1329, %v1912, 0.0
      %v1945 = vadd.f32 %v1943, %v1944
      %v1946 = vsel %vm1329, %v1913, 0.0
      %v1947 = vadd.f32 %v1945, %v1946
      %v1948 = vsel %vm1329, %v1914, 0.0
      %v1949 = vadd.f32 %v1947, %v1948
      %v1950 = vsel %vm1329, %v1915, 0.0
      %v1951 = vadd.f32 %v1949, %v1950
      %v1952 = vsel %vm1329, %v1916, 0.0
      %v1953 = vadd.f32 %v1951, %v1952
      %v1954 = vsel %vm1329, %v1917, 0.0
      %v1955 = vadd.f32 %v1953, %v1954
      %v1956 = vsel %vm1329, %v1918, 0.0
      %v1957 = vadd.f32 %v1955, %v1956
      %v1958 = vsel %vm1329, %v1919, 0.0
      %v1959 = vadd.f32 %v1957, %v1958
      %v1960 = vsel %vm1329, %v1920, 0.0
      %v1961 = vadd.f32 %v1959, %v1960
      %v1962 = vsel %vm1329, %v1921, 0.0
      %v1963 = vadd.f32 %v1961, %v1962
      %v1964 = vsel %vm1329, %v1922, 0.0
      %v1965 = vadd.f32 %v1963, %v1964
      %v1966 = vsel %vm1329, %v1923, 0.0
      %v1967 = vadd.f32 %v1965, %v1966
      %v1968 = vsel %vm1329, %v1924, 0.0
      %v1969 = vadd.f32 %v1967, %v1968
      %v1970 = vsel %vm1329, %v1925, 0.0
      %v1971 = vadd.f32 %v1969, %v1970
      %v1972 = vsel %vm1329, %v1926, 0.0
      %v1973 = vadd.f32 %v1971, %v1972
      %v1974 = vsel %vm1329, %v1927, 0.0
      %v1975 = vadd.f32 %v1973, %v1974
      %v1976 = vsel %vm1329, %v1928, 0.0
      %v1977 = vadd.f32 %v1975, %v1976
      %v1978 = vsel %vm1329, %v1929, 0.0
      %v1979 = vadd.f32 %v1977, %v1978
      %v1980 = vsel %vm1329, %v1930, 0.0
      %v1981 = vadd.f32 %v1979, %v1980
      %v1982 = vsel %vm1329, %v1931, 0.0
      %v1983 = vadd.f32 %v1981, %v1982
      %v1984 = vsel %vm1329, %v1932, 0.0
      %v1985 = vadd.f32 %v1983, %v1984
      %v1986 = vsel %vm1329, %v1933, 0.0
      %v1987 = vadd.f32 %v1985, %v1986
      %v1988 = vsel %vm1329, %v1934, 0.0
      %v1989 = vadd.f32 %v1987, %v1988
      %v1990 = vsel %vm1329, %v1935, 0.0
      %v1991 = vadd.f32 %v1989, %v1990
      %v1992 = vsel %vm1329, %v1936, 0.0
      %v1993 = vadd.f32 %v1991, %v1992
      %v1994 = vsel %vm1329, %v1937, 0.0
      %v1995 = vadd.f32 %v1993, %v1994
      %v1996 = vsel %vm1329, %v1938, 0.0
      %v1997 = vadd.f32 %v1995, %v1996
      %v1998 = vsel %vm1329, %v1939, 0.0
      %v1999 = vadd.f32 %v1997, %v1998
      %v2000 = vsel %vm1329, %v1940, 0.0
      %v2001 = vadd.f32 %v1999, %v2000
      %v2002 = vsel %vm1329, %v1941, 0.0
      %v2003 = vadd.f32 %v2001, %v2002
      %v2004 = vsel %vm1329, %v1942, 0.0
      %v2005 = vadd.f32 %v2003, %v2004
      %v2006 = vrot.slane %v2005, 4
      %v2007 = vadd.f32 %v2005, %v2006
      %v2008 = vrot.slane %v2007, 2
      %v2009 = vadd.f32 %v2007, %v2008
      %v2010 = vrot.slane %v2009, 1
      %v2011 = vadd.f32 %v2009, %v2010
      %vm2012 = vcmask 1040384
      %v2013 = vsel %vm2012, %v1910, %v2011
      %vm2014 = vcmask 58368
      %2015 = vst.msk [vmem:[%s182] sm:$0x3] %vm2014, %v2013
      %s2016 = smul.u32 32, %s15
      %p2017 = scmp.lt.s32.totalorder %s2016, 63
      %s2018 = scalar_select %p2017, %s2016, 63
      %s2019 = smul.addr %s2018, 8
      %s2020 = scalar_lea.vmem %s2, %s2019
      %p2021 = scmp.lt.s32.totalorder %s15, 1
      %s2022 = scalar_select %p2021, %s15, 1
      %s2023 = smul.addr %s2022, 2
      %s2024 = scalar_lea.vmem %s3, %s2023
      // Predicated region
      $region29: #{double_conv.4} parent=27 // pred_check
        %p2025 = pneg %p80
      $region30: #{double_conv.4} parent=27 // pred_check_branch
        %2027 = sbr.rel (%p2025) target = $region32
      $region31: #{double_conv.4} parent=27 // pred_region
        %s2028 = smul.u32 32, %s15
      $region32: #{double_conv.4} parent=27 // pred_fallthru
        _
      // Predicated region
      $region33: #{double_conv.4} parent=27 // pred_check
        %p2029 = pneg %p106
      $region34: #{double_conv.4} parent=27 // pred_check_branch
        %2031 = sbr.rel (%p2029) target = $region36
      $region35: #{double_conv.4} parent=27 // pred_region
        _
      $region36: #{double_conv.4} parent=27 // pred_fallthru
        _
    $region28: #{double_conv.4} parent=5 // pred_fallthru
      _
    %p2032 = scmp.le.s32.totalorder 2, %s10
    // Predicated region
    $region37: #{double_conv.4} parent=5 // pred_check
      %p2033 = pneg %p2032
    $region38: #{double_conv.4} parent=5 // pred_check_branch
      %2035 = sbr.rel (%p2033) target = $region40
    $region39: #{double_conv.4} parent=5 // pred_region
      %s2036 = ssub.s32 %s10, 2
      // Predicated region
      $region41: #{double_conv.4} parent=39 // pred_check
        %p2037 = pneg %p86
      $region42: #{double_conv.4} parent=39 // pred_check_branch
        %2039 = sbr.rel (%p2037) target = $region44
      $region43: #{double_conv.4} parent=39 // pred_region
        %s2040 = smul.u32 32, %s16
        %p2041 = scmp.lt.s32.totalorder %s2040, 63
        %s2042 = scalar_select %p2041, %s2040, 63
        %s2043 = smul.addr %s2042, 8
        %s2044 = scalar_lea.vmem %s2, %s2043
      $region44: #{double_conv.4} parent=39 // pred_fallthru
        _
      // Predicated region
      $region45: #{double_conv.4} parent=39 // pred_check
        %p2045 = pneg %p112
      $region46: #{double_conv.4} parent=39 // pred_check_branch
        %2047 = sbr.rel (%p2045) target = $region48
      $region47: #{double_conv.4} parent=39 // pred_region
        %p2048 = scmp.lt.s32.totalorder %s16, 1
        %s2049 = scalar_select %p2048, %s16, 1
        %s2050 = smul.addr %s2049, 2
        %s2051 = scalar_lea.vmem %s3, %s2050
      $region48: #{double_conv.4} parent=39 // pred_fallthru
        _
    $region40: #{double_conv.4} parent=5 // pred_fallthru
      _
  $region6: #{double_conv.4} parent=0 // loop_footer
    %s14 = sadd.s32 1, %s10
  $region7: #{double_conv.4} parent=0 // loop_footer_branch
    %9 = sbr.rel target = $region3
  $region8: #{double_conv.4} parent=0 // loop_exit
    _

// kernel: double_conv.6
$region0: #{double_conv.6}
  #allocation0 [shape = 'u32[]', space=smem, size = 0x4, offset = 0x4, fixed_abs, tag = 'smem constant byte address 0x4 - core index']
  #allocation1 [shape = 'u32[144,128]{1,0:T(1,128)}', space=vmem, size = 0x12000, scoped, tag = 'internal scratch']
  %s0 = inlined_call_operand.vmem [shape: bf16[2,18,18,8], index: 0, kind: input, shape index: {}]
  %s1 = inlined_call_operand.vmem [shape: bf16[72,8], index: 1, kind: input, shape index: {}]
  %s2 = inlined_call_operand.vmem [shape: f32[512,8], index: 2, kind: output, shape index: {0}]
  %s3 = inlined_call_operand.vmem [shape: f32[2,2,8], index: 3, kind: output, shape index: {1}]
  %4 = xla_tuple %s2, %s3
  %s5 = sld [smem:[#allocation0]]
  $region49: #{double_conv.6} parent=0
    _
  %s7 = ssub.s32 1, %s5
  %s8 = scalar_select 0, %s7, %s5
  loop: start=0, step=1, limit=4
  $region2: #{double_conv.6} parent=0 // loop_pre_header
    _
  $region3: #{double_conv.6} parent=0 // loop_header
    %s10 = sphi 0, %s14
    %p11 = scmp.ge.s32.totalorder %s10, 4
    %s20 = sphi 0, %s22
    %s23 = sphi 0, %s20
    %s24 = sphi 0, %s23
    %s40 = sphi 0, %s24
    %s44 = sphi 0, %s44
    %s46 = sphi 0, %s44
    %s47 = sphi 0, %s46
    %s61 = sphi 0, %s47
    %s67 = sphi 0, %s69
    %s70 = sphi 0, %s67
    %s71 = sphi 0, %s70
    %s87 = sphi 0, %s71
    %s93 = sphi 0, %s95
    %s96 = sphi 0, %s93
    %s97 = sphi 0, %s96
    %s113 = sphi 0, %s97
  $region4: #{double_conv.6} parent=0 // loop_header_branch
    %13 = sbr.rel (%p11) target = $region8
  $region5: #{double_conv.6} parent=0 // loop_body
    %s15 = ssub.s32 %s10, 1
    %s16 = ssub.s32 %s10, 2
    %s17 = sadd.s32 %s10, 1
    %s18 = ssub.s32 %s10, %s17
    %p19 = scmp.eq.s32.totalorder %s18, 0
    %s21 = sadd.s32 %s20, 1
    %s22 = scalar_select %p19, %s20, %s21
    %p25 = pneg %p19
    %p26 = scmp.eq.s32.totalorder %s10, 1
    %p27 = por %p25, %p26
    %p28 = scmp.ne.s32.totalorder %s20, %s23
    %p29 = scmp.eq.s32.totalorder %s10, 0
    %p30 = por %p28, %p29
    %p31 = scmp.ne.s32.totalorder %s20, %s23
    %p32 = scmp.eq.s32.totalorder %s15, 1
    %p33 = por %p31, %p32
    %p34 = scmp.ne.s32.totalorder %s23, %s24
    %p35 = scmp.eq.s32.totalorder %s15, 0
    %p36 = por %p34, %p35
    %p37 = scmp.ne.s32.totalorder %s23, %s24
    %p38 = scmp.eq.s32.totalorder %s16, 1
    %p39 = por %p37, %p38
    %p41 = scmp.ne.s32.totalorder %s24, %s40
    %p42 = scmp.eq.s32.totalorder %s16, 0
    %p43 = por %p41, %p42
    %s45 = sadd.s32 %s44, 1
    %p48 = scmp.eq.s32.totalorder %s10, 1
    %p49 = scmp.ne.s32.totalorder %s44, %s46
    %p50 = scmp.eq.s32.totalorder %s10, 0
    %p51 = por %p49, %p50
    %p52 = scmp.ne.s32.totalorder %s44, %s46
    %p53 = scmp.eq.s32.totalorder %s15, 1
    %p54 = por %p52, %p53
    %p55 = scmp.ne.s32.totalorder %s46, %s47
    %p56 = scmp.eq.s32.totalorder %s15, 0
    %p57 = por %p55, %p56
    %p58 = scmp.ne.s32.totalorder %s46, %s47
    %p59 = scmp.eq.s32.totalorder %s16, 1
    %p60 = por %p58, %p59
    %p62 = scmp.ne.s32.totalorder %s47, %s61
    %p63 = scmp.eq.s32.totalorder %s16, 0
    %p64 = por %p62, %p63
    %s65 = ssub.s32 %s10, %s17
    %p66 = scmp.eq.s32.totalorder %s65, 0
    %s68 = sadd.s32 %s67, 1
    %s69 = scalar_select %p66, %s67, %s68
    %p72 = pneg %p66
    %p73 = scmp.eq.s32.totalorder %s10, 1
    %p74 = por %p72, %p73
    %p75 = scmp.ne.s32.totalorder %s67, %s70
    %p76 = scmp.eq.s32.totalorder %s10, 0
    %p77 = por %p75, %p76
    %p78 = scmp.ne.s32.totalorder %s67, %s70
    %p79 = scmp.eq.s32.totalorder %s15, 1
    %p80 = por %p78, %p79
    %p81 = scmp.ne.s32.totalorder %s70, %s71
    %p82 = scmp.eq.s32.totalorder %s15, 0
    %p83 = por %p81, %p82
    %p84 = scmp.ne.s32.totalorder %s70, %s71
    %p85 = scmp.eq.s32.totalorder %s16, 1
    %p86 = por %p84, %p85
    %p88 = scmp.ne.s32.totalorder %s71, %s87
    %p89 = scmp.eq.s32.totalorder %s16, 0
    %p90 = por %p88, %p89
    %s91 = ssub.s32 %s10, %s17
    %p92 = scmp.eq.s32.totalorder %s91, 0
    %s94 = sadd.s32 %s93, 1
    %s95 = scalar_select %p92, %s93, %s94
    %p98 = pneg %p92
    %p99 = scmp.eq.s32.totalorder %s10, 1
    %p100 = por %p98, %p99
    %p101 = scmp.ne.s32.totalorder %s93, %s96
    %p102 = scmp.eq.s32.totalorder %s10, 0
    %p103 = por %p101, %p102
    %p104 = scmp.ne.s32.totalorder %s93, %s96
    %p105 = scmp.eq.s32.totalorder %s15, 1
    %p106 = por %p104, %p105
    %p107 = scmp.ne.s32.totalorder %s96, %s97
    %p108 = scmp.eq.s32.totalorder %s15, 0
    %p109 = por %p107, %p108
    %p110 = scmp.ne.s32.totalorder %s96, %s97
    %p111 = scmp.eq.s32.totalorder %s16, 1
    %p112 = por %p110, %p111
    %p114 = scmp.ne.s32.totalorder %s97, %s113
    %p115 = scmp.eq.s32.totalorder %s16, 0
    %p116 = por %p114, %p115
    %p117 = scmp.le.s32.totalorder 1, %s10
    %p118 = scmp.lt.s32.totalorder %s10, 3
    %p119 = pnand %p117, %p118
    %p120 = pneg %p119
    // Predicated region
    $region9: #{double_conv.6} parent=5 // pred_check
      _
    $region10: #{double_conv.6} parent=5 // pred_check_branch
      %122 = sbr.rel (%p119) target = $region12
    $region11: #{double_conv.6} parent=5 // pred_region
      %s123 = ssub.s32 %s10, 1
      // Predicated region
      $region13: #{double_conv.6} parent=11 // pred_check
        %p124 = pneg %p57
      $region14: #{double_conv.6} parent=11 // pred_check_branch
        %126 = sbr.rel (%p124) target = $region16
      $region15: #{double_conv.6} parent=11 // pred_region
        _
      $region16: #{double_conv.6} parent=11 // pred_fallthru
        _
    $region12: #{double_conv.6} parent=5 // pred_fallthru
      _
    %p127 = scmp.lt.s32.totalorder %s10, 2
    // Predicated region
    $region17: #{double_conv.6} parent=5 // pred_check
      %p128 = pneg %p127
    $region18: #{double_conv.6} parent=5 // pred_check_branch
      %130 = sbr.rel (%p128) target = $region20
    $region19: #{double_conv.6} parent=5 // pred_region
      // Predicated region
      $region21: #{double_conv.6} parent=19 // pred_check
        %p131 = pneg %p30
      $region22: #{double_conv.6} parent=19 // pred_check_branch
        %133 = sbr.rel (%p131) target = $region24
      $region23: #{double_conv.6} parent=19 // pred_region
        %p134 = scmp.lt.s32.totalorder %s10, 1
        %s135 = scalar_select %p134, %s10, 1
        %s136 = smul.addr %s135, 54
        %s137 = smul.addr %s136, 4
        %s138 = scalar_lea.vmem %s0, %s137
      $region24: #{double_conv.6} parent=19 // pred_fallthru
        _
    $region20: #{double_conv.6} parent=5 // pred_fallthru
      _
    %p139 = scmp.le.s32.totalorder 1, %s10
    %p140 = scmp.lt.s32.totalorder %s10, 3
    %p141 = pnand %p139, %p140
    %p142 = pneg %p141
    // Predicated region
    $region25: #{double_conv.6} parent=5 // pred_check
      _
    $region26: #{double_conv.6} parent=5 // pred_check_branch
      %144 = sbr.rel (%p141) target = $region28
    $region27: #{double_conv.6} parent=5 // pred_region
      %s145 = ssub.s32 %s10, 1
      %p146 = scmp.lt.s32.totalorder %s15, 1
      %s147 = scalar_select %p146, %s15, 1
      %s148 = smul.addr %s147, 54
      %s149 = smul.addr %s148, 4
      %s150 = scalar_lea.vmem %s0, %s149
      %p151 = pneg %p36
      %p152 = pneg %p33
      %p153 = pneg %p57
      %p154 = pneg %p54
      %p155 = pneg %p83
      %p156 = pneg %p80
      %s157 = smul.u32 32, %s15
      %p158 = scmp.lt.s32.totalorder %s157, 63
      %s159 = scalar_select %p158, %s157, 63
      %s160 = smul.addr %s159, 8
      %s161 = scalar_lea.vmem %s2, %s160
      %p162 = pneg %p109
      %p163 = pneg %p106
      %p164 = scmp.lt.s32.totalorder %s15, 1
      %s165 = scalar_select %p164, %s15, 1
      %s166 = smul.addr %s165, 2
      %s167 = scalar_lea.vmem %s3, %s166
      %p168 = scmp.lt.s32.totalorder %s15, 1
      %s169 = scalar_select %p168, %s15, 1
      %s170 = smul.addr %s169, 54
      %s171 = smul.addr %s170, 4
      %s172 = scalar_lea.vmem %s0, %s171
      %s173 = smul.u32 32, %s15
      %p174 = scmp.lt.s32.totalorder %s173, 63
      %s175 = scalar_select %p174, %s173, 63
      %s176 = smul.addr %s175, 8
      %s177 = scalar_lea.vmem %s2, %s176
      %s178 = smul.u32 32, %s15
      %p179 = scmp.lt.s32.totalorder %s15, 1
      %s180 = scalar_select %p179, %s15, 1
      %s181 = smul.addr %s180, 2
      %s182 = scalar_lea.vmem %s3, %s181
      %v184 = vld [vmem:[%s172] sm:$0xf]
      %v185 = vld [vmem:[%s172 + $0x4] sm:$0xf]
      %v186 = vld [vmem:[%s172 + $0x8] sm:$0x1]
      %v187 = vld [vmem:[%s172 + $0xc] sm:$0xf]
      %v188 = vld [vmem:[%s172 + $0x10] sm:$0xf]
      %v189 = vld [vmem:[%s172 + $0x14] sm:$0x1]
      %v190 = vld [vmem:[%s172 + $0x18] sm:$0xf]
      %v191 = vld [vmem:[%s172 + $0x1c] sm:$0xf]
      %v192 = vld [vmem:[%s172 + $0x20] sm:$0x1]
      %v193 = vld [vmem:[%s172 + $0x24] sm:$0xf]
      %v194 = vld [vmem:[%s172 + $0x28] sm:$0xf]
      %v195 = vld [vmem:[%s172 + $0x2c] sm:$0x1]
      %v196 = vld [vmem:[%s172 + $0x30] sm:$0xf]
      %v197 = vld [vmem:[%s172 + $0x34] sm:$0xf]
      %v198 = vld [vmem:[%s172 + $0x38] sm:$0x1]
      %v199 = vld [vmem:[%s172 + $0x3c] sm:$0xf]
      %v200 = vld [vmem:[%s172 + $0x40] sm:$0xf]
      %v201 = vld [vmem:[%s172 + $0x44] sm:$0x1]
      %v202 = vld [vmem:[%s172 + $0x48] sm:$0xf]
      %v203 = vld [vmem:[%s172 + $0x4c] sm:$0xf]
      %v204 = vld [vmem:[%s172 + $0x50] sm:$0x1]
      %v205 = vld [vmem:[%s172 + $0x54] sm:$0xf]
      %v206 = vld [vmem:[%s172 + $0x58] sm:$0xf]
      %v207 = vld [vmem:[%s172 + $0x5c] sm:$0x1]
      %v208 = vld [vmem:[%s172 + $0x60] sm:$0xf]
      %v209 = vld [vmem:[%s172 + $0x64] sm:$0xf]
      %v210 = vld [vmem:[%s172 + $0x68] sm:$0x1]
      %v211 = vld [vmem:[%s172 + $0x6c] sm:$0xf]
      %v212 = vld [vmem:[%s172 + $0x70] sm:$0xf]
      %v213 = vld [vmem:[%s172 + $0x74] sm:$0x1]
      %v214 = vld [vmem:[%s172 + $0x78] sm:$0xf]
      %v215 = vld [vmem:[%s172 + $0x7c] sm:$0xf]
      %v216 = vld [vmem:[%s172 + $0x80] sm:$0x1]
      %v217 = vld [vmem:[%s172 + $0x84] sm:$0xf]
      %v218 = vld [vmem:[%s172 + $0x88] sm:$0xf]
      %v219 = vld [vmem:[%s172 + $0x8c] sm:$0x1]
      %v220 = vld [vmem:[%s172 + $0x90] sm:$0xf]
      %v221 = vld [vmem:[%s172 + $0x94] sm:$0xf]
      %v222 = vld [vmem:[%s172 + $0x98] sm:$0x1]
      %v223 = vld [vmem:[%s172 + $0x9c] sm:$0xf]
      %v224 = vld [vmem:[%s172 + $0xa0] sm:$0xf]
      %v225 = vld [vmem:[%s172 + $0xa4] sm:$0x1]
      %v226 = vld [vmem:[%s172 + $0xa8] sm:$0xf]
      %v227 = vld [vmem:[%s172 + $0xac] sm:$0xf]
      %v228 = vld [vmem:[%s172 + $0xb0] sm:$0x1]
      %v229 = vld [vmem:[%s172 + $0xb4] sm:$0xf]
      %v230 = vld [vmem:[%s172 + $0xb8] sm:$0xf]
      %v231 = vld [vmem:[%s172 + $0xbc] sm:$0x1]
      %v232 = vld [vmem:[%s172 + $0xc0] sm:$0xf]
      %v233 = vld [vmem:[%s172 + $0xc4] sm:$0xf]
      %v234 = vld [vmem:[%s172 + $0xc8] sm:$0x1]
      %v235 = vld [vmem:[%s172 + $0xcc] sm:$0xf]
      %v236 = vld [vmem:[%s172 + $0xd0] sm:$0xf]
      %v237 = vld [vmem:[%s172 + $0xd4] sm:$0x1]
      %v238 = vunpack.c.l.bf16 %v184
      %v239 = vunpack.c.l.bf16 %v185
      %v240 = vunpack.c.l.bf16 %v186
      %v241 = vunpack.c.l.bf16 %v187
      %v242 = vunpack.c.l.bf16 %v188
      %v243 = vunpack.c.l.bf16 %v189
      %v244 = vunpack.c.l.bf16 %v190
      %v245 = vunpack.c.l.bf16 %v191
      %v246 = vunpack.c.l.bf16 %v192
      %v247 = vunpack.c.l.bf16 %v193
      %v248 = vunpack.c.l.bf16 %v194
      %v249 = vunpack.c.l.bf16 %v195
      %v250 = vunpack.c.l.bf16 %v196
      %v251 = vunpack.c.l.bf16 %v197
      %v252 = vunpack.c.l.bf16 %v198
      %v253 = vunpack.c.l.bf16 %v199
      %v254 = vunpack.c.l.bf16 %v200
      %v255 = vunpack.c.l.bf16 %v201
      %v256 = vunpack.c.l.bf16 %v202
      %v257 = vunpack.c.l.bf16 %v203
      %v258 = vunpack.c.l.bf16 %v204
      %v259 = vunpack.c.l.bf16 %v205
      %v260 = vunpack.c.l.bf16 %v206
      %v261 = vunpack.c.l.bf16 %v207
      %v262 = vunpack.c.l.bf16 %v208
      %v263 = vunpack.c.l.bf16 %v209
      %v264 = vunpack.c.l.bf16 %v210
      %v265 = vunpack.c.l.bf16 %v211
      %v266 = vunpack.c.l.bf16 %v212
      %v267 = vunpack.c.l.bf16 %v213
      %v268 = vunpack.c.l.bf16 %v214
      %v269 = vunpack.c.l.bf16 %v215
      %v270 = vunpack.c.l.bf16 %v216
      %v271 = vunpack.c.l.bf16 %v217
      %v272 = vunpack.c.l.bf16 %v218
      %v273 = vunpack.c.l.bf16 %v219
      %v274 = vunpack.c.l.bf16 %v220
      %v275 = vunpack.c.l.bf16 %v221
      %v276 = vunpack.c.l.bf16 %v222
      %v277 = vunpack.c.l.bf16 %v223
      %v278 = vunpack.c.l.bf16 %v224
      %v279 = vunpack.c.l.bf16 %v225
      %v280 = vunpack.c.l.bf16 %v226
      %v281 = vunpack.c.l.bf16 %v227
      %v282 = vunpack.c.l.bf16 %v228
      %v283 = vunpack.c.l.bf16 %v229
      %v284 = vunpack.c.l.bf16 %v230
      %v285 = vunpack.c.l.bf16 %v231
      %v286 = vunpack.c.l.bf16 %v232
      %v287 = vunpack.c.l.bf16 %v233
      %v288 = vunpack.c.l.bf16 %v234
      %v289 = vunpack.c.l.bf16 %v235
      %v290 = vunpack.c.l.bf16 %v236
      %v291 = vunpack.c.l.bf16 %v237
      %vm340 = vcmask 1046528
      %v341 = vrot.slane %v238, 1
      %v342 = vrot.slane %v239, 1
      %v343 = vsel %vm340, %v341, %v342
      %v344 = vrot.slane %v240, 1
      %v345 = vsel %vm340, %v342, %v344
      %v346 = vrot.slane %v241, 1
      %v347 = vrot.slane %v242, 1
      %v348 = vsel %vm340, %v346, %v347
      %v349 = vrot.slane %v243, 1
      %v350 = vsel %vm340, %v347, %v349
      %v351 = vrot.slane %v244, 1
      %v352 = vrot.slane %v245, 1
      %v353 = vsel %vm340, %v351, %v352
      %v354 = vrot.slane %v246, 1
      %v355 = vsel %vm340, %v352, %v354
      %v356 = vrot.slane %v247, 1
      %v357 = vrot.slane %v248, 1
      %v358 = vsel %vm340, %v356, %v357
      %v359 = vrot.slane %v249, 1
      %v360 = vsel %vm340, %v357, %v359
      %v361 = vrot.slane %v250, 1
      %v362 = vrot.slane %v251, 1
      %v363 = vsel %vm340, %v361, %v362
      %v364 = vrot.slane %v252, 1
      %v365 = vsel %vm340, %v362, %v364
      %v366 = vrot.slane %v253, 1
      %v367 = vrot.slane %v254, 1
      %v368 = vsel %vm340, %v366, %v367
      %v369 = vrot.slane %v255, 1
      %v370 = vsel %vm340, %v367, %v369
      %v371 = vrot.slane %v256, 1
      %v372 = vrot.slane %v257, 1
      %v373 = vsel %vm340, %v371, %v372
      %v374 = vrot.slane %v258, 1
      %v375 = vsel %vm340, %v372, %v374
      %v376 = vrot.slane %v259, 1
      %v377 = vrot.slane %v260, 1
      %v378 = vsel %vm340, %v376, %v377
      %v379 = vrot.slane %v261, 1
      %v380 = vsel %vm340, %v377, %v379
      %v381 = vrot.slane %v262, 1
      %v382 = vrot.slane %v263, 1
      %v383 = vsel %vm340, %v381, %v382
      %v384 = vrot.slane %v264, 1
      %v385 = vsel %vm340, %v382, %v384
      %v386 = vrot.slane %v265, 1
      %v387 = vrot.slane %v266, 1
      %v388 = vsel %vm340, %v386, %v387
      %v389 = vrot.slane %v267, 1
      %v390 = vsel %vm340, %v387, %v389
      %v391 = vrot.slane %v268, 1
      %v392 = vrot.slane %v269, 1
      %v393 = vsel %vm340, %v391, %v392
      %v394 = vrot.slane %v270, 1
      %v395 = vsel %vm340, %v392, %v394
      %v396 = vrot.slane %v271, 1
      %v397 = vrot.slane %v272, 1
      %v398 = vsel %vm340, %v396, %v397
      %v399 = vrot.slane %v273, 1
      %v400 = vsel %vm340, %v397, %v399
      %v401 = vrot.slane %v274, 1
      %v402 = vrot.slane %v275, 1
      %v403 = vsel %vm340, %v401, %v402
      %v404 = vrot.slane %v276, 1
      %v405 = vsel %vm340, %v402, %v404
      %v406 = vrot.slane %v277, 1
      %v407 = vrot.slane %v278, 1
      %v408 = vsel %vm340, %v406, %v407
      %v409 = vrot.slane %v279, 1
      %v410 = vsel %vm340, %v407, %v409
      %v411 = vrot.slane %v280, 1
      %v412 = vrot.slane %v281, 1
      %v413 = vsel %vm340, %v411, %v412
      %v414 = vrot.slane %v282, 1
      %v415 = vsel %vm340, %v412, %v414
      %v416 = vrot.slane %v283, 1
      %v417 = vrot.slane %v284, 1
      %v418 = vsel %vm340, %v416, %v417
      %v419 = vrot.slane %v285, 1
      %v420 = vsel %vm340, %v417, %v419
      %421 = vrot.lane.b32.xlu0 %v343, 8
      %v422 = vpop.permute.xlu0 %421
      %423 = vrot.lane.b32.xlu0 %v345, 8
      %v424 = vpop.permute.xlu0 %423
      %425 = vrot.lane.b32.xlu0 %v348, 8
      %v426 = vpop.permute.xlu0 %425
      %427 = vrot.lane.b32.xlu0 %v350, 8
      %v428 = vpop.permute.xlu0 %427
      %429 = vrot.lane.b32.xlu0 %v353, 8
      %v430 = vpop.permute.xlu0 %429
      %431 = vrot.lane.b32.xlu0 %v355, 8
      %v432 = vpop.permute.xlu0 %431
      %433 = vrot.lane.b32.xlu0 %v358, 8
      %v434 = vpop.permute.xlu0 %433
      %435 = vrot.lane.b32.xlu0 %v360, 8
      %v436 = vpop.permute.xlu0 %435
      %437 = vrot.lane.b32.xlu0 %v363, 8
      %v438 = vpop.permute.xlu0 %437
      %439 = vrot.lane.b32.xlu0 %v365, 8
      %v440 = vpop.permute.xlu0 %439
      %441 = vrot.lane.b32.xlu0 %v368, 8
      %v442 = vpop.permute.xlu0 %441
      %443 = vrot.lane.b32.xlu0 %v370, 8
      %v444 = vpop.permute.xlu0 %443
      %445 = vrot.lane.b32.xlu0 %v373, 8
      %v446 = vpop.permute.xlu0 %445
      %447 = vrot.lane.b32.xlu0 %v375, 8
      %v448 = vpop.permute.xlu0 %447
      %449 = vrot.lane.b32.xlu0 %v378, 8
      %v450 = vpop.permute.xlu0 %449
      %451 = vrot.lane.b32.xlu0 %v380, 8
      %v452 = vpop.permute.xlu0 %451
      %453 = vrot.lane.b32.xlu0 %v383, 8
      %v454 = vpop.permute.xlu0 %453
      %455 = vrot.lane.b32.xlu0 %v385, 8
      %v456 = vpop.permute.xlu0 %455
      %457 = vrot.lane.b32.xlu0 %v388, 8
      %v458 = vpop.permute.xlu0 %457
      %459 = vrot.lane.b32.xlu0 %v390, 8
      %v460 = vpop.permute.xlu0 %459
      %461 = vrot.lane.b32.xlu0 %v393, 8
      %v462 = vpop.permute.xlu0 %461
      %463 = vrot.lane.b32.xlu0 %v395, 8
      %v464 = vpop.permute.xlu0 %463
      %465 = vrot.lane.b32.xlu0 %v398, 8
      %v466 = vpop.permute.xlu0 %465
      %467 = vrot.lane.b32.xlu0 %v400, 8
      %v468 = vpop.permute.xlu0 %467
      %469 = vrot.lane.b32.xlu0 %v403, 8
      %v470 = vpop.permute.xlu0 %469
      %471 = vrot.lane.b32.xlu0 %v405, 8
      %v472 = vpop.permute.xlu0 %471
      %473 = vrot.lane.b32.xlu0 %v408, 8
      %v474 = vpop.permute.xlu0 %473
      %475 = vrot.lane.b32.xlu0 %v410, 8
      %v476 = vpop.permute.xlu0 %475
      %477 = vrot.lane.b32.xlu0 %v413, 8
      %v478 = vpop.permute.xlu0 %477
      %479 = vrot.lane.b32.xlu0 %v415, 8
      %v480 = vpop.permute.xlu0 %479
      %481 = vrot.lane.b32.xlu0 %v418, 8
      %v482 = vpop.permute.xlu0 %481
      %483 = vrot.lane.b32.xlu0 %v420, 8
      %v484 = vpop.permute.xlu0 %483
      %vm517 = vcmask 1045504
      %v518 = vrot.slane %v238, 2
      %v519 = vrot.slane %v239, 2
      %v520 = vsel %vm517, %v518, %v519
      %v521 = vrot.slane %v240, 2
      %v522 = vsel %vm517, %v519, %v521
      %v523 = vrot.slane %v241, 2
      %v524 = vrot.slane %v242, 2
      %v525 = vsel %vm517, %v523, %v524
      %v526 = vrot.slane %v243, 2
      %v527 = vsel %vm517, %v524, %v526
      %v528 = vrot.slane %v244, 2
      %v529 = vrot.slane %v245, 2
      %v530 = vsel %vm517, %v528, %v529
      %v531 = vrot.slane %v246, 2
      %v532 = vsel %vm517, %v529, %v531
      %v533 = vrot.slane %v247, 2
      %v534 = vrot.slane %v248, 2
      %v535 = vsel %vm517, %v533, %v534
      %v536 = vrot.slane %v249, 2
      %v537 = vsel %vm517, %v534, %v536
      %v538 = vrot.slane %v250, 2
      %v539 = vrot.slane %v251, 2
      %v540 = vsel %vm517, %v538, %v539
      %v541 = vrot.slane %v252, 2
      %v542 = vsel %vm517, %v539, %v541
      %v543 = vrot.slane %v253, 2
      %v544 = vrot.slane %v254, 2
      %v545 = vsel %vm517, %v543, %v544
      %v546 = vrot.slane %v255, 2
      %v547 = vsel %vm517, %v544, %v546
      %v548 = vrot.slane %v256, 2
      %v549 = vrot.slane %v257, 2
      %v550 = vsel %vm517, %v548, %v549
      %v551 = vrot.slane %v258, 2
      %v552 = vsel %vm517, %v549, %v551
      %v553 = vrot.slane %v259, 2
      %v554 = vrot.slane %v260, 2
      %v555 = vsel %vm517, %v553, %v554
      %v556 = vrot.slane %v261, 2
      %v557 = vsel %vm517, %v554, %v556
      %v558 = vrot.slane %v262, 2
      %v559 = vrot.slane %v263, 2
      %v560 = vsel %vm517, %v558, %v559
      %v561 = vrot.slane %v264, 2
      %v562 = vsel %vm517, %v559, %v561
      %v563 = vrot.slane %v265, 2
      %v564 = vrot.slane %v266, 2
      %v565 = vsel %vm517, %v563, %v564
      %v566 = vrot.slane %v267, 2
      %v567 = vsel %vm517, %v564, %v566
      %v568 = vrot.slane %v268, 2
      %v569 = vrot.slane %v269, 2
      %v570 = vsel %vm517, %v568, %v569
      %v571 = vrot.slane %v270, 2
      %v572 = vsel %vm517, %v569, %v571
      %v573 = vrot.slane %v271, 2
      %v574 = vrot.slane %v272, 2
      %v575 = vsel %vm517, %v573, %v574
      %v576 = vrot.slane %v273, 2
      %v577 = vsel %vm517, %v574, %v576
      %v578 = vrot.slane %v274, 2
      %v579 = vrot.slane %v275, 2
      %v580 = vsel %vm517, %v578, %v579
      %v581 = vrot.slane %v276, 2
      %v582 = vsel %vm517, %v579, %v581
      %v583 = vrot.slane %v277, 2
      %v584 = vrot.slane %v278, 2
      %v585 = vsel %vm517, %v583, %v584
      %v586 = vrot.slane %v279, 2
      %v587 = vsel %vm517, %v584, %v586
      %v588 = vrot.slane %v280, 2
      %v589 = vrot.slane %v281, 2
      %v590 = vsel %vm517, %v588, %v589
      %v591 = vrot.slane %v282, 2
      %v592 = vsel %vm517, %v589, %v591
      %v593 = vrot.slane %v283, 2
      %v594 = vrot.slane %v284, 2
      %v595 = vsel %vm517, %v593, %v594
      %v596 = vrot.slane %v285, 2
      %v597 = vsel %vm517, %v594, %v596
      %598 = vrot.lane.b32.xlu0 %v520, 16
      %v599 = vpop.permute.xlu0 %598
      %600 = vrot.lane.b32.xlu0 %v522, 16
      %v601 = vpop.permute.xlu0 %600
      %602 = vrot.lane.b32.xlu0 %v525, 16
      %v603 = vpop.permute.xlu0 %602
      %604 = vrot.lane.b32.xlu0 %v527, 16
      %v605 = vpop.permute.xlu0 %604
      %606 = vrot.lane.b32.xlu0 %v530, 16
      %v607 = vpop.permute.xlu0 %606
      %608 = vrot.lane.b32.xlu0 %v532, 16
      %v609 = vpop.permute.xlu0 %608
      %610 = vrot.lane.b32.xlu0 %v535, 16
      %v611 = vpop.permute.xlu0 %610
      %612 = vrot.lane.b32.xlu0 %v537, 16
      %v613 = vpop.permute.xlu0 %612
      %614 = vrot.lane.b32.xlu0 %v540, 16
      %v615 = vpop.permute.xlu0 %614
      %616 = vrot.lane.b32.xlu0 %v542, 16
      %v617 = vpop.permute.xlu0 %616
      %618 = vrot.lane.b32.xlu0 %v545, 16
      %v619 = vpop.permute.xlu0 %618
      %620 = vrot.lane.b32.xlu0 %v547, 16
      %v621 = vpop.permute.xlu0 %620
      %622 = vrot.lane.b32.xlu0 %v550, 16
      %v623 = vpop.permute.xlu0 %622
      %624 = vrot.lane.b32.xlu0 %v552, 16
      %v625 = vpop.permute.xlu0 %624
      %626 = vrot.lane.b32.xlu0 %v555, 16
      %v627 = vpop.permute.xlu0 %626
      %628 = vrot.lane.b32.xlu0 %v557, 16
      %v629 = vpop.permute.xlu0 %628
      %630 = vrot.lane.b32.xlu0 %v560, 16
      %v631 = vpop.permute.xlu0 %630
      %632 = vrot.lane.b32.xlu0 %v562, 16
      %v633 = vpop.permute.xlu0 %632
      %634 = vrot.lane.b32.xlu0 %v565, 16
      %v635 = vpop.permute.xlu0 %634
      %636 = vrot.lane.b32.xlu0 %v567, 16
      %v637 = vpop.permute.xlu0 %636
      %638 = vrot.lane.b32.xlu0 %v570, 16
      %v639 = vpop.permute.xlu0 %638
      %640 = vrot.lane.b32.xlu0 %v572, 16
      %v641 = vpop.permute.xlu0 %640
      %642 = vrot.lane.b32.xlu0 %v575, 16
      %v643 = vpop.permute.xlu0 %642
      %644 = vrot.lane.b32.xlu0 %v577, 16
      %v645 = vpop.permute.xlu0 %644
      %646 = vrot.lane.b32.xlu0 %v580, 16
      %v647 = vpop.permute.xlu0 %646
      %648 = vrot.lane.b32.xlu0 %v582, 16
      %v649 = vpop.permute.xlu0 %648
      %650 = vrot.lane.b32.xlu0 %v585, 16
      %v651 = vpop.permute.xlu0 %650
      %652 = vrot.lane.b32.xlu0 %v587, 16
      %v653 = vpop.permute.xlu0 %652
      %654 = vrot.lane.b32.xlu0 %v590, 16
      %v655 = vpop.permute.xlu0 %654
      %656 = vrot.lane.b32.xlu0 %v592, 16
      %v657 = vpop.permute.xlu0 %656
      %658 = vrot.lane.b32.xlu0 %v595, 16
      %v659 = vpop.permute.xlu0 %658
      %660 = vrot.lane.b32.xlu0 %v597, 16
      %v661 = vpop.permute.xlu0 %660
      %696 = vrot.lane.b32.xlu0 %v241, 24
      %v697 = vpop.permute.xlu0 %696
      %698 = vrot.lane.b32.xlu0 %v242, 24
      %v699 = vpop.permute.xlu0 %698
      %700 = vrot.lane.b32.xlu0 %v244, 24
      %v701 = vpop.permute.xlu0 %700
      %702 = vrot.lane.b32.xlu0 %v245, 24
      %v703 = vpop.permute.xlu0 %702
      %704 = vrot.lane.b32.xlu0 %v247, 24
      %v705 = vpop.permute.xlu0 %704
      %706 = vrot.lane.b32.xlu0 %v248, 24
      %v707 = vpop.permute.xlu0 %706
      %708 = vrot.lane.b32.xlu0 %v250, 24
      %v709 = vpop.permute.xlu0 %708
      %710 = vrot.lane.b32.xlu0 %v251, 24
      %v711 = vpop.permute.xlu0 %710
      %712 = vrot.lane.b32.xlu0 %v253, 24
      %v713 = vpop.permute.xlu0 %712
      %714 = vrot.lane.b32.xlu0 %v254, 24
      %v715 = vpop.permute.xlu0 %714
      %716 = vrot.lane.b32.xlu0 %v256, 24
      %v717 = vpop.permute.xlu0 %716
      %718 = vrot.lane.b32.xlu0 %v257, 24
      %v719 = vpop.permute.xlu0 %718
      %720 = vrot.lane.b32.xlu0 %v259, 24
      %v721 = vpop.permute.xlu0 %720
      %722 = vrot.lane.b32.xlu0 %v260, 24
      %v723 = vpop.permute.xlu0 %722
      %724 = vrot.lane.b32.xlu0 %v262, 24
      %v725 = vpop.permute.xlu0 %724
      %726 = vrot.lane.b32.xlu0 %v263, 24
      %v727 = vpop.permute.xlu0 %726
      %728 = vrot.lane.b32.xlu0 %v265, 24
      %v729 = vpop.permute.xlu0 %728
      %730 = vrot.lane.b32.xlu0 %v266, 24
      %v731 = vpop.permute.xlu0 %730
      %732 = vrot.lane.b32.xlu0 %v268, 24
      %v733 = vpop.permute.xlu0 %732
      %734 = vrot.lane.b32.xlu0 %v269, 24
      %v735 = vpop.permute.xlu0 %734
      %736 = vrot.lane.b32.xlu0 %v271, 24
      %v737 = vpop.permute.xlu0 %736
      %738 = vrot.lane.b32.xlu0 %v272, 24
      %v739 = vpop.permute.xlu0 %738
      %740 = vrot.lane.b32.xlu0 %v274, 24
      %v741 = vpop.permute.xlu0 %740
      %742 = vrot.lane.b32.xlu0 %v275, 24
      %v743 = vpop.permute.xlu0 %742
      %744 = vrot.lane.b32.xlu0 %v277, 24
      %v745 = vpop.permute.xlu0 %744
      %746 = vrot.lane.b32.xlu0 %v278, 24
      %v747 = vpop.permute.xlu0 %746
      %748 = vrot.lane.b32.xlu0 %v280, 24
      %v749 = vpop.permute.xlu0 %748
      %750 = vrot.lane.b32.xlu0 %v281, 24
      %v751 = vpop.permute.xlu0 %750
      %752 = vrot.lane.b32.xlu0 %v283, 24
      %v753 = vpop.permute.xlu0 %752
      %754 = vrot.lane.b32.xlu0 %v284, 24
      %v755 = vpop.permute.xlu0 %754
      %756 = vrot.lane.b32.xlu0 %v286, 24
      %v757 = vpop.permute.xlu0 %756
      %758 = vrot.lane.b32.xlu0 %v287, 24
      %v759 = vpop.permute.xlu0 %758
      %v793 = vrot.slane %v286, 1
      %v794 = vrot.slane %v287, 1
      %v795 = vsel %vm340, %v793, %v794
      %v796 = vrot.slane %v288, 1
      %v797 = vsel %vm340, %v794, %v796
      %798 = vrot.lane.b32.xlu0 %v348, 32
      %v799 = vpop.permute.xlu0 %798
      %800 = vrot.lane.b32.xlu0 %v350, 32
      %v801 = vpop.permute.xlu0 %800
      %802 = vrot.lane.b32.xlu0 %v353, 32
      %v803 = vpop.permute.xlu0 %802
      %804 = vrot.lane.b32.xlu0 %v355, 32
      %v805 = vpop.permute.xlu0 %804
      %806 = vrot.lane.b32.xlu0 %v358, 32
      %v807 = vpop.permute.xlu0 %806
      %808 = vrot.lane.b32.xlu0 %v360, 32
      %v809 = vpop.permute.xlu0 %808
      %810 = vrot.lane.b32.xlu0 %v363, 32
      %v811 = vpop.permute.xlu0 %810
      %812 = vrot.lane.b32.xlu0 %v365, 32
      %v813 = vpop.permute.xlu0 %812
      %814 = vrot.lane.b32.xlu0 %v368, 32
      %v815 = vpop.permute.xlu0 %814
      %816 = vrot.lane.b32.xlu0 %v370, 32
      %v817 = vpop.permute.xlu0 %816
      %818 = vrot.lane.b32.xlu0 %v373, 32
      %v819 = vpop.permute.xlu0 %818
      %820 = vrot.lane.b32.xlu0 %v375, 32
      %v821 = vpop.permute.xlu0 %820
      %822 = vrot.lane.b32.xlu0 %v378, 32
      %v823 = vpop.permute.xlu0 %822
      %824 = vrot.lane.b32.xlu0 %v380, 32
      %v825 = vpop.permute.xlu0 %824
      %826 = vrot.lane.b32.xlu0 %v383, 32
      %v827 = vpop.permute.xlu0 %826
      %828 = vrot.lane.b32.xlu0 %v385, 32
      %v829 = vpop.permute.xlu0 %828
      %830 = vrot.lane.b32.xlu0 %v388, 32
      %v831 = vpop.permute.xlu0 %830
      %832 = vrot.lane.b32.xlu0 %v390, 32
      %v833 = vpop.permute.xlu0 %832
      %834 = vrot.lane.b32.xlu0 %v393, 32
      %v835 = vpop.permute.xlu0 %834
      %836 = vrot.lane.b32.xlu0 %v395, 32
      %v837 = vpop.permute.xlu0 %836
      %838 = vrot.lane.b32.xlu0 %v398, 32
      %v839 = vpop.permute.xlu0 %838
      %840 = vrot.lane.b32.xlu0 %v400, 32
      %v841 = vpop.permute.xlu0 %840
      %842 = vrot.lane.b32.xlu0 %v403, 32
      %v843 = vpop.permute.xlu0 %842
      %844 = vrot.lane.b32.xlu0 %v405, 32
      %v845 = vpop.permute.xlu0 %844
      %846 = vrot.lane.b32.xlu0 %v408, 32
      %v847 = vpop.permute.xlu0 %846
      %848 = vrot.lane.b32.xlu0 %v410, 32
      %v849 = vpop.permute.xlu0 %848
      %850 = vrot.lane.b32.xlu0 %v413, 32
      %v851 = vpop.permute.xlu0 %850
      %852 = vrot.lane.b32.xlu0 %v415, 32
      %v853 = vpop.permute.xlu0 %852
      %854 = vrot.lane.b32.xlu0 %v418, 32
      %v855 = vpop.permute.xlu0 %854
      %856 = vrot.lane.b32.xlu0 %v420, 32
      %v857 = vpop.permute.xlu0 %856
      %858 = vrot.lane.b32.xlu0 %v795, 32
      %v859 = vpop.permute.xlu0 %858
      %860 = vrot.lane.b32.xlu0 %v797, 32
      %v861 = vpop.permute.xlu0 %860
      %v894 = vrot.slane %v286, 2
      %v895 = vrot.slane %v287, 2
      %v896 = vsel %vm517, %v894, %v895
      %v897 = vrot.slane %v288, 2
      %v898 = vsel %vm517, %v895, %v897
      %899 = vrot.lane.b32.xlu0 %v525, 40
      %v900 = vpop.permute.xlu0 %899
      %901 = vrot.lane.b32.xlu0 %v527, 40
      %v902 = vpop.permute.xlu0 %901
      %903 = vrot.lane.b32.xlu0 %v530, 40
      %v904 = vpop.permute.xlu0 %903
      %905 = vrot.lane.b32.xlu0 %v532, 40
      %v906 = vpop.permute.xlu0 %905
      %907 = vrot.lane.b32.xlu0 %v535, 40
      %v908 = vpop.permute.xlu0 %907
      %909 = vrot.lane.b32.xlu0 %v537, 40
      %v910 = vpop.permute.xlu0 %909
      %911 = vrot.lane.b32.xlu0 %v540, 40
      %v912 = vpop.permute.xlu0 %911
      %913 = vrot.lane.b32.xlu0 %v542, 40
      %v914 = vpop.permute.xlu0 %913
      %915 = vrot.lane.b32.xlu0 %v545, 40
      %v916 = vpop.permute.xlu0 %915
      %917 = vrot.lane.b32.xlu0 %v547, 40
      %v918 = vpop.permute.xlu0 %917
      %919 = vrot.lane.b32.xlu0 %v550, 40
      %v920 = vpop.permute.xlu0 %919
      %921 = vrot.lane.b32.xlu0 %v552, 40
      %v922 = vpop.permute.xlu0 %921
      %923 = vrot.lane.b32.xlu0 %v555, 40
      %v924 = vpop.permute.xlu0 %923
      %925 = vrot.lane.b32.xlu0 %v557, 40
      %v926 = vpop.permute.xlu0 %925
      %927 = vrot.lane.b32.xlu0 %v560, 40
      %v928 = vpop.permute.xlu0 %927
      %929 = vrot.lane.b32.xlu0 %v562, 40
      %v930 = vpop.permute.xlu0 %929
      %931 = vrot.lane.b32.xlu0 %v565, 40
      %v932 = vpop.permute.xlu0 %931
      %933 = vrot.lane.b32.xlu0 %v567, 40
      %v934 = vpop.permute.xlu0 %933
      %935 = vrot.lane.b32.xlu0 %v570, 40
      %v936 = vpop.permute.xlu0 %935
      %937 = vrot.lane.b32.xlu0 %v572, 40
      %v938 = vpop.permute.xlu0 %937
      %939 = vrot.lane.b32.xlu0 %v575, 40
      %v940 = vpop.permute.xlu0 %939
      %941 = vrot.lane.b32.xlu0 %v577, 40
      %v942 = vpop.permute.xlu0 %941
      %943 = vrot.lane.b32.xlu0 %v580, 40
      %v944 = vpop.permute.xlu0 %943
      %945 = vrot.lane.b32.xlu0 %v582, 40
      %v946 = vpop.permute.xlu0 %945
      %947 = vrot.lane.b32.xlu0 %v585, 40
      %v948 = vpop.permute.xlu0 %947
      %949 = vrot.lane.b32.xlu0 %v587, 40
      %v950 = vpop.permute.xlu0 %949
      %951 = vrot.lane.b32.xlu0 %v590, 40
      %v952 = vpop.permute.xlu0 %951
      %953 = vrot.lane.b32.xlu0 %v592, 40
      %v954 = vpop.permute.xlu0 %953
      %955 = vrot.lane.b32.xlu0 %v595, 40
      %v956 = vpop.permute.xlu0 %955
      %957 = vrot.lane.b32.xlu0 %v597, 40
      %v958 = vpop.permute.xlu0 %957
      %959 = vrot.lane.b32.xlu0 %v896, 40
      %v960 = vpop.permute.xlu0 %959
      %961 = vrot.lane.b32.xlu0 %v898, 40
      %v962 = vpop.permute.xlu0 %961
      %997 = vrot.lane.b32.xlu0 %v244, 48
      %v998 = vpop.permute.xlu0 %997
      %999 = vrot.lane.b32.xlu0 %v245, 48
      %v1000 = vpop.permute.xlu0 %999
      %1001 = vrot.lane.b32.xlu0 %v247, 48
      %v1002 = vpop.permute.xlu0 %1001
      %1003 = vrot.lane.b32.xlu0 %v248, 48
      %v1004 = vpop.permute.xlu0 %1003
      %1005 = vrot.lane.b32.xlu0 %v250, 48
      %v1006 = vpop.permute.xlu0 %1005
      %1007 = vrot.lane.b32.xlu0 %v251, 48
      %v1008 = vpop.permute.xlu0 %1007
      %1009 = vrot.lane.b32.xlu0 %v253, 48
      %v1010 = vpop.permute.xlu0 %1009
      %1011 = vrot.lane.b32.xlu0 %v254, 48
      %v1012 = vpop.permute.xlu0 %1011
      %1013 = vrot.lane.b32.xlu0 %v256, 48
      %v1014 = vpop.permute.xlu0 %1013
      %1015 = vrot.lane.b32.xlu0 %v257, 48
      %v1016 = vpop.permute.xlu0 %1015
      %1017 = vrot.lane.b32.xlu0 %v259, 48
      %v1018 = vpop.permute.xlu0 %1017
      %1019 = vrot.lane.b32.xlu0 %v260, 48
      %v1020 = vpop.permute.xlu0 %1019
      %1021 = vrot.lane.b32.xlu0 %v262, 48
      %v1022 = vpop.permute.xlu0 %1021
      %1023 = vrot.lane.b32.xlu0 %v263, 48
      %v1024 = vpop.permute.xlu0 %1023
      %1025 = vrot.lane.b32.xlu0 %v265, 48
      %v1026 = vpop.permute.xlu0 %1025
      %1027 = vrot.lane.b32.xlu0 %v266, 48
      %v1028 = vpop.permute.xlu0 %1027
      %1029 = vrot.lane.b32.xlu0 %v268, 48
      %v1030 = vpop.permute.xlu0 %1029
      %1031 = vrot.lane.b32.xlu0 %v269, 48
      %v1032 = vpop.permute.xlu0 %1031
      %1033 = vrot.lane.b32.xlu0 %v271, 48
      %v1034 = vpop.permute.xlu0 %1033
      %1035 = vrot.lane.b32.xlu0 %v272, 48
      %v1036 = vpop.permute.xlu0 %1035
      %1037 = vrot.lane.b32.xlu0 %v274, 48
      %v1038 = vpop.permute.xlu0 %1037
      %1039 = vrot.lane.b32.xlu0 %v275, 48
      %v1040 = vpop.permute.xlu0 %1039
      %1041 = vrot.lane.b32.xlu0 %v277, 48
      %v1042 = vpop.permute.xlu0 %1041
      %1043 = vrot.lane.b32.xlu0 %v278, 48
      %v1044 = vpop.permute.xlu0 %1043
      %1045 = vrot.lane.b32.xlu0 %v280, 48
      %v1046 = vpop.permute.xlu0 %1045
      %1047 = vrot.lane.b32.xlu0 %v281, 48
      %v1048 = vpop.permute.xlu0 %1047
      %1049 = vrot.lane.b32.xlu0 %v283, 48
      %v1050 = vpop.permute.xlu0 %1049
      %1051 = vrot.lane.b32.xlu0 %v284, 48
      %v1052 = vpop.permute.xlu0 %1051
      %1053 = vrot.lane.b32.xlu0 %v286, 48
      %v1054 = vpop.permute.xlu0 %1053
      %1055 = vrot.lane.b32.xlu0 %v287, 48
      %v1056 = vpop.permute.xlu0 %1055
      %1057 = vrot.lane.b32.xlu0 %v289, 48
      %v1058 = vpop.permute.xlu0 %1057
      %1059 = vrot.lane.b32.xlu0 %v290, 48
      %v1060 = vpop.permute.xlu0 %1059
      %v1094 = vrot.slane %v289, 1
      %v1095 = vrot.slane %v290, 1
      %v1096 = vsel %vm340, %v1094, %v1095
      %v1097 = vrot.slane %v291, 1
      %v1098 = vsel %vm340, %v1095, %v1097
      %1099 = vrot.lane.b32.xlu0 %v353, 56
      %v1100 = vpop.permute.xlu0 %1099
      %1101 = vrot.lane.b32.xlu0 %v355, 56
      %v1102 = vpop.permute.xlu0 %1101
      %1103 = vrot.lane.b32.xlu0 %v358, 56
      %v1104 = vpop.permute.xlu0 %1103
      %1105 = vrot.lane.b32.xlu0 %v360, 56
      %v1106 = vpop.permute.xlu0 %1105
      %1107 = vrot.lane.b32.xlu0 %v363, 56
      %v1108 = vpop.permute.xlu0 %1107
      %1109 = vrot.lane.b32.xlu0 %v365, 56
      %v1110 = vpop.permute.xlu0 %1109
      %1111 = vrot.lane.b32.xlu0 %v368, 56
      %v1112 = vpop.permute.xlu0 %1111
      %1113 = vrot.lane.b32.xlu0 %v370, 56
      %v1114 = vpop.permute.xlu0 %1113
      %1115 = vrot.lane.b32.xlu0 %v373, 56
      %v1116 = vpop.permute.xlu0 %1115
      %1117 = vrot.lane.b32.xlu0 %v375, 56
      %v1118 = vpop.permute.xlu0 %1117
      %1119 = vrot.lane.b32.xlu0 %v378, 56
      %v1120 = vpop.permute.xlu0 %1119
      %1121 = vrot.lane.b32.xlu0 %v380, 56
      %v1122 = vpop.permute.xlu0 %1121
      %1123 = vrot.lane.b32.xlu0 %v383, 56
      %v1124 = vpop.permute.xlu0 %1123
      %1125 = vrot.lane.b32.xlu0 %v385, 56
      %v1126 = vpop.permute.xlu0 %1125
      %1127 = vrot.lane.b32.xlu0 %v388, 56
      %v1128 = vpop.permute.xlu0 %1127
      %1129 = vrot.lane.b32.xlu0 %v390, 56
      %v1130 = vpop.permute.xlu0 %1129
      %1131 = vrot.lane.b32.xlu0 %v393, 56
      %v1132 = vpop.permute.xlu0 %1131
      %1133 = vrot.lane.b32.xlu0 %v395, 56
      %v1134 = vpop.permute.xlu0 %1133
      %1135 = vrot.lane.b32.xlu0 %v398, 56
      %v1136 = vpop.permute.xlu0 %1135
      %1137 = vrot.lane.b32.xlu0 %v400, 56
      %v1138 = vpop.permute.xlu0 %1137
      %1139 = vrot.lane.b32.xlu0 %v403, 56
      %v1140 = vpop.permute.xlu0 %1139
      %1141 = vrot.lane.b32.xlu0 %v405, 56
      %v1142 = vpop.permute.xlu0 %1141
      %1143 = vrot.lane.b32.xlu0 %v408, 56
      %v1144 = vpop.permute.xlu0 %1143
      %1145 = vrot.lane.b32.xlu0 %v410, 56
      %v1146 = vpop.permute.xlu0 %1145
      %1147 = vrot.lane.b32.xlu0 %v413, 56
      %v1148 = vpop.permute.xlu0 %1147
      %1149 = vrot.lane.b32.xlu0 %v415, 56
      %v1150 = vpop.permute.xlu0 %1149
      %1151 = vrot.lane.b32.xlu0 %v418, 56
      %v1152 = vpop.permute.xlu0 %1151
      %1153 = vrot.lane.b32.xlu0 %v420, 56
      %v1154 = vpop.permute.xlu0 %1153
      %1155 = vrot.lane.b32.xlu0 %v795, 56
      %v1156 = vpop.permute.xlu0 %1155
      %1157 = vrot.lane.b32.xlu0 %v797, 56
      %v1158 = vpop.permute.xlu0 %1157
      %1159 = vrot.lane.b32.xlu0 %v1096, 56
      %v1160 = vpop.permute.xlu0 %1159
      %1161 = vrot.lane.b32.xlu0 %v1098, 56
      %v1162 = vpop.permute.xlu0 %1161
      %v1195 = vrot.slane %v289, 2
      %v1196 = vrot.slane %v290, 2
      %v1197 = vsel %vm517, %v1195, %v1196
      %v1198 = vrot.slane %v291, 2
      %v1199 = vsel %vm517, %v1196, %v1198
      %1200 = vrot.lane.b32.xlu0 %v530, 64
      %v1201 = vpop.permute.xlu0 %1200
      %1202 = vrot.lane.b32.xlu0 %v532, 64
      %v1203 = vpop.permute.xlu0 %1202
      %1204 = vrot.lane.b32.xlu0 %v535, 64
      %v1205 = vpop.permute.xlu0 %1204
      %1206 = vrot.lane.b32.xlu0 %v537, 64
      %v1207 = vpop.permute.xlu0 %1206
      %1208 = vrot.lane.b32.xlu0 %v540, 64
      %v1209 = vpop.permute.xlu0 %1208
      %1210 = vrot.lane.b32.xlu0 %v542, 64
      %v1211 = vpop.permute.xlu0 %1210
      %1212 = vrot.lane.b32.xlu0 %v545, 64
      %v1213 = vpop.permute.xlu0 %1212
      %1214 = vrot.lane.b32.xlu0 %v547, 64
      %v1215 = vpop.permute.xlu0 %1214
      %1216 = vrot.lane.b32.xlu0 %v550, 64
      %v1217 = vpop.permute.xlu0 %1216
      %1218 = vrot.lane.b32.xlu0 %v552, 64
      %v1219 = vpop.permute.xlu0 %1218
      %1220 = vrot.lane.b32.xlu0 %v555, 64
      %v1221 = vpop.permute.xlu0 %1220
      %1222 = vrot.lane.b32.xlu0 %v557, 64
      %v1223 = vpop.permute.xlu0 %1222
      %1224 = vrot.lane.b32.xlu0 %v560, 64
      %v1225 = vpop.permute.xlu0 %1224
      %1226 = vrot.lane.b32.xlu0 %v562, 64
      %v1227 = vpop.permute.xlu0 %1226
      %1228 = vrot.lane.b32.xlu0 %v565, 64
      %v1229 = vpop.permute.xlu0 %1228
      %1230 = vrot.lane.b32.xlu0 %v567, 64
      %v1231 = vpop.permute.xlu0 %1230
      %1232 = vrot.lane.b32.xlu0 %v570, 64
      %v1233 = vpop.permute.xlu0 %1232
      %1234 = vrot.lane.b32.xlu0 %v572, 64
      %v1235 = vpop.permute.xlu0 %1234
      %1236 = vrot.lane.b32.xlu0 %v575, 64
      %v1237 = vpop.permute.xlu0 %1236
      %1238 = vrot.lane.b32.xlu0 %v577, 64
      %v1239 = vpop.permute.xlu0 %1238
      %1240 = vrot.lane.b32.xlu0 %v580, 64
      %v1241 = vpop.permute.xlu0 %1240
      %1242 = vrot.lane.b32.xlu0 %v582, 64
      %v1243 = vpop.permute.xlu0 %1242
      %1244 = vrot.lane.b32.xlu0 %v585, 64
      %v1245 = vpop.permute.xlu0 %1244
      %1246 = vrot.lane.b32.xlu0 %v587, 64
      %v1247 = vpop.permute.xlu0 %1246
      %1248 = vrot.lane.b32.xlu0 %v590, 64
      %v1249 = vpop.permute.xlu0 %1248
      %1250 = vrot.lane.b32.xlu0 %v592, 64
      %v1251 = vpop.permute.xlu0 %1250
      %1252 = vrot.lane.b32.xlu0 %v595, 64
      %v1253 = vpop.permute.xlu0 %1252
      %1254 = vrot.lane.b32.xlu0 %v597, 64
      %v1255 = vpop.permute.xlu0 %1254
      %1256 = vrot.lane.b32.xlu0 %v896, 64
      %v1257 = vpop.permute.xlu0 %1256
      %1258 = vrot.lane.b32.xlu0 %v898, 64
      %v1259 = vpop.permute.xlu0 %1258
      %1260 = vrot.lane.b32.xlu0 %v1197, 64
      %v1261 = vpop.permute.xlu0 %1260
      %1262 = vrot.lane.b32.xlu0 %v1199, 64
      %v1263 = vpop.permute.xlu0 %1262
      %vm1296 = vcmask 64512
      %v1297 = vsel %vm1296, %v238, %v422
      %v1298 = vsel %vm1296, %v239, %v424
      %v1299 = vsel %vm1296, %v241, %v426
      %v1300 = vsel %vm1296, %v242, %v428
      %v1301 = vsel %vm1296, %v244, %v430
      %v1302 = vsel %vm1296, %v245, %v432
      %v1303 = vsel %vm1296, %v247, %v434
      %v1304 = vsel %vm1296, %v248, %v436
      %v1305 = vsel %vm1296, %v250, %v438
      %v1306 = vsel %vm1296, %v251, %v440
      %v1307 = vsel %vm1296, %v253, %v442
      %v1308 = vsel %vm1296, %v254, %v444
      %v1309 = vsel %vm1296, %v256, %v446
      %v1310 = vsel %vm1296, %v257, %v448
      %v1311 = vsel %vm1296, %v259, %v450
      %v1312 = vsel %vm1296, %v260, %v452
      %v1313 = vsel %vm1296, %v262, %v454
      %v1314 = vsel %vm1296, %v263, %v456
      %v1315 = vsel %vm1296, %v265, %v458
      %v1316 = vsel %vm1296, %v266, %v460
      %v1317 = vsel %vm1296, %v268, %v462
      %v1318 = vsel %vm1296, %v269, %v464
      %v1319 = vsel %vm1296, %v271, %v466
      %v1320 = vsel %vm1296, %v272, %v468
      %v1321 = vsel %vm1296, %v274, %v470
      %v1322 = vsel %vm1296, %v275, %v472
      %v1323 = vsel %vm1296, %v277, %v474
      %v1324 = vsel %vm1296, %v278, %v476
      %v1325 = vsel %vm1296, %v280, %v478
      %v1326 = vsel %vm1296, %v281, %v480
      %v1327 = vsel %vm1296, %v283, %v482
      %v1328 = vsel %vm1296, %v284, %v484
      %vm1329 = vcmask 130048
      %v1330 = vsel %vm1329, %v1297, %v599
      %v1331 = vsel %vm1329, %v1298, %v601
      %v1332 = vsel %vm1329, %v1299, %v603
      %v1333 = vsel %vm1329, %v1300, %v605
      %v1334 = vsel %vm1329, %v1301, %v607
      %v1335 = vsel %vm1329, %v1302, %v609
      %v1336 = vsel %vm1329, %v1303, %v611
      %v1337 = vsel %vm1329, %v1304, %v613
      %v1338 = vsel %vm1329, %v1305, %v615
      %v1339 = vsel %vm1329, %v1306, %v617
      %v1340 = vsel %vm1329, %v1307, %v619
      %v1341 = vsel %vm1329, %v1308, %v621
      %v1342 = vsel %vm1329, %v1309, %v623
      %v1343 = vsel %vm1329, %v1310, %v625
      %v1344 = vsel %vm1329, %v1311, %v627
      %v1345 = vsel %vm1329, %v1312, %v629
      %v1346 = vsel %vm1329, %v1313, %v631
      %v1347 = vsel %vm1329, %v1314, %v633
      %v1348 = vsel %vm1329, %v1315, %v635
      %v1349 = vsel %vm1329, %v1316, %v637
      %v1350 = vsel %vm1329, %v1317, %v639
      %v1351 = vsel %vm1329, %v1318, %v641
      %v1352 = vsel %vm1329, %v1319, %v643
      %v1353 = vsel %vm1329, %v1320, %v645
      %v1354 = vsel %vm1329, %v1321, %v647
      %v1355 = vsel %vm1329, %v1322, %v649
      %v1356 = vsel %vm1329, %v1323, %v651
      %v1357 = vsel %vm1329, %v1324, %v653
      %v1358 = vsel %vm1329, %v1325, %v655
      %v1359 = vsel %vm1329, %v1326, %v657
      %v1360 = vsel %vm1329, %v1327, %v659
      %v1361 = vsel %vm1329, %v1328, %v661
      %vm1362 = vcmask 195584
      %v1363 = vsel %vm1362, %v1330, %v697
      %v1364 = vsel %vm1362, %v1331, %v699
      %v1365 = vsel %vm1362, %v1332, %v701
      %v1366 = vsel %vm1362, %v1333, %v703
      %v1367 = vsel %vm1362, %v1334, %v705
      %v1368 = vsel %vm1362, %v1335, %v707
      %v1369 = vsel %vm1362, %v1336, %v709
      %v1370 = vsel %vm1362, %v1337, %v711
      %v1371 = vsel %vm1362, %v1338, %v713
      %v1372 = vsel %vm1362, %v1339, %v715
      %v1373 = vsel %vm1362, %v1340, %v717
      %v1374 = vsel %vm1362, %v1341, %v719
      %v1375 = vsel %vm1362, %v1342, %v721
      %v1376 = vsel %vm1362, %v1343, %v723
      %v1377 = vsel %vm1362, %v1344, %v725
      %v1378 = vsel %vm1362, %v1345, %v727
      %v1379 = vsel %vm1362, %v1346, %v729
      %v1380 = vsel %vm1362, %v1347, %v731
      %v1381 = vsel %vm1362, %v1348, %v733
      %v1382 = vsel %vm1362, %v1349, %v735
      %v1383 = vsel %vm1362, %v1350, %v737
      %v1384 = vsel %vm1362, %v1351, %v739
      %v1385 = vsel %vm1362, %v1352, %v741
      %v1386 = vsel %vm1362, %v1353, %v743
      %v1387 = vsel %vm1362, %v1354, %v745
      %v1388 = vsel %vm1362, %v1355, %v747
      %v1389 = vsel %vm1362, %v1356, %v749
      %v1390 = vsel %vm1362, %v1357, %v751
      %v1391 = vsel %vm1362, %v1358, %v753
      %v1392 = vsel %vm1362, %v1359, %v755
      %v1393 = vsel %vm1362, %v1360, %v757
      %v1394 = vsel %vm1362, %v1361, %v759
      %vm1395 = vcmask 261120
      %v1396 = vsel %vm1395, %v1363, %v799
      %v1397 = vsel %vm1395, %v1364, %v801
      %v1398 = vsel %vm1395, %v1365, %v803
      %v1399 = vsel %vm1395, %v1366, %v805
      %v1400 = vsel %vm1395, %v1367, %v807
      %v1401 = vsel %vm1395, %v1368, %v809
      %v1402 = vsel %vm1395, %v1369, %v811
      %v1403 = vsel %vm1395, %v1370, %v813
      %v1404 = vsel %vm1395, %v1371, %v815
      %v1405 = vsel %vm1395, %v1372, %v817
      %v1406 = vsel %vm1395, %v1373, %v819
      %v1407 = vsel %vm1395, %v1374, %v821
      %v1408 = vsel %vm1395, %v1375, %v823
      %v1409 = vsel %vm1395, %v1376, %v825
      %v1410 = vsel %vm1395, %v1377, %v827
      %v1411 = vsel %vm1395, %v1378, %v829
      %v1412 = vsel %vm1395, %v1379, %v831
      %v1413 = vsel %vm1395, %v1380, %v833
      %v1414 = vsel %vm1395, %v1381, %v835
      %v1415 = vsel %vm1395, %v1382, %v837
      %v1416 = vsel %vm1395, %v1383, %v839
      %v1417 = vsel %vm1395, %v1384, %v841
      %v1418 = vsel %vm1395, %v1385, %v843
      %v1419 = vsel %vm1395, %v1386, %v845
      %v1420 = vsel %vm1395, %v1387, %v847
      %v1421 = vsel %vm1395, %v1388, %v849
      %v1422 = vsel %vm1395, %v1389, %v851
      %v1423 = vsel %vm1395, %v1390, %v853
      %v1424 = vsel %vm1395, %v1391, %v855
      %v1425 = vsel %vm1395, %v1392, %v857
      %v1426 = vsel %vm1395, %v1393, %v859
      %v1427 = vsel %vm1395, %v1394, %v861
      %vm1428 = vcmask 326656
      %v1429 = vsel %vm1428, %v1396, %v900
      %v1430 = vsel %vm1428, %v1397, %v902
      %v1431 = vsel %vm1428, %v1398, %v904
      %v1432 = vsel %vm1428, %v1399, %v906
      %v1433 = vsel %vm1428, %v1400, %v908
      %v1434 = vsel %vm1428, %v1401, %v910
      %v1435 = vsel %vm1428, %v1402, %v912
      %v1436 = vsel %vm1428, %v1403, %v914
      %v1437 = vsel %vm1428, %v1404, %v916
      %v1438 = vsel %vm1428, %v1405, %v918
      %v1439 = vsel %vm1428, %v1406, %v920
      %v1440 = vsel %vm1428, %v1407, %v922
      %v1441 = vsel %vm1428, %v1408, %v924
      %v1442 = vsel %vm1428, %v1409, %v926
      %v1443 = vsel %vm1428, %v1410, %v928
      %v1444 = vsel %vm1428, %v1411, %v930
      %v1445 = vsel %vm1428, %v1412, %v932
      %v1446 = vsel %vm1428, %v1413, %v934
      %v1447 = vsel %vm1428, %v1414, %v936
      %v1448 = vsel %vm1428, %v1415, %v938
      %v1449 = vsel %vm1428, %v1416, %v940
      %v1450 = vsel %vm1428, %v1417, %v942
      %v1451 = vsel %vm1428, %v1418, %v944
      %v1452 = vsel %vm1428, %v1419, %v946
      %v1453 = vsel %vm1428, %v1420, %v948
      %v1454 = vsel %vm1428, %v1421, %v950
      %v1455 = vsel %vm1428, %v1422, %v952
      %v1456 = vsel %vm1428, %v1423, %v954
      %v1457 = vsel %vm1428, %v1424, %v956
      %v1458 = vsel %vm1428, %v1425, %v958
      %v1459 = vsel %vm1428, %v1426, %v960
      %v1460 = vsel %vm1428, %v1427, %v962
      %vm1461 = vcmask 392192
      %v1462 = vsel %vm1461, %v1429, %v998
      %v1463 = vsel %vm1461, %v1430, %v1000
      %v1464 = vsel %vm1461, %v1431, %v1002
      %v1465 = vsel %vm1461, %v1432, %v1004
      %v1466 = vsel %vm1461, %v1433, %v1006
      %v1467 = vsel %vm1461, %v1434, %v1008
      %v1468 = vsel %vm1461, %v1435, %v1010
      %v1469 = vsel %vm1461, %v1436, %v1012
      %v1470 = vsel %vm1461, %v1437, %v1014
      %v1471 = vsel %vm1461, %v1438, %v1016
      %v1472 = vsel %vm1461, %v1439, %v1018
      %v1473 = vsel %vm1461, %v1440, %v1020
      %v1474 = vsel %vm1461, %v1441, %v1022
      %v1475 = vsel %vm1461, %v1442, %v1024
      %v1476 = vsel %vm1461, %v1443, %v1026
      %v1477 = vsel %vm1461, %v1444, %v1028
      %v1478 = vsel %vm1461, %v1445, %v1030
      %v1479 = vsel %vm1461, %v1446, %v1032
      %v1480 = vsel %vm1461, %v1447, %v1034
      %v1481 = vsel %vm1461, %v1448, %v1036
      %v1482 = vsel %vm1461, %v1449, %v1038
      %v1483 = vsel %vm1461, %v1450, %v1040
      %v1484 = vsel %vm1461, %v1451, %v1042
      %v1485 = vsel %vm1461, %v1452, %v1044
      %v1486 = vsel %vm1461, %v1453, %v1046
      %v1487 = vsel %vm1461, %v1454, %v1048
      %v1488 = vsel %vm1461, %v1455, %v1050
      %v1489 = vsel %vm1461, %v1456, %v1052
      %v1490 = vsel %vm1461, %v1457, %v1054
      %v1491 = vsel %vm1461, %v1458, %v1056
      %v1492 = vsel %vm1461, %v1459, %v1058
      %v1493 = vsel %vm1461, %v1460, %v1060
      %vm1494 = vcmask 457728
      %v1495 = vsel %vm1494, %v1462, %v1100
      %v1496 = vsel %vm1494, %v1463, %v1102
      %v1497 = vsel %vm1494, %v1464, %v1104
      %v1498 = vsel %vm1494, %v1465, %v1106
      %v1499 = vsel %vm1494, %v1466, %v1108
      %v1500 = vsel %vm1494, %v1467, %v1110
      %v1501 = vsel %vm1494, %v1468, %v1112
      %v1502 = vsel %vm1494, %v1469, %v1114
      %v1503 = vsel %vm1494, %v1470, %v1116
      %v1504 = vsel %vm1494, %v1471, %v1118
      %v1505 = vsel %vm1494, %v1472, %v1120
      %v1506 = vsel %vm1494, %v1473, %v1122
      %v1507 = vsel %vm1494, %v1474, %v1124
      %v1508 = vsel %vm1494, %v1475, %v1126
      %v1509 = vsel %vm1494, %v1476, %v1128
      %v1510 = vsel %vm1494, %v1477, %v1130
      %v1511 = vsel %vm1494, %v1478, %v1132
      %v1512 = vsel %vm1494, %v1479, %v1134
      %v1513 = vsel %vm1494, %v1480, %v1136
      %v1514 = vsel %vm1494, %v1481, %v1138
      %v1515 = vsel %vm1494, %v1482, %v1140
      %v1516 = vsel %vm1494, %v1483, %v1142
      %v1517 = vsel %vm1494, %v1484, %v1144
      %v1518 = vsel %vm1494, %v1485, %v1146
      %v1519 = vsel %vm1494, %v1486, %v1148
      %v1520 = vsel %vm1494, %v1487, %v1150
      %v1521 = vsel %vm1494, %v1488, %v1152
      %v1522 = vsel %vm1494, %v1489, %v1154
      %v1523 = vsel %vm1494, %v1490, %v1156
      %v1524 = vsel %vm1494, %v1491, %v1158
      %v1525 = vsel %vm1494, %v1492, %v1160
      %v1526 = vsel %vm1494, %v1493, %v1162
      %vm1527 = vcmask 523264
      %v1528 = vsel %vm1527, %v1495, %v1201
      %v1529 = vsel %vm1527, %v1496, %v1203
      %v1530 = vsel %vm1527, %v1497, %v1205
      %v1531 = vsel %vm1527, %v1498, %v1207
      %v1532 = vsel %vm1527, %v1499, %v1209
      %v1533 = vsel %vm1527, %v1500, %v1211
      %v1534 = vsel %vm1527, %v1501, %v1213
      %v1535 = vsel %vm1527, %v1502, %v1215
      %v1536 = vsel %vm1527, %v1503, %v1217
      %v1537 = vsel %vm1527, %v1504, %v1219
      %v1538 = vsel %vm1527, %v1505, %v1221
      %v1539 = vsel %vm1527, %v1506, %v1223
      %v1540 = vsel %vm1527, %v1507, %v1225
      %v1541 = vsel %vm1527, %v1508, %v1227
      %v1542 = vsel %vm1527, %v1509, %v1229
      %v1543 = vsel %vm1527, %v1510, %v1231
      %v1544 = vsel %vm1527, %v1511, %v1233
      %v1545 = vsel %vm1527, %v1512, %v1235
      %v1546 = vsel %vm1527, %v1513, %v1237
      %v1547 = vsel %vm1527, %v1514, %v1239
      %v1548 = vsel %vm1527, %v1515, %v1241
      %v1549 = vsel %vm1527, %v1516, %v1243
      %v1550 = vsel %vm1527, %v1517, %v1245
      %v1551 = vsel %vm1527, %v1518, %v1247
      %v1552 = vsel %vm1527, %v1519, %v1249
      %v1553 = vsel %vm1527, %v1520, %v1251
      %v1554 = vsel %vm1527, %v1521, %v1253
      %v1555 = vsel %vm1527, %v1522, %v1255
      %v1556 = vsel %vm1527, %v1523, %v1257
      %v1557 = vsel %vm1527, %v1524, %v1259
      %v1558 = vsel %vm1527, %v1525, %v1261
      %v1559 = vsel %vm1527, %v1526, %v1263
      %v1560 = vpack.c.bf16 %v1529, %v1528
      %v1561 = vpack.c.bf16 %v1531, %v1530
      %v1562 = vpack.c.bf16 %v1533, %v1532
      %v1563 = vpack.c.bf16 %v1535, %v1534
      %v1564 = vpack.c.bf16 %v1537, %v1536
      %v1565 = vpack.c.bf16 %v1539, %v1538
      %v1566 = vpack.c.bf16 %v1541, %v1540
      %v1567 = vpack.c.bf16 %v1543, %v1542
      %v1568 = vpack.c.bf16 %v1545, %v1544
      %v1569 = vpack.c.bf16 %v1547, %v1546
      %v1570 = vpack.c.bf16 %v1549, %v1548
      %v1571 = vpack.c.bf16 %v1551, %v1550
      %v1572 = vpack.c.bf16 %v1553, %v1552
      %v1573 = vpack.c.bf16 %v1555, %v1554
      %v1574 = vpack.c.bf16 %v1557, %v1556
      %v1575 = vpack.c.bf16 %v1559, %v1558
      %v1576 = vld [vmem:[%s1] sm:$0xf]
      %v1577 = vld [vmem:[%s1 + $0x4] sm:$0xf]
      %v1578 = vld [vmem:[%s1 + $0x8] sm:$0xf]
      %v1579 = vld [vmem:[%s1 + $0xc] sm:$0xf]
      %v1580 = vld [vmem:[%s1 + $0x10] sm:$0xf]
      %v1581 = vld [vmem:[%s1 + $0x14] sm:$0xf]
      %v1582 = vld [vmem:[%s1 + $0x18] sm:$0xf]
      %v1583 = vld [vmem:[%s1 + $0x1c] sm:$0xf]
      %v1584 = vld [vmem:[%s1 + $0x20] sm:$0xf]
      %v1594 = vunpack.c.l.b16 %v1576
      %v1595 = vunpack.c.l.b16 %v1577
      %v1596 = vunpack.c.l.b16 %v1578
      %v1597 = vunpack.c.l.b16 %v1579
      %v1598 = vunpack.c.l.b16 %v1580
      %v1599 = vunpack.c.l.b16 %v1581
      %v1600 = vunpack.c.l.b16 %v1582
      %v1601 = vunpack.c.l.b16 %v1583
      %v1602 = vunpack.c.l.b16 %v1584
      %v1603 = vpack.c.b16 %v1595, %v1594
      %v1604 = vpack.c.b16 %v1597, %v1596
      %v1605 = vpack.c.b16 %v1599, %v1598
      %v1606 = vpack.c.b16 %v1601, %v1600
      %v1607 = vpack.c.b16 %v1602, %v1602
      %vm1612 = vcmask 588800
      %v1614 = vsel %vm1612, %v1560, 0
      %v1617 = vsel %vm1612, %v1561, 0
      %v1620 = vsel %vm1612, %v1562, 0
      %v1623 = vsel %vm1612, %v1563, 0
      %v1626 = vsel %vm1612, %v1564, 0
      %v1629 = vsel %vm1612, %v1565, 0
      %v1632 = vsel %vm1612, %v1566, 0
      %v1635 = vsel %vm1612, %v1567, 0
      %v1638 = vsel %vm1612, %v1568, 0
      %v1641 = vsel %vm1612, %v1569, 0
      %v1644 = vsel %vm1612, %v1570, 0
      %v1647 = vsel %vm1612, %v1571, 0
      %v1650 = vsel %vm1612, %v1572, 0
      %v1653 = vsel %vm1612, %v1573, 0
      %v1656 = vsel %vm1612, %v1574, 0
      %v1659 = vsel %vm1612, %v1575, 0
      %vm1661 = vcmask 1043456
      %v1663 = vsel %vm1661, %v1607, 0
      %1665 = vmatprep.subr.bf16.mxu0 0
      %1666 = vmatpush1.bf16.msra.mxu0 0
      %1667 = vmatprep.subr.bf16.mxu0 0
      %1668 = vmatpush1.bf16.msra.mxu0 0
      %1669 = vmatprep.subr.bf16.mxu0 0
      %1670 = vmatpush1.bf16.msra.mxu0 0
      %1671 = vmatprep.subr.bf16.mxu0 0
      %1672 = vmatpush1.bf16.msra.mxu0 %v1663
      %1673 = vmatprep.subr.bf16.mxu0 0
      %1674 = vmatpush1.bf16.msra.mxu0 %v1606
      %1675 = vmatprep.subr.bf16.mxu0 0
      %1676 = vmatpush1.bf16.msra.mxu0 %v1605
      %1677 = vmatprep.subr.bf16.mxu0 0
      %1678 = vmatpush1.bf16.msra.mxu0 %v1604
      %1679 = vmatprep.subr.bf16.mxu0 0
      %1680 = vmatpush1.bf16.msra.mxu0 %v1603
      %1681 = vmatprep.subr.bf16.mxu0 0
      %1682 = vmatpush2.bf16.msra.mxu0 0
      %1683 = vmatprep.subr.bf16.mxu0 0
      %1684 = vmatpush2.bf16.msra.mxu0 0
      %1685 = vmatprep.subr.bf16.mxu0 0
      %1686 = vmatpush2.bf16.msra.mxu0 0
      %1687 = vmatprep.subr.bf16.mxu0 0
      %1688 = vmatpush2.bf16.msra.mxu0 0
      %1689 = vmatprep.subr.bf16.mxu0 0
      %1690 = vmatpush2.bf16.msra.mxu0 0
      %1691 = vmatprep.subr.bf16.mxu0 0
      %1692 = vmatpush2.bf16.msra.mxu0 0
      %1693 = vmatprep.subr.bf16.mxu0 0
      %1694 = vmatpush2.bf16.msra.mxu0 0
      %1695 = vmatprep.subr.bf16.mxu0 0
      %1696 = vmatpush2.bf16.msra.mxu0 0
      %1697 = vmatprep.mubr.bf16.mxu0 0
      %1698 = vmatmul.mubr.bf16.gmra.mxu0 %v1614
      %v1699 = vpop.f32.mrf.mxu0
      %v1700 = vadd.f32 0.0, %v1699
      %v1701 = vpop.f32.mrf.mxu0
      %v1702 = vpop.f32.mrf.mxu0
      %v1703 = vadd.f32 0.0, %v1702
      %v1704 = vpop.f32.mrf.mxu0
      %1705 = vmatprep.mubr.bf16.mxu0 0
      %1706 = vmatmul.mubr.bf16.gmra.mxu0 %v1617
      %v1707 = vpop.f32.mrf.mxu0
      %v1708 = vadd.f32 0.0, %v1707
      %v1709 = vpop.f32.mrf.mxu0
      %v1710 = vpop.f32.mrf.mxu0
      %v1711 = vadd.f32 0.0, %v1710
      %v1712 = vpop.f32.mrf.mxu0
      %1713 = vmatprep.mubr.bf16.mxu0 0
      %1714 = vmatmul.mubr.bf16.gmra.mxu0 %v1620
      %v1715 = vpop.f32.mrf.mxu0
      %v1716 = vadd.f32 0.0, %v1715
      %v1717 = vpop.f32.mrf.mxu0
      %v1718 = vpop.f32.mrf.mxu0
      %v1719 = vadd.f32 0.0, %v1718
      %v1720 = vpop.f32.mrf.mxu0
      %1721 = vmatprep.mubr.bf16.mxu0 0
      %1722 = vmatmul.mubr.bf16.gmra.mxu0 %v1623
      %v1723 = vpop.f32.mrf.mxu0
      %v1724 = vadd.f32 0.0, %v1723
      %v1725 = vpop.f32.mrf.mxu0
      %v1726 = vpop.f32.mrf.mxu0
      %v1727 = vadd.f32 0.0, %v1726
      %v1728 = vpop.f32.mrf.mxu0
      %1729 = vmatprep.mubr.bf16.mxu0 0
      %1730 = vmatmul.mubr.bf16.gmra.mxu0 %v1626
      %v1731 = vpop.f32.mrf.mxu0
      %v1732 = vadd.f32 0.0, %v1731
      %v1733 = vpop.f32.mrf.mxu0
      %v1734 = vpop.f32.mrf.mxu0
      %v1735 = vadd.f32 0.0, %v1734
      %v1736 = vpop.f32.mrf.mxu0
      %1737 = vmatprep.mubr.bf16.mxu0 0
      %1738 = vmatmul.mubr.bf16.gmra.mxu0 %v1629
      %v1739 = vpop.f32.mrf.mxu0
      %v1740 = vadd.f32 0.0, %v1739
      %v1741 = vpop.f32.mrf.mxu0
      %v1742 = vpop.f32.mrf.mxu0
      %v1743 = vadd.f32 0.0, %v1742
      %v1744 = vpop.f32.mrf.mxu0
      %1745 = vmatprep.mubr.bf16.mxu0 0
      %1746 = vmatmul.mubr.bf16.gmra.mxu0 %v1632
      %v1747 = vpop.f32.mrf.mxu0
      %v1748 = vadd.f32 0.0, %v1747
      %v1749 = vpop.f32.mrf.mxu0
      %v1750 = vpop.f32.mrf.mxu0
      %v1751 = vadd.f32 0.0, %v1750
      %v1752 = vpop.f32.mrf.mxu0
      %1753 = vmatprep.mubr.bf16.mxu0 0
      %1754 = vmatmul.mubr.bf16.gmra.mxu0 %v1635
      %v1755 = vpop.f32.mrf.mxu0
      %v1756 = vadd.f32 0.0, %v1755
      %v1757 = vpop.f32.mrf.mxu0
      %v1758 = vpop.f32.mrf.mxu0
      %v1759 = vadd.f32 0.0, %v1758
      %v1760 = vpop.f32.mrf.mxu0
      %1761 = vmatprep.mubr.bf16.mxu0 0
      %1762 = vmatmul.mubr.bf16.gmra.mxu0 %v1638
      %v1763 = vpop.f32.mrf.mxu0
      %v1764 = vadd.f32 0.0, %v1763
      %v1765 = vpop.f32.mrf.mxu0
      %v1766 = vpop.f32.mrf.mxu0
      %v1767 = vadd.f32 0.0, %v1766
      %v1768 = vpop.f32.mrf.mxu0
      %1769 = vmatprep.mubr.bf16.mxu0 0
      %1770 = vmatmul.mubr.bf16.gmra.mxu0 %v1641
      %v1771 = vpop.f32.mrf.mxu0
      %v1772 = vadd.f32 0.0, %v1771
      %v1773 = vpop.f32.mrf.mxu0
      %v1774 = vpop.f32.mrf.mxu0
      %v1775 = vadd.f32 0.0, %v1774
      %v1776 = vpop.f32.mrf.mxu0
      %1777 = vmatprep.mubr.bf16.mxu0 0
      %1778 = vmatmul.mubr.bf16.gmra.mxu0 %v1644
      %v1779 = vpop.f32.mrf.mxu0
      %v1780 = vadd.f32 0.0, %v1779
      %v1781 = vpop.f32.mrf.mxu0
      %v1782 = vpop.f32.mrf.mxu0
      %v1783 = vadd.f32 0.0, %v1782
      %v1784 = vpop.f32.mrf.mxu0
      %1785 = vmatprep.mubr.bf16.mxu0 0
      %1786 = vmatmul.mubr.bf16.gmra.mxu0 %v1647
      %v1787 = vpop.f32.mrf.mxu0
      %v1788 = vadd.f32 0.0, %v1787
      %v1789 = vpop.f32.mrf.mxu0
      %v1790 = vpop.f32.mrf.mxu0
      %v1791 = vadd.f32 0.0, %v1790
      %v1792 = vpop.f32.mrf.mxu0
      %1793 = vmatprep.mubr.bf16.mxu0 0
      %1794 = vmatmul.mubr.bf16.gmra.mxu0 %v1650
      %v1795 = vpop.f32.mrf.mxu0
      %v1796 = vadd.f32 0.0, %v1795
      %v1797 = vpop.f32.mrf.mxu0
      %v1798 = vpop.f32.mrf.mxu0
      %v1799 = vadd.f32 0.0, %v1798
      %v1800 = vpop.f32.mrf.mxu0
      %1801 = vmatprep.mubr.bf16.mxu0 0
      %1802 = vmatmul.mubr.bf16.gmra.mxu0 %v1653
      %v1803 = vpop.f32.mrf.mxu0
      %v1804 = vadd.f32 0.0, %v1803
      %v1805 = vpop.f32.mrf.mxu0
      %v1806 = vpop.f32.mrf.mxu0
      %v1807 = vadd.f32 0.0, %v1806
      %v1808 = vpop.f32.mrf.mxu0
      %1809 = vmatprep.mubr.bf16.mxu0 0
      %1810 = vmatmul.mubr.bf16.gmra.mxu0 %v1656
      %v1811 = vpop.f32.mrf.mxu0
      %v1812 = vadd.f32 0.0, %v1811
      %v1813 = vpop.f32.mrf.mxu0
      %v1814 = vpop.f32.mrf.mxu0
      %v1815 = vadd.f32 0.0, %v1814
      %v1816 = vpop.f32.mrf.mxu0
      %1817 = vmatprep.mubr.bf16.mxu0 0
      %1818 = vmatmul.mubr.bf16.gmra.mxu0 %v1659
      %v1819 = vpop.f32.mrf.mxu0
      %v1820 = vadd.f32 0.0, %v1819
      %v1821 = vpop.f32.mrf.mxu0
      %v1822 = vpop.f32.mrf.mxu0
      %v1823 = vadd.f32 0.0, %v1822
      %v1824 = vpop.f32.mrf.mxu0
      %1825 = vdwg.mxu0
      %1826 = vst.msk [vmem:[%s177] sm:$0xff] %vm1296, %v1700
      %1827 = vst.msk [vmem:[%s177 + $0x8] sm:$0xff] %vm1296, %v1703
      %1828 = vst.msk [vmem:[%s177 + $0x10] sm:$0xff] %vm1296, %v1708
      %1829 = vst.msk [vmem:[%s177 + $0x18] sm:$0xff] %vm1296, %v1711
      %1830 = vst.msk [vmem:[%s177 + $0x20] sm:$0xff] %vm1296, %v1716
      %1831 = vst.msk [vmem:[%s177 + $0x28] sm:$0xff] %vm1296, %v1719
      %1832 = vst.msk [vmem:[%s177 + $0x30] sm:$0xff] %vm1296, %v1724
      %1833 = vst.msk [vmem:[%s177 + $0x38] sm:$0xff] %vm1296, %v1727
      %1834 = vst.msk [vmem:[%s177 + $0x40] sm:$0xff] %vm1296, %v1732
      %1835 = vst.msk [vmem:[%s177 + $0x48] sm:$0xff] %vm1296, %v1735
      %1836 = vst.msk [vmem:[%s177 + $0x50] sm:$0xff] %vm1296, %v1740
      %1837 = vst.msk [vmem:[%s177 + $0x58] sm:$0xff] %vm1296, %v1743
      %1838 = vst.msk [vmem:[%s177 + $0x60] sm:$0xff] %vm1296, %v1748
      %1839 = vst.msk [vmem:[%s177 + $0x68] sm:$0xff] %vm1296, %v1751
      %1840 = vst.msk [vmem:[%s177 + $0x70] sm:$0xff] %vm1296, %v1756
      %1841 = vst.msk [vmem:[%s177 + $0x78] sm:$0xff] %vm1296, %v1759
      %1842 = vst.msk [vmem:[%s177 + $0x80] sm:$0xff] %vm1296, %v1764
      %1843 = vst.msk [vmem:[%s177 + $0x88] sm:$0xff] %vm1296, %v1767
      %1844 = vst.msk [vmem:[%s177 + $0x90] sm:$0xff] %vm1296, %v1772
      %1845 = vst.msk [vmem:[%s177 + $0x98] sm:$0xff] %vm1296, %v1775
      %1846 = vst.msk [vmem:[%s177 + $0xa0] sm:$0xff] %vm1296, %v1780
      %1847 = vst.msk [vmem:[%s177 + $0xa8] sm:$0xff] %vm1296, %v1783
      %1848 = vst.msk [vmem:[%s177 + $0xb0] sm:$0xff] %vm1296, %v1788
      %1849 = vst.msk [vmem:[%s177 + $0xb8] sm:$0xff] %vm1296, %v1791
      %1850 = vst.msk [vmem:[%s177 + $0xc0] sm:$0xff] %vm1296, %v1796
      %1851 = vst.msk [vmem:[%s177 + $0xc8] sm:$0xff] %vm1296, %v1799
      %1852 = vst.msk [vmem:[%s177 + $0xd0] sm:$0xff] %vm1296, %v1804
      %1853 = vst.msk [vmem:[%s177 + $0xd8] sm:$0xff] %vm1296, %v1807
      %1854 = vst.msk [vmem:[%s177 + $0xe0] sm:$0xff] %vm1296, %v1812
      %1855 = vst.msk [vmem:[%s177 + $0xe8] sm:$0xff] %vm1296, %v1815
      %1856 = vst.msk [vmem:[%s177 + $0xf0] sm:$0xff] %vm1296, %v1820
      %1857 = vst.msk [vmem:[%s177 + $0xf8] sm:$0xff] %vm1296, %v1823
      %v1858 = vsel %vm1296, %v1700, 0.0
      %v1859 = vsel %vm1296, %v1703, 0.0
      %v1860 = vadd.f32 %v1858, %v1859
      %v1861 = vsel %vm1296, %v1708, 0.0
      %v1862 = vadd.f32 %v1860, %v1861
      %v1863 = vsel %vm1296, %v1711, 0.0
      %v1864 = vadd.f32 %v1862, %v1863
      %v1865 = vsel %vm1296, %v1716, 0.0
      %v1866 = vadd.f32 %v1864, %v1865
      %v1867 = vsel %vm1296, %v1719, 0.0
      %v1868 = vadd.f32 %v1866, %v1867
      %v1869 = vsel %vm1296, %v1724, 0.0
      %v1870 = vadd.f32 %v1868, %v1869
      %v1871 = vsel %vm1296, %v1727, 0.0
      %v1872 = vadd.f32 %v1870, %v1871
      %v1873 = vsel %vm1296, %v1732, 0.0
      %v1874 = vadd.f32 %v1872, %v1873
      %v1875 = vsel %vm1296, %v1735, 0.0
      %v1876 = vadd.f32 %v1874, %v1875
      %v1877 = vsel %vm1296, %v1740, 0.0
      %v1878 = vadd.f32 %v1876, %v1877
      %v1879 = vsel %vm1296, %v1743, 0.0
      %v1880 = vadd.f32 %v1878, %v1879
      %v1881 = vsel %vm1296, %v1748, 0.0
      %v1882 = vadd.f32 %v1880, %v1881
      %v1883 = vsel %vm1296, %v1751, 0.0
      %v1884 = vadd.f32 %v1882, %v1883
      %v1885 = vsel %vm1296, %v1756, 0.0
      %v1886 = vadd.f32 %v1884, %v1885
      %v1887 = vsel %vm1296, %v1759, 0.0
      %v1888 = vadd.f32 %v1886, %v1887
      %v1889 = vsel %vm1296, %v1764, 0.0
      %v1890 = vadd.f32 %v1888, %v1889
      %v1891 = vsel %vm1296, %v1767, 0.0
      %v1892 = vadd.f32 %v1890, %v1891
      %v1893 = vsel %vm1296, %v1772, 0.0
      %v1894 = vadd.f32 %v1892, %v1893
      %v1895 = vsel %vm1296, %v1775, 0.0
      %v1896 = vadd.f32 %v1894, %v1895
      %v1897 = vsel %vm1296, %v1780, 0.0
      %v1898 = vadd.f32 %v1896, %v1897
      %v1899 = vsel %vm1296, %v1783, 0.0
      %v1900 = vadd.f32 %v1898, %v1899
      %v1901 = vsel %vm1296, %v1788, 0.0
      %v1902 = vadd.f32 %v1900, %v1901
      %v1903 = vsel %vm1296, %v1791, 0.0
      %v1904 = vadd.f32 %v1902, %v1903
      %v1905 = vsel %vm1296, %v1796, 0.0
      %v1906 = vadd.f32 %v1904, %v1905
      %v1907 = vsel %vm1296, %v1799, 0.0
      %v1908 = vadd.f32 %v1906, %v1907
      %v1909 = vsel %vm1296, %v1804, 0.0
      %v1910 = vadd.f32 %v1908, %v1909
      %v1911 = vsel %vm1296, %v1807, 0.0
      %v1912 = vadd.f32 %v1910, %v1911
      %v1913 = vsel %vm1296, %v1812, 0.0
      %v1914 = vadd.f32 %v1912, %v1913
      %v1915 = vsel %vm1296, %v1815, 0.0
      %v1916 = vadd.f32 %v1914, %v1915
      %v1917 = vsel %vm1296, %v1820, 0.0
      %v1918 = vadd.f32 %v1916, %v1917
      %v1919 = vsel %vm1296, %v1823, 0.0
      %v1920 = vadd.f32 %v1918, %v1919
      %v1921 = vrot.slane %v1920, 4
      %v1922 = vadd.f32 %v1920, %v1921
      %v1923 = vrot.slane %v1922, 2
      %v1924 = vadd.f32 %v1922, %v1923
      %v1925 = vrot.slane %v1924, 1
      %v1926 = vadd.f32 %v1924, %v1925
      %v1927 = vmul.f32 %v1700, %v1700
      %v1928 = vmul.f32 %v1703, %v1703
      %v1929 = vmul.f32 %v1708, %v1708
      %v1930 = vmul.f32 %v1711, %v1711
      %v1931 = vmul.f32 %v1716, %v1716
      %v1932 = vmul.f32 %v1719, %v1719
      %v1933 = vmul.f32 %v1724, %v1724
      %v1934 = vmul.f32 %v1727, %v1727
      %v1935 = vmul.f32 %v1732, %v1732
      %v1936 = vmul.f32 %v1735, %v1735
      %v1937 = vmul.f32 %v1740, %v1740
      %v1938 = vmul.f32 %v1743, %v1743
      %v1939 = vmul.f32 %v1748, %v1748
      %v1940 = vmul.f32 %v1751, %v1751
      %v1941 = vmul.f32 %v1756, %v1756
      %v1942 = vmul.f32 %v1759, %v1759
      %v1943 = vmul.f32 %v1764, %v1764
      %v1944 = vmul.f32 %v1767, %v1767
      %v1945 = vmul.f32 %v1772, %v1772
      %v1946 = vmul.f32 %v1775, %v1775
      %v1947 = vmul.f32 %v1780, %v1780
      %v1948 = vmul.f32 %v1783, %v1783
      %v1949 = vmul.f32 %v1788, %v1788
      %v1950 = vmul.f32 %v1791, %v1791
      %v1951 = vmul.f32 %v1796, %v1796
      %v1952 = vmul.f32 %v1799, %v1799
      %v1953 = vmul.f32 %v1804, %v1804
      %v1954 = vmul.f32 %v1807, %v1807
      %v1955 = vmul.f32 %v1812, %v1812
      %v1956 = vmul.f32 %v1815, %v1815
      %v1957 = vmul.f32 %v1820, %v1820
      %v1958 = vmul.f32 %v1823, %v1823
      %v1959 = vsel %vm1296, %v1927, 0.0
      %v1960 = vsel %vm1296, %v1928, 0.0
      %v1961 = vadd.f32 %v1959, %v1960
      %v1962 = vsel %vm1296, %v1929, 0.0
      %v1963 = vadd.f32 %v1961, %v1962
      %v1964 = vsel %vm1296, %v1930, 0.0
      %v1965 = vadd.f32 %v1963, %v1964
      %v1966 = vsel %vm1296, %v1931, 0.0
      %v1967 = vadd.f32 %v1965, %v1966
      %v1968 = vsel %vm1296, %v1932, 0.0
      %v1969 = vadd.f32 %v1967, %v1968
      %v1970 = vsel %vm1296, %v1933, 0.0
      %v1971 = vadd.f32 %v1969, %v1970
      %v1972 = vsel %vm1296, %v1934, 0.0
      %v1973 = vadd.f32 %v1971, %v1972
      %v1974 = vsel %vm1296, %v1935, 0.0
      %v1975 = vadd.f32 %v1973, %v1974
      %v1976 = vsel %vm1296, %v1936, 0.0
      %v1977 = vadd.f32 %v1975, %v1976
      %v1978 = vsel %vm1296, %v1937, 0.0
      %v1979 = vadd.f32 %v1977, %v1978
      %v1980 = vsel %vm1296, %v1938, 0.0
      %v1981 = vadd.f32 %v1979, %v1980
      %v1982 = vsel %vm1296, %v1939, 0.0
      %v1983 = vadd.f32 %v1981, %v1982
      %v1984 = vsel %vm1296, %v1940, 0.0
      %v1985 = vadd.f32 %v1983, %v1984
      %v1986 = vsel %vm1296, %v1941, 0.0
      %v1987 = vadd.f32 %v1985, %v1986
      %v1988 = vsel %vm1296, %v1942, 0.0
      %v1989 = vadd.f32 %v1987, %v1988
      %v1990 = vsel %vm1296, %v1943, 0.0
      %v1991 = vadd.f32 %v1989, %v1990
      %v1992 = vsel %vm1296, %v1944, 0.0
      %v1993 = vadd.f32 %v1991, %v1992
      %v1994 = vsel %vm1296, %v1945, 0.0
      %v1995 = vadd.f32 %v1993, %v1994
      %v1996 = vsel %vm1296, %v1946, 0.0
      %v1997 = vadd.f32 %v1995, %v1996
      %v1998 = vsel %vm1296, %v1947, 0.0
      %v1999 = vadd.f32 %v1997, %v1998
      %v2000 = vsel %vm1296, %v1948, 0.0
      %v2001 = vadd.f32 %v1999, %v2000
      %v2002 = vsel %vm1296, %v1949, 0.0
      %v2003 = vadd.f32 %v2001, %v2002
      %v2004 = vsel %vm1296, %v1950, 0.0
      %v2005 = vadd.f32 %v2003, %v2004
      %v2006 = vsel %vm1296, %v1951, 0.0
      %v2007 = vadd.f32 %v2005, %v2006
      %v2008 = vsel %vm1296, %v1952, 0.0
      %v2009 = vadd.f32 %v2007, %v2008
      %v2010 = vsel %vm1296, %v1953, 0.0
      %v2011 = vadd.f32 %v2009, %v2010
      %v2012 = vsel %vm1296, %v1954, 0.0
      %v2013 = vadd.f32 %v2011, %v2012
      %v2014 = vsel %vm1296, %v1955, 0.0
      %v2015 = vadd.f32 %v2013, %v2014
      %v2016 = vsel %vm1296, %v1956, 0.0
      %v2017 = vadd.f32 %v2015, %v2016
      %v2018 = vsel %vm1296, %v1957, 0.0
      %v2019 = vadd.f32 %v2017, %v2018
      %v2020 = vsel %vm1296, %v1958, 0.0
      %v2021 = vadd.f32 %v2019, %v2020
      %v2022 = vrot.slane %v2021, 4
      %v2023 = vadd.f32 %v2021, %v2022
      %v2024 = vrot.slane %v2023, 2
      %v2025 = vadd.f32 %v2023, %v2024
      %v2026 = vrot.slane %v2025, 1
      %v2027 = vadd.f32 %v2025, %v2026
      %vm2028 = vcmask 1040384
      %v2029 = vsel %vm2028, %v1926, %v2027
      %vm2030 = vcmask 58368
      %2031 = vst.msk [vmem:[%s182] sm:$0x3] %vm2030, %v2029
      %s2032 = smul.u32 32, %s15
      %p2033 = scmp.lt.s32.totalorder %s2032, 63
      %s2034 = scalar_select %p2033, %s2032, 63
      %s2035 = smul.addr %s2034, 8
      %s2036 = scalar_lea.vmem %s2, %s2035
      %p2037 = scmp.lt.s32.totalorder %s15, 1
      %s2038 = scalar_select %p2037, %s15, 1
      %s2039 = smul.addr %s2038, 2
      %s2040 = scalar_lea.vmem %s3, %s2039
      // Predicated region
      $region29: #{double_conv.6} parent=27 // pred_check
        %p2041 = pneg %p80
      $region30: #{double_conv.6} parent=27 // pred_check_branch
        %2043 = sbr.rel (%p2041) target = $region32
      $region31: #{double_conv.6} parent=27 // pred_region
        %s2044 = smul.u32 32, %s15
      $region32: #{double_conv.6} parent=27 // pred_fallthru
        _
      // Predicated region
      $region33: #{double_conv.6} parent=27 // pred_check
        %p2045 = pneg %p106
      $region34: #{double_conv.6} parent=27 // pred_check_branch
        %2047 = sbr.rel (%p2045) target = $region36
      $region35: #{double_conv.6} parent=27 // pred_region
        _
      $region36: #{double_conv.6} parent=27 // pred_fallthru
        _
    $region28: #{double_conv.6} parent=5 // pred_fallthru
      _
    %p2048 = scmp.le.s32.totalorder 2, %s10
    // Predicated region
    $region37: #{double_conv.6} parent=5 // pred_check
      %p2049 = pneg %p2048
    $region38: #{double_conv.6} parent=5 // pred_check_branch
      %2051 = sbr.rel (%p2049) target = $region40
    $region39: #{double_conv.6} parent=5 // pred_region
      %s2052 = ssub.s32 %s10, 2
      // Predicated region
      $region41: #{double_conv.6} parent=39 // pred_check
        %p2053 = pneg %p86
      $region42: #{double_conv.6} parent=39 // pred_check_branch
        %2055 = sbr.rel (%p2053) target = $region44
      $region43: #{double_conv.6} parent=39 // pred_region
        %s2056 = smul.u32 32, %s16
        %p2057 = scmp.lt.s32.totalorder %s2056, 63
        %s2058 = scalar_select %p2057, %s2056, 63
        %s2059 = smul.addr %s2058, 8
        %s2060 = scalar_lea.vmem %s2, %s2059
      $region44: #{double_conv.6} parent=39 // pred_fallthru
        _
      // Predicated region
      $region45: #{double_conv.6} parent=39 // pred_check
        %p2061 = pneg %p112
      $region46: #{double_conv.6} parent=39 // pred_check_branch
        %2063 = sbr.rel (%p2061) target = $region48
      $region47: #{double_conv.6} parent=39 // pred_region
        %p2064 = scmp.lt.s32.totalorder %s16, 1
        %s2065 = scalar_select %p2064, %s16, 1
        %s2066 = smul.addr %s2065, 2
        %s2067 = scalar_lea.vmem %s3, %s2066
      $region48: #{double_conv.6} parent=39 // pred_fallthru
        _
    $region40: #{double_conv.6} parent=5 // pred_fallthru
      _
  $region6: #{double_conv.6} parent=0 // loop_footer
    %s14 = sadd.s32 1, %s10
  $region7: #{double_conv.6} parent=0 // loop_footer_branch
    %9 = sbr.rel target = $region3
  $region8: #{double_conv.6} parent=0 // loop_exit
    _

</llo_original>
